<compile_context>
chip_gen: v6e
topology: v6e:2x2x1
jax: 0.10.0
libtpu: 0.0.40
codegen_flags: <defaults>
</compile_context>

<pallas_src>
import functools
import math

import jax
import jax.numpy as jnp
from jax.experimental import pallas as pl
from jax.experimental.pallas import tpu as pltpu


# Row layout of the packed [16, H] f32 bias / LayerNorm-parameter slab.
(_BQ1, _BK1, _BV1, _BO1, _LN1G, _LN1B,
 _BQ2, _BK2, _BV2, _BO2, _LN2G, _LN2B,
 _B2, _LN3G, _LN3B, _PADROW) = range(16)


def decoder_layer_kernel(
    trg_ref, enc_ref, tbias_ref, sbias_ref,
    wq1_ref, wkv1_ref, wo1_ref,
    wq2_ref, wkv2_ref, wo2_ref,
    w1_ref, w2_ref,
    bias_ref, b1_ref,
    out_ref, attn_ref,
    *, heads_num, head_dim, block_q, eps):

    H = heads_num * head_dim
    T = trg_ref.shape[1]
    S = enc_ref.shape[1]

    qt = pl.program_id(1)
    q_start = pl.multiple_of(qt * block_q, block_q)

    trg_full = trg_ref[0]                              # [T, H]  bf16 (self-attn K/V)
    enc_full = enc_ref[0]                              # [S, H]  bf16 (cross-attn K/V)
    trg_q = trg_ref[0, pl.ds(q_start, block_q), :]     # [tq, H] bf16 (query tile)

    biases = bias_ref[...]                             # [16, H] f32 packed slab

    def brow(i):
        return biases[i:i + 1, :]                      # [1, H] f32

    def layer_norm(z, g, b):
        mu = jnp.mean(z, axis=-1, keepdims=True)
        var = jnp.mean(jnp.square(z - mu), axis=-1, keepdims=True)
        return (z - mu) * jax.lax.rsqrt(var + eps) * g + b

    def mha(xq_bf, xkv_bf, key_bias, wq_r, wkv_r, wo_r, bq, bk, bv, bo, out_attn):
        """Multi-head attention; key_bias is an additive f32 mask [tq, Tk]."""
        # Full-width projections: K = H contraction on the MXU, f32 accumulation.
        # 1/sqrt(head_dim) is already folded into wq / bq.
        q = jnp.dot(xq_bf, wq_r[...], preferred_element_type=jnp.float32) + bq   # [tq, H]
        kv = jnp.dot(xkv_bf, wkv_r[...], preferred_element_type=jnp.float32)     # [Tk, 2H]
        k = kv[:, :H] + bk
        v = kv[:, H:] + bv

        ctx_parts = []
        for h in range(heads_num):                     # static unroll over heads
            sl = slice(h * head_dim, (h + 1) * head_dim)
            qh = q[:, sl].astype(jnp.bfloat16)
            kh = k[:, sl].astype(jnp.bfloat16)
            vh = v[:, sl].astype(jnp.bfloat16)
            # scores [tq, Tk]; softmax statistics stay f32
            e = jax.lax.dot_general(qh, kh, (((1,), (1,)), ((), ())),
                                    preferred_element_type=jnp.float32)
            e = e + key_bias
            e = e - jnp.max(e, axis=-1, keepdims=True)
            p = jnp.exp(e)
            denom = jnp.sum(p, axis=-1, keepdims=True)
            if out_attn is None:
                # probabilities not returned: approx reciprocal on the EUP slot
                attn_h = p * pl.reciprocal(denom, approx=True)
            else:
                # returned probabilities: exact division (matches torch.softmax)
                attn_h = p / denom
                out_attn[0, h] = attn_h.astype(out_attn.dtype)
            ctx_parts.append(jnp.dot(attn_h.astype(jnp.bfloat16), vh,
                                     preferred_element_type=jnp.float32))        # [tq, hd]

        # Output projection: concat heads along lanes -> one [tq,H] @ [H,H] matmul.
        ctx = jnp.concatenate(ctx_parts, axis=1).astype(jnp.bfloat16)             # [tq, H]
        return jnp.dot(ctx, wo_r[...], preferred_element_type=jnp.float32) + bo

    # Additive masks in f32, built once per tile (standard decoder usage:
    # trg_mask = pad & causal, src_mask = pad).
    row = q_start + jax.lax.broadcasted_iota(jnp.int32, (block_q, T), 0)
    col = jax.lax.broadcasted_iota(jnp.int32, (block_q, T), 1)
    causal = jnp.where(col <= row, 0.0, -1e10).astype(jnp.float32)                # [tq, T]
    self_bias = causal + tbias_ref[0]                                             # [tq, T]
    cross_bias = jnp.broadcast_to(sbias_ref[0], (block_q, S))                     # [tq, S]

    # 1) masked self-attention + residual + LayerNorm1   (Dropout == identity)
    sa = mha(trg_q, trg_full, self_bias, wq1_ref, wkv1_ref, wo1_ref,
             brow(_BQ1), brow(_BK1), brow(_BV1), brow(_BO1), None)
    mid1 = layer_norm(trg_q.astype(jnp.float32) + sa, brow(_LN1G), brow(_LN1B))

    # 2) encoder (cross) attention + residual + LayerNorm2; probs -> attn_ref
    ca = mha(mid1.astype(jnp.bfloat16), enc_full, cross_bias,
             wq2_ref, wkv2_ref, wo2_ref,
             brow(_BQ2), brow(_BK2), brow(_BV2), brow(_BO2), attn_ref)
    mid2 = layer_norm(mid1 + ca, brow(_LN2G), brow(_LN2B))

    # 3) position-wise feed-forward: Linear -> ReLU -> (Dropout) -> Linear
    h1 = jnp.dot(mid2.astype(jnp.bfloat16), w1_ref[...],
                 preferred_element_type=jnp.float32) + b1_ref[...]
    h1 = jnp.maximum(h1, 0.0)
    ff = jnp.dot(h1.astype(jnp.bfloat16), w2_ref[...],
                 preferred_element_type=jnp.float32) + brow(_B2)
    out = layer_norm(mid2 + ff, brow(_LN3G), brow(_LN3B))

    out_ref[0] = out.astype(out_ref.dtype)


def _vmem_limit_bytes():
    """Per-generation VMEM budget: ~80% of physical (~102 MiB v5e/v6e, ~51 MiB v7x)."""
    try:
        return int(pltpu.get_tpu_info().vmem_capacity_bytes * 0.8)
    except Exception:
        return 64 * 1024 * 1024


def decoder_layer(trg, enc_src, trg_pad_mask, src_pad_mask, params, heads_num):
    """trg: [B,T,H] f32, enc_src: [B,S,H] f32, *_pad_mask: [B,len] (1 keep / 0 pad)."""
    B, T, H = trg.shape
    S = enc_src.shape[1]
    PF = params["w1"].shape[1]
    head_dim = H // heads_num

    # Query-tile size: tq must divide T and be a multiple of 8 (or equal T).
    block_q = 256 if (T > 256 and T % 256 == 0) else T
    n_q = T // block_q

    NEG = jnp.float32(-1e10)
    # additive pad biases: 0 where attendable, -1e10 where masked
    tbias = jnp.where(trg_pad_mask[:, None, :] == 0.0, NEG, 0.0).astype(jnp.float32)
    sbias = jnp.where(src_pad_mask[:, None, :] == 0.0, NEG, 0.0).astype(jnp.float32)

    # bf16 activations halve HBM->VMEM traffic; all math inside stays f32.
    trg_bf = trg.astype(jnp.bfloat16)
    enc_bf = enc_src.astype(jnp.bfloat16)

    kernel = functools.partial(decoder_layer_kernel, heads_num=heads_num,
                               head_dim=head_dim, block_q=block_q, eps=1e-5)

    out_shapes = (
        jax.ShapeDtypeStruct((B, T, H), jnp.float32),             # layer output
        jax.ShapeDtypeStruct((B, heads_num, T, S), jnp.float32),  # cross-attn probs
    )

    def run(single_buffer_weights):
        def bspec(*shape):
            return pl.BlockSpec(shape, lambda b, q, n=len(shape): (b,) + (0,) * (n - 1))

        def wspec(*shape):
            idx = lambda b, q, n=len(shape): (0,) * n
            if single_buffer_weights:
                # grid-invariant weights: single buffer (no double buffering waste)
                return pl.BlockSpec(shape, idx, pipeline_mode=pl.Buffered(1))
            return pl.BlockSpec(shape, idx)

        in_specs = [
            bspec(1, T, H),          # trg (bf16): full T for self-attn K/V
            bspec(1, S, H),          # enc_src (bf16)
            bspec(1, 1, T),          # trg pad additive bias
            bspec(1, 1, S),          # src pad additive bias
            wspec(H, H),             # wq1 (1/sqrt(hd) folded in)
            wspec(H, 2 * H),         # wkv1 (fused K/V projection)
            wspec(H, H),             # wo1
            wspec(H, H),             # wq2
            wspec(H, 2 * H),         # wkv2
            wspec(H, H),             # wo2
            wspec(H, PF),            # w1
            wspec(PF, H),            # w2
            wspec(16, H),            # packed biases + LayerNorm params
            wspec(1, PF),            # b1
        ]
        out_specs = (
            pl.BlockSpec((1, block_q, H), lambda b, q: (b, q, 0)),
            pl.BlockSpec((1, heads_num, block_q, S), lambda b, q: (b, 0, q, 0)),
        )
        return pl.pallas_call(
            kernel,
            out_shape=out_shapes,
            grid=(B, n_q),
            in_specs=in_specs,
            out_specs=out_specs,
            compiler_params=pltpu.CompilerParams(
                dimension_semantics=("parallel", "parallel"),
                vmem_limit_bytes=_vmem_limit_bytes(),
            ),
        )(trg_bf, enc_bf, tbias, sbias,
          params["wq1"], params["wkv1"], params["wo1"],
          params["wq2"], params["wkv2"], params["wo2"],
          params["w1"], params["w2"],
          params["bias_slab"], params["b1"])

    try:
        return run(True)
    except Exception:
        # pipeline_mode=pl.Buffered(1) not supported by this jax build: fall
        # back to default double-buffered weights (identical semantics).
        return run(False)


def init_params(key, H, PF, heads_num):
    """Kernel-ready parameters.

    Mapping from PyTorch: Linear.weight is [out, in]; the kernel wants [in, out]
    (x @ W).  K/V projections are fused into wkv = [Wk | Wv] of shape [H, 2H];
    1/sqrt(head_dim) is folded into wq / bq; matmul weights are bf16; all biases
    and LayerNorm gammas/betas are packed into a single [16, H] f32 slab.
    """
    hd = H // heads_num
    inv_scale = 1.0 / math.sqrt(hd)
    ks = iter(jax.random.split(key, 12))

    def lin(k, din, dout, scale=0.05):
        w = (scale * jax.random.normal(k, (din, dout))).astype(jnp.float32)
        b = (0.01 * jax.random.normal(jax.random.fold_in(k, 1), (dout,))).astype(jnp.float32)
        return w, b

    def attn_params():
        wq, bq = lin(next(ks), H, H)
        wk, bk = lin(next(ks), H, H)
        wv, bv = lin(next(ks), H, H)
        wo, bo = lin(next(ks), H, H)
        return {
            "wq": (wq * inv_scale).astype(jnp.bfloat16),
            "bq": bq * inv_scale,
            "wkv": jnp.concatenate([wk, wv], axis=1).astype(jnp.bfloat16),
            "bk": bk, "bv": bv,
            "wo": wo.astype(jnp.bfloat16), "bo": bo,
        }

    a1, a2 = attn_params(), attn_params()
    w1, b1 = lin(next(ks), H, PF)
    w2, b2 = lin(next(ks), PF, H)
    ln_g = jnp.ones((H,), jnp.float32)
    ln_b = jnp.zeros((H,), jnp.float32)

    bias_slab = jnp.stack([
        a1["bq"], a1["bk"], a1["bv"], a1["bo"], ln_g, ln_b,   # self-attn + LN1
        a2["bq"], a2["bk"], a2["bv"], a2["bo"], ln_g, ln_b,   # cross-attn + LN2
        b2, ln_g, ln_b,                                       # FFN out bias + LN3
        jnp.zeros((H,), jnp.float32),                         # pad row
    ], axis=0)

    return {
        "wq1": a1["wq"], "wkv1": a1["wkv"], "wo1": a1["wo"],
        "wq2": a2["wq"], "wkv2": a2["wkv"], "wo2": a2["wo"],
        "w1": w1.astype(jnp.bfloat16), "b1": b1.reshape(1, PF),
        "w2": w2.astype(jnp.bfloat16),
        "bias_slab": bias_slab,
    }


if __name__ == "__main__":
    B, T, S_ENC = 2, 8, 12
    H, HEADS, PF = 32, 4, 64

    key = jax.random.PRNGKey(0)
    k_param, k_trg, k_enc = jax.random.split(key, 3)
    params = init_params(k_param, H, PF, HEADS)

    trg = (0.1 * jax.random.normal(k_trg, (B, T, H))).astype(jnp.float32)
    enc_src = (0.1 * jax.random.normal(k_enc, (B, S_ENC, H))).astype(jnp.float32)
    # pad masks: batch element 1 has trailing positions masked out
    trg_pad = jnp.ones((B, T), jnp.float32).at[1, 6:].set(0.0)
    src_pad = jnp.ones((B, S_ENC), jnp.float32).at[1, 9:].set(0.0)

    out, attn = decoder_layer(trg, enc_src, trg_pad, src_pad, params, HEADS)
    out = jax.block_until_ready(out)
    attn = jax.block_until_ready(attn)

    assert out.shape == (B, T, H) and out.dtype == jnp.float32
    assert attn.shape == (B, HEADS, T, S_ENC)
    assert bool(jnp.all(jnp.isfinite(out)))
    assert bool(jnp.all(jnp.isfinite(attn)))
    # cross-attention rows are exact softmax probabilities: each row sums to ~1
    row_sums = jnp.sum(attn, axis=-1)
    assert bool(jnp.all(jnp.abs(row_sums - 1.0) < 1e-3))
    print("KERNEL_OK")
</pallas_src>

<mosaic_0001>
module attributes {stable_mosaic.version = 11 : i64} {
  func.func @decoder_layer_kernel(%arg0: i32, %arg1: i32, %arg2: memref<1x8x32xbf16, #tpu.memory_space<vmem>>, %arg3: memref<1x12x32xbf16, #tpu.memory_space<vmem>>, %arg4: memref<1x1x8xf32, #tpu.memory_space<vmem>>, %arg5: memref<1x1x12xf32, #tpu.memory_space<vmem>>, %arg6: memref<32x32xbf16, #tpu.memory_space<vmem>>, %arg7: memref<32x64xbf16, #tpu.memory_space<vmem>>, %arg8: memref<32x32xbf16, #tpu.memory_space<vmem>>, %arg9: memref<32x32xbf16, #tpu.memory_space<vmem>>, %arg10: memref<32x64xbf16, #tpu.memory_space<vmem>>, %arg11: memref<32x32xbf16, #tpu.memory_space<vmem>>, %arg12: memref<32x64xbf16, #tpu.memory_space<vmem>>, %arg13: memref<64x32xbf16, #tpu.memory_space<vmem>>, %arg14: memref<16x32xf32, #tpu.memory_space<vmem>>, %arg15: memref<1x64xf32, #tpu.memory_space<vmem>>, %arg16: memref<1x8x32xf32, #tpu.memory_space<vmem>>, %arg17: memref<1x4x8x12xf32, #tpu.memory_space<vmem>>) attributes {dimension_semantics = [#tpu.dimension_semantics<parallel>, #tpu.dimension_semantics<parallel>], iteration_bounds = array<i64: 2, 1>, scalar_prefetch = 0 : i64, scratch_operands = 0 : i64, tpu.core_type = #tpu.core_type<tc>, window_params = [{transform_indices = @transform_0, window_bounds = array<i64: 1, 8, 32>}, {transform_indices = @transform_1, window_bounds = array<i64: 1, 12, 32>}, {transform_indices = @transform_2, window_bounds = array<i64: 1, 1, 8>}, {transform_indices = @transform_3, window_bounds = array<i64: 1, 1, 12>}, {pipeline_mode = #tpu.pipeline_mode<synchronous>, transform_indices = @transform_4, window_bounds = array<i64: 32, 32>}, {pipeline_mode = #tpu.pipeline_mode<synchronous>, transform_indices = @transform_5, window_bounds = array<i64: 32, 64>}, {pipeline_mode = #tpu.pipeline_mode<synchronous>, transform_indices = @transform_6, window_bounds = array<i64: 32, 32>}, {pipeline_mode = #tpu.pipeline_mode<synchronous>, transform_indices = @transform_7, window_bounds = array<i64: 32, 32>}, {pipeline_mode = #tpu.pipeline_mode<synchronous>, transform_indices = @transform_8, window_bounds = array<i64: 32, 64>}, {pipeline_mode = #tpu.pipeline_mode<synchronous>, transform_indices = @transform_9, window_bounds = array<i64: 32, 32>}, {pipeline_mode = #tpu.pipeline_mode<synchronous>, transform_indices = @transform_10, window_bounds = array<i64: 32, 64>}, {pipeline_mode = #tpu.pipeline_mode<synchronous>, transform_indices = @transform_11, window_bounds = array<i64: 64, 32>}, {pipeline_mode = #tpu.pipeline_mode<synchronous>, transform_indices = @transform_12, window_bounds = array<i64: 16, 32>}, {pipeline_mode = #tpu.pipeline_mode<synchronous>, transform_indices = @transform_13, window_bounds = array<i64: 1, 64>}, {transform_indices = @transform_14, window_bounds = array<i64: 1, 8, 32>}, {transform_indices = @transform_15, window_bounds = array<i64: 1, 4, 8, 12>}]} {
    %c8_i32 = arith.constant 8 : i32
    %0 = arith.muli %arg1, %c8_i32 : i32
    %1 = tpu.assume_multiple %0, 8 : i32
    %c0 = arith.constant 0 : index
    %c0_0 = arith.constant 0 : index
    %c0_1 = arith.constant 0 : index
    %2 = vector.load %arg2[%c0, %c0_0, %c0_1] : memref<1x8x32xbf16, #tpu.memory_space<vmem>>, vector<1x8x32xbf16>
    %3 = vector.shape_cast %2 : vector<1x8x32xbf16> to vector<8x32xbf16>
    %c0_2 = arith.constant 0 : index
    %c0_3 = arith.constant 0 : index
    %c0_4 = arith.constant 0 : index
    %4 = vector.load %arg3[%c0_2, %c0_3, %c0_4] : memref<1x12x32xbf16, #tpu.memory_space<vmem>>, vector<1x12x32xbf16>
    %5 = vector.shape_cast %4 : vector<1x12x32xbf16> to vector<12x32xbf16>
    %c0_5 = arith.constant 0 : index
    %6 = arith.index_cast %1 : i32 to index
    %c0_6 = arith.constant 0 : index
    %7 = vector.load %arg2[%c0_5, %6, %c0_6] : memref<1x8x32xbf16, #tpu.memory_space<vmem>>, vector<1x8x32xbf16>
    %8 = vector.shape_cast %7 : vector<1x8x32xbf16> to vector<8x32xbf16>
    %c0_7 = arith.constant 0 : index
    %c0_8 = arith.constant 0 : index
    %9 = vector.load %arg14[%c0_7, %c0_8] : memref<16x32xf32, #tpu.memory_space<vmem>>, vector<16x32xf32>
    %10 = tpu.iota {dimensions = array<i32: 0>} : vector<8x8xi32>
    %11 = vector.broadcast %1 : i32 to vector<8x8xi32>
    %12 = arith.addi %11, %10 : vector<8x8xi32>
    %13 = tpu.iota {dimensions = array<i32: 1>} : vector<8x8xi32>
    %14 = arith.cmpi sle, %13, %12 : vector<8x8xi32>
    %cst = arith.constant 0.000000e+00 : f32
    %cst_9 = arith.constant -1.000000e+10 : f32
    %15 = vector.broadcast %cst : f32 to vector<8x8xf32>
    %16 = vector.broadcast %cst_9 : f32 to vector<8x8xf32>
    %17 = arith.select %14, %15, %16 : vector<8x8xi1>, vector<8x8xf32>
    %c0_10 = arith.constant 0 : index
    %c0_11 = arith.constant 0 : index
    %c0_12 = arith.constant 0 : index
    %18 = vector.load %arg4[%c0_10, %c0_11, %c0_12] : memref<1x1x8xf32, #tpu.memory_space<vmem>>, vector<1x1x8xf32>
    %19 = vector.shape_cast %18 : vector<1x1x8xf32> to vector<1x8xf32>
    %20 = vector.broadcast %19 : vector<1x8xf32> to vector<8x8xf32>
    %21 = arith.addf %17, %20 : vector<8x8xf32>
    %c0_13 = arith.constant 0 : index
    %c0_14 = arith.constant 0 : index
    %c0_15 = arith.constant 0 : index
    %22 = vector.load %arg5[%c0_13, %c0_14, %c0_15] : memref<1x1x12xf32, #tpu.memory_space<vmem>>, vector<1x1x12xf32>
    %23 = vector.shape_cast %22 : vector<1x1x12xf32> to vector<1x12xf32>
    %24 = vector.shape_cast %23 : vector<1x12xf32> to vector<1x12xf32>
    %25 = vector.broadcast %24 : vector<1x12xf32> to vector<8x12xf32>
    %26 = vector.extract_strided_slice %9 {offsets = [0, 0], sizes = [1, 32], strides = [1, 1]} : vector<16x32xf32> to vector<1x32xf32>
    %27 = vector.extract_strided_slice %9 {offsets = [1, 0], sizes = [1, 32], strides = [1, 1]} : vector<16x32xf32> to vector<1x32xf32>
    %28 = vector.extract_strided_slice %9 {offsets = [2, 0], sizes = [1, 32], strides = [1, 1]} : vector<16x32xf32> to vector<1x32xf32>
    %29 = vector.extract_strided_slice %9 {offsets = [3, 0], sizes = [1, 32], strides = [1, 1]} : vector<16x32xf32> to vector<1x32xf32>
    %c0_16 = arith.constant 0 : index
    %c0_17 = arith.constant 0 : index
    %30 = vector.load %arg6[%c0_16, %c0_17] : memref<32x32xbf16, #tpu.memory_space<vmem>>, vector<32x32xbf16>
    %cst_18 = arith.constant dense<0.000000e+00> : vector<8x32xf32>
    %31 = tpu.matmul %8, %30, %cst_18 {dimension_numbers = #tpu.dot_dimension_numbers<[1], [0], [0], [1], [0, 0, 1, 1], [], []>} : vector<8x32xbf16>, vector<32x32xbf16>, vector<8x32xf32> -> vector<8x32xf32>
    %32 = vector.broadcast %26 : vector<1x32xf32> to vector<8x32xf32>
    %33 = arith.addf %31, %32 : vector<8x32xf32>
    %c0_19 = arith.constant 0 : index
    %c0_20 = arith.constant 0 : index
    %34 = vector.load %arg7[%c0_19, %c0_20] : memref<32x64xbf16, #tpu.memory_space<vmem>>, vector<32x64xbf16>
    %cst_21 = arith.constant dense<0.000000e+00> : vector<8x64xf32>
    %35 = tpu.matmul %3, %34, %cst_21 {dimension_numbers = #tpu.dot_dimension_numbers<[1], [0], [0], [1], [0, 0, 1, 1], [], []>} : vector<8x32xbf16>, vector<32x64xbf16>, vector<8x64xf32> -> vector<8x64xf32>
    %36 = vector.extract_strided_slice %35 {offsets = [0, 0], sizes = [8, 32], strides = [1, 1]} : vector<8x64xf32> to vector<8x32xf32>
    %37 = vector.broadcast %27 : vector<1x32xf32> to vector<8x32xf32>
    %38 = arith.addf %36, %37 : vector<8x32xf32>
    %39 = vector.extract_strided_slice %35 {offsets = [0, 32], sizes = [8, 32], strides = [1, 1]} : vector<8x64xf32> to vector<8x32xf32>
    %40 = vector.broadcast %28 : vector<1x32xf32> to vector<8x32xf32>
    %41 = arith.addf %39, %40 : vector<8x32xf32>
    %42 = vector.extract_strided_slice %33 {offsets = [0, 0], sizes = [8, 8], strides = [1, 1]} : vector<8x32xf32> to vector<8x8xf32>
    %43 = arith.truncf %42 : vector<8x8xf32> to vector<8x8xbf16>
    %44 = vector.extract_strided_slice %38 {offsets = [0, 0], sizes = [8, 8], strides = [1, 1]} : vector<8x32xf32> to vector<8x8xf32>
    %45 = arith.truncf %44 : vector<8x8xf32> to vector<8x8xbf16>
    %46 = vector.extract_strided_slice %41 {offsets = [0, 0], sizes = [8, 8], strides = [1, 1]} : vector<8x32xf32> to vector<8x8xf32>
    %47 = arith.truncf %46 : vector<8x8xf32> to vector<8x8xbf16>
    %cst_22 = arith.constant dense<0.000000e+00> : vector<8x8xf32>
    %48 = tpu.matmul %43, %45, %cst_22 {dimension_numbers = #tpu.dot_dimension_numbers<[1], [1], [0], [0], [0, 0, 1, 0], [], []>} : vector<8x8xbf16>, vector<8x8xbf16>, vector<8x8xf32> -> vector<8x8xf32>
    %49 = arith.addf %48, %21 : vector<8x8xf32>
    %cst_23 = arith.constant dense<0xFF800000> : vector<8xf32>
    %50 = vector.multi_reduction <maximumf>, %49, %cst_23 [1] : vector<8x8xf32> to vector<8xf32>
    %51 = vector.shape_cast %50 : vector<8xf32> to vector<8x1xf32>
    %52 = vector.broadcast %51 : vector<8x1xf32> to vector<8x8xf32>
    %53 = arith.subf %49, %52 : vector<8x8xf32>
    %54 = math.exp %53 : vector<8x8xf32>
    %cst_24 = arith.constant dense<0.000000e+00> : vector<8xf32>
    %55 = vector.multi_reduction <add>, %54, %cst_24 [1] : vector<8x8xf32> to vector<8xf32>
    %56 = vector.shape_cast %55 : vector<8xf32> to vector<8x1xf32>
    %57 = tpu.reciprocal %56 {approx = true} : vector<8x1xf32> -> vector<8x1xf32>
    %58 = vector.broadcast %57 : vector<8x1xf32> to vector<8x8xf32>
    %59 = arith.mulf %54, %58 : vector<8x8xf32>
    %60 = arith.truncf %59 : vector<8x8xf32> to vector<8x8xbf16>
    %cst_25 = arith.constant dense<0.000000e+00> : vector<8x8xf32>
    %61 = tpu.matmul %60, %47, %cst_25 {dimension_numbers = #tpu.dot_dimension_numbers<[1], [0], [0], [1], [0, 0, 1, 1], [], []>} : vector<8x8xbf16>, vector<8x8xbf16>, vector<8x8xf32> -> vector<8x8xf32>
    %62 = vector.extract_strided_slice %33 {offsets = [0, 8], sizes = [8, 8], strides = [1, 1]} : vector<8x32xf32> to vector<8x8xf32>
    %63 = arith.truncf %62 : vector<8x8xf32> to vector<8x8xbf16>
    %64 = vector.extract_strided_slice %38 {offsets = [0, 8], sizes = [8, 8], strides = [1, 1]} : vector<8x32xf32> to vector<8x8xf32>
    %65 = arith.truncf %64 : vector<8x8xf32> to vector<8x8xbf16>
    %66 = vector.extract_strided_slice %41 {offsets = [0, 8], sizes = [8, 8], strides = [1, 1]} : vector<8x32xf32> to vector<8x8xf32>
    %67 = arith.truncf %66 : vector<8x8xf32> to vector<8x8xbf16>
    %cst_26 = arith.constant dense<0.000000e+00> : vector<8x8xf32>
    %68 = tpu.matmul %63, %65, %cst_26 {dimension_numbers = #tpu.dot_dimension_numbers<[1], [1], [0], [0], [0, 0, 1, 0], [], []>} : vector<8x8xbf16>, vector<8x8xbf16>, vector<8x8xf32> -> vector<8x8xf32>
    %69 = arith.addf %68, %21 : vector<8x8xf32>
    %cst_27 = arith.constant dense<0xFF800000> : vector<8xf32>
    %70 = vector.multi_reduction <maximumf>, %69, %cst_27 [1] : vector<8x8xf32> to vector<8xf32>
    %71 = vector.shape_cast %70 : vector<8xf32> to vector<8x1xf32>
    %72 = vector.broadcast %71 : vector<8x1xf32> to vector<8x8xf32>
    %73 = arith.subf %69, %72 : vector<8x8xf32>
    %74 = math.exp %73 : vector<8x8xf32>
    %cst_28 = arith.constant dense<0.000000e+00> : vector<8xf32>
    %75 = vector.multi_reduction <add>, %74, %cst_28 [1] : vector<8x8xf32> to vector<8xf32>
    %76 = vector.shape_cast %75 : vector<8xf32> to vector<8x1xf32>
    %77 = tpu.reciprocal %76 {approx = true} : vector<8x1xf32> -> vector<8x1xf32>
    %78 = vector.broadcast %77 : vector<8x1xf32> to vector<8x8xf32>
    %79 = arith.mulf %74, %78 : vector<8x8xf32>
    %80 = arith.truncf %79 : vector<8x8xf32> to vector<8x8xbf16>
    %cst_29 = arith.constant dense<0.000000e+00> : vector<8x8xf32>
    %81 = tpu.matmul %80, %67, %cst_29 {dimension_numbers = #tpu.dot_dimension_numbers<[1], [0], [0], [1], [0, 0, 1, 1], [], []>} : vector<8x8xbf16>, vector<8x8xbf16>, vector<8x8xf32> -> vector<8x8xf32>
    %82 = vector.extract_strided_slice %33 {offsets = [0, 16], sizes = [8, 8], strides = [1, 1]} : vector<8x32xf32> to vector<8x8xf32>
    %83 = arith.truncf %82 : vector<8x8xf32> to vector<8x8xbf16>
    %84 = vector.extract_strided_slice %38 {offsets = [0, 16], sizes = [8, 8], strides = [1, 1]} : vector<8x32xf32> to vector<8x8xf32>
    %85 = arith.truncf %84 : vector<8x8xf32> to vector<8x8xbf16>
    %86 = vector.extract_strided_slice %41 {offsets = [0, 16], sizes = [8, 8], strides = [1, 1]} : vector<8x32xf32> to vector<8x8xf32>
    %87 = arith.truncf %86 : vector<8x8xf32> to vector<8x8xbf16>
    %cst_30 = arith.constant dense<0.000000e+00> : vector<8x8xf32>
    %88 = tpu.matmul %83, %85, %cst_30 {dimension_numbers = #tpu.dot_dimension_numbers<[1], [1], [0], [0], [0, 0, 1, 0], [], []>} : vector<8x8xbf16>, vector<8x8xbf16>, vector<8x8xf32> -> vector<8x8xf32>
    %89 = arith.addf %88, %21 : vector<8x8xf32>
    %cst_31 = arith.constant dense<0xFF800000> : vector<8xf32>
    %90 = vector.multi_reduction <maximumf>, %89, %cst_31 [1] : vector<8x8xf32> to vector<8xf32>
    %91 = vector.shape_cast %90 : vector<8xf32> to vector<8x1xf32>
    %92 = vector.broadcast %91 : vector<8x1xf32> to vector<8x8xf32>
    %93 = arith.subf %89, %92 : vector<8x8xf32>
    %94 = math.exp %93 : vector<8x8xf32>
    %cst_32 = arith.constant dense<0.000000e+00> : vector<8xf32>
    %95 = vector.multi_reduction <add>, %94, %cst_32 [1] : vector<8x8xf32> to vector<8xf32>
    %96 = vector.shape_cast %95 : vector<8xf32> to vector<8x1xf32>
    %97 = tpu.reciprocal %96 {approx = true} : vector<8x1xf32> -> vector<8x1xf32>
    %98 = vector.broadcast %97 : vector<8x1xf32> to vector<8x8xf32>
    %99 = arith.mulf %94, %98 : vector<8x8xf32>
    %100 = arith.truncf %99 : vector<8x8xf32> to vector<8x8xbf16>
    %cst_33 = arith.constant dense<0.000000e+00> : vector<8x8xf32>
    %101 = tpu.matmul %100, %87, %cst_33 {dimension_numbers = #tpu.dot_dimension_numbers<[1], [0], [0], [1], [0, 0, 1, 1], [], []>} : vector<8x8xbf16>, vector<8x8xbf16>, vector<8x8xf32> -> vector<8x8xf32>
    %102 = vector.extract_strided_slice %33 {offsets = [0, 24], sizes = [8, 8], strides = [1, 1]} : vector<8x32xf32> to vector<8x8xf32>
    %103 = arith.truncf %102 : vector<8x8xf32> to vector<8x8xbf16>
    %104 = vector.extract_strided_slice %38 {offsets = [0, 24], sizes = [8, 8], strides = [1, 1]} : vector<8x32xf32> to vector<8x8xf32>
    %105 = arith.truncf %104 : vector<8x8xf32> to vector<8x8xbf16>
    %106 = vector.extract_strided_slice %41 {offsets = [0, 24], sizes = [8, 8], strides = [1, 1]} : vector<8x32xf32> to vector<8x8xf32>
    %107 = arith.truncf %106 : vector<8x8xf32> to vector<8x8xbf16>
    %cst_34 = arith.constant dense<0.000000e+00> : vector<8x8xf32>
    %108 = tpu.matmul %103, %105, %cst_34 {dimension_numbers = #tpu.dot_dimension_numbers<[1], [1], [0], [0], [0, 0, 1, 0], [], []>} : vector<8x8xbf16>, vector<8x8xbf16>, vector<8x8xf32> -> vector<8x8xf32>
    %109 = arith.addf %108, %21 : vector<8x8xf32>
    %cst_35 = arith.constant dense<0xFF800000> : vector<8xf32>
    %110 = vector.multi_reduction <maximumf>, %109, %cst_35 [1] : vector<8x8xf32> to vector<8xf32>
    %111 = vector.shape_cast %110 : vector<8xf32> to vector<8x1xf32>
    %112 = vector.broadcast %111 : vector<8x1xf32> to vector<8x8xf32>
    %113 = arith.subf %109, %112 : vector<8x8xf32>
    %114 = math.exp %113 : vector<8x8xf32>
    %cst_36 = arith.constant dense<0.000000e+00> : vector<8xf32>
    %115 = vector.multi_reduction <add>, %114, %cst_36 [1] : vector<8x8xf32> to vector<8xf32>
    %116 = vector.shape_cast %115 : vector<8xf32> to vector<8x1xf32>
    %117 = tpu.reciprocal %116 {approx = true} : vector<8x1xf32> -> vector<8x1xf32>
    %118 = vector.broadcast %117 : vector<8x1xf32> to vector<8x8xf32>
    %119 = arith.mulf %114, %118 : vector<8x8xf32>
    %120 = arith.truncf %119 : vector<8x8xf32> to vector<8x8xbf16>
    %cst_37 = arith.constant dense<0.000000e+00> : vector<8x8xf32>
    %121 = tpu.matmul %120, %107, %cst_37 {dimension_numbers = #tpu.dot_dimension_numbers<[1], [0], [0], [1], [0, 0, 1, 1], [], []>} : vector<8x8xbf16>, vector<8x8xbf16>, vector<8x8xf32> -> vector<8x8xf32>
    %122 = tpu.concatenate %61, %81, %101, %121 in 1 : vector<8x8xf32>, vector<8x8xf32>, vector<8x8xf32>, vector<8x8xf32> -> vector<8x32xf32>
    %123 = arith.truncf %122 : vector<8x32xf32> to vector<8x32xbf16>
    %c0_38 = arith.constant 0 : index
    %c0_39 = arith.constant 0 : index
    %124 = vector.load %arg8[%c0_38, %c0_39] : memref<32x32xbf16, #tpu.memory_space<vmem>>, vector<32x32xbf16>
    %cst_40 = arith.constant dense<0.000000e+00> : vector<8x32xf32>
    %125 = tpu.matmul %123, %124, %cst_40 {dimension_numbers = #tpu.dot_dimension_numbers<[1], [0], [0], [1], [0, 0, 1, 1], [], []>} : vector<8x32xbf16>, vector<32x32xbf16>, vector<8x32xf32> -> vector<8x32xf32>
    %126 = vector.broadcast %29 : vector<1x32xf32> to vector<8x32xf32>
    %127 = arith.addf %125, %126 : vector<8x32xf32>
    %128 = arith.extf %8 : vector<8x32xbf16> to vector<8x32xf32>
    %129 = arith.addf %128, %127 : vector<8x32xf32>
    %130 = vector.extract_strided_slice %9 {offsets = [4, 0], sizes = [1, 32], strides = [1, 1]} : vector<16x32xf32> to vector<1x32xf32>
    %131 = vector.extract_strided_slice %9 {offsets = [5, 0], sizes = [1, 32], strides = [1, 1]} : vector<16x32xf32> to vector<1x32xf32>
    %cst_41 = arith.constant dense<0.000000e+00> : vector<8xf32>
    %132 = vector.multi_reduction <add>, %129, %cst_41 [1] : vector<8x32xf32> to vector<8xf32>
    %133 = vector.shape_cast %132 : vector<8xf32> to vector<8x1xf32>
    %cst_42 = arith.constant 3.200000e+01 : f32
    %134 = vector.broadcast %cst_42 : f32 to vector<8x1xf32>
    %135 = arith.divf %133, %134 : vector<8x1xf32>
    %136 = vector.broadcast %135 : vector<8x1xf32> to vector<8x32xf32>
    %137 = arith.subf %129, %136 : vector<8x32xf32>
    %138 = arith.mulf %137, %137 : vector<8x32xf32>
    %cst_43 = arith.constant dense<0.000000e+00> : vector<8xf32>
    %139 = vector.multi_reduction <add>, %138, %cst_43 [1] : vector<8x32xf32> to vector<8xf32>
    %140 = vector.shape_cast %139 : vector<8xf32> to vector<8x1xf32>
    %cst_44 = arith.constant 3.200000e+01 : f32
    %141 = vector.broadcast %cst_44 : f32 to vector<8x1xf32>
    %142 = arith.divf %140, %141 : vector<8x1xf32>
    %143 = vector.broadcast %135 : vector<8x1xf32> to vector<8x32xf32>
    %144 = arith.subf %129, %143 : vector<8x32xf32>
    %cst_45 = arith.constant 9.99999974E-6 : f32
    %145 = vector.broadcast %cst_45 : f32 to vector<8x1xf32>
    %146 = arith.addf %142, %145 : vector<8x1xf32>
    %147 = math.rsqrt %146 : vector<8x1xf32>
    %148 = vector.broadcast %147 : vector<8x1xf32> to vector<8x32xf32>
    %149 = arith.mulf %144, %148 : vector<8x32xf32>
    %150 = vector.broadcast %130 : vector<1x32xf32> to vector<8x32xf32>
    %151 = arith.mulf %149, %150 : vector<8x32xf32>
    %152 = vector.broadcast %131 : vector<1x32xf32> to vector<8x32xf32>
    %153 = arith.addf %151, %152 : vector<8x32xf32>
    %154 = arith.truncf %153 : vector<8x32xf32> to vector<8x32xbf16>
    %155 = vector.extract_strided_slice %9 {offsets = [6, 0], sizes = [1, 32], strides = [1, 1]} : vector<16x32xf32> to vector<1x32xf32>
    %156 = vector.extract_strided_slice %9 {offsets = [7, 0], sizes = [1, 32], strides = [1, 1]} : vector<16x32xf32> to vector<1x32xf32>
    %157 = vector.extract_strided_slice %9 {offsets = [8, 0], sizes = [1, 32], strides = [1, 1]} : vector<16x32xf32> to vector<1x32xf32>
    %158 = vector.extract_strided_slice %9 {offsets = [9, 0], sizes = [1, 32], strides = [1, 1]} : vector<16x32xf32> to vector<1x32xf32>
    %c0_46 = arith.constant 0 : index
    %c0_47 = arith.constant 0 : index
    %159 = vector.load %arg9[%c0_46, %c0_47] : memref<32x32xbf16, #tpu.memory_space<vmem>>, vector<32x32xbf16>
    %cst_48 = arith.constant dense<0.000000e+00> : vector<8x32xf32>
    %160 = tpu.matmul %154, %159, %cst_48 {dimension_numbers = #tpu.dot_dimension_numbers<[1], [0], [0], [1], [0, 0, 1, 1], [], []>} : vector<8x32xbf16>, vector<32x32xbf16>, vector<8x32xf32> -> vector<8x32xf32>
    %161 = vector.broadcast %155 : vector<1x32xf32> to vector<8x32xf32>
    %162 = arith.addf %160, %161 : vector<8x32xf32>
    %c0_49 = arith.constant 0 : index
    %c0_50 = arith.constant 0 : index
    %163 = vector.load %arg10[%c0_49, %c0_50] : memref<32x64xbf16, #tpu.memory_space<vmem>>, vector<32x64xbf16>
    %cst_51 = arith.constant dense<0.000000e+00> : vector<12x64xf32>
    %164 = tpu.matmul %5, %163, %cst_51 {dimension_numbers = #tpu.dot_dimension_numbers<[1], [0], [0], [1], [0, 0, 1, 1], [], []>} : vector<12x32xbf16>, vector<32x64xbf16>, vector<12x64xf32> -> vector<12x64xf32>
    %165 = vector.extract_strided_slice %164 {offsets = [0, 0], sizes = [12, 32], strides = [1, 1]} : vector<12x64xf32> to vector<12x32xf32>
    %166 = vector.broadcast %156 : vector<1x32xf32> to vector<12x32xf32>
    %167 = arith.addf %165, %166 : vector<12x32xf32>
    %168 = vector.extract_strided_slice %164 {offsets = [0, 32], sizes = [12, 32], strides = [1, 1]} : vector<12x64xf32> to vector<12x32xf32>
    %169 = vector.broadcast %157 : vector<1x32xf32> to vector<12x32xf32>
    %170 = arith.addf %168, %169 : vector<12x32xf32>
    %171 = vector.extract_strided_slice %162 {offsets = [0, 0], sizes = [8, 8], strides = [1, 1]} : vector<8x32xf32> to vector<8x8xf32>
    %172 = arith.truncf %171 : vector<8x8xf32> to vector<8x8xbf16>
    %173 = vector.extract_strided_slice %167 {offsets = [0, 0], sizes = [12, 8], strides = [1, 1]} : vector<12x32xf32> to vector<12x8xf32>
    %174 = arith.truncf %173 : vector<12x8xf32> to vector<12x8xbf16>
    %175 = vector.extract_strided_slice %170 {offsets = [0, 0], sizes = [12, 8], strides = [1, 1]} : vector<12x32xf32> to vector<12x8xf32>
    %176 = arith.truncf %175 : vector<12x8xf32> to vector<12x8xbf16>
    %cst_52 = arith.constant dense<0.000000e+00> : vector<8x12xf32>
    %177 = tpu.matmul %172, %174, %cst_52 {dimension_numbers = #tpu.dot_dimension_numbers<[1], [1], [0], [0], [0, 0, 1, 0], [], []>} : vector<8x8xbf16>, vector<12x8xbf16>, vector<8x12xf32> -> vector<8x12xf32>
    %178 = arith.addf %177, %25 : vector<8x12xf32>
    %cst_53 = arith.constant dense<0xFF800000> : vector<8xf32>
    %179 = vector.multi_reduction <maximumf>, %178, %cst_53 [1] : vector<8x12xf32> to vector<8xf32>
    %180 = vector.shape_cast %179 : vector<8xf32> to vector<8x1xf32>
    %181 = vector.broadcast %180 : vector<8x1xf32> to vector<8x12xf32>
    %182 = arith.subf %178, %181 : vector<8x12xf32>
    %183 = math.exp %182 : vector<8x12xf32>
    %cst_54 = arith.constant dense<0.000000e+00> : vector<8xf32>
    %184 = vector.multi_reduction <add>, %183, %cst_54 [1] : vector<8x12xf32> to vector<8xf32>
    %185 = vector.shape_cast %184 : vector<8xf32> to vector<8x1xf32>
    %186 = vector.broadcast %185 : vector<8x1xf32> to vector<8x12xf32>
    %187 = arith.divf %183, %186 : vector<8x12xf32>
    %c0_55 = arith.constant 0 : index
    %c0_56 = arith.constant 0 : index
    %c0_57 = arith.constant 0 : index
    %c0_58 = arith.constant 0 : index
    %188 = vector.load %arg17[%c0_55, %c0_56, %c0_57, %c0_58] : memref<1x4x8x12xf32, #tpu.memory_space<vmem>>, vector<1x1x8x12xf32>
    %189 = vector.shape_cast %188 : vector<1x1x8x12xf32> to vector<8x12xf32>
    %190 = vector.shape_cast %187 : vector<8x12xf32> to vector<1x1x8x12xf32>
    tpu.vector_store %arg17[%c0_55, %c0_56, %c0_57, %c0_58], %190 {strides = array<i32>} : memref<1x4x8x12xf32, #tpu.memory_space<vmem>>, vector<1x1x8x12xf32>,
    %191 = arith.truncf %187 : vector<8x12xf32> to vector<8x12xbf16>
    %cst_59 = arith.constant dense<0.000000e+00> : vector<8x8xf32>
    %192 = tpu.matmul %191, %176, %cst_59 {dimension_numbers = #tpu.dot_dimension_numbers<[1], [0], [0], [1], [0, 0, 1, 1], [], []>} : vector<8x12xbf16>, vector<12x8xbf16>, vector<8x8xf32> -> vector<8x8xf32>
    %193 = vector.extract_strided_slice %162 {offsets = [0, 8], sizes = [8, 8], strides = [1, 1]} : vector<8x32xf32> to vector<8x8xf32>
    %194 = arith.truncf %193 : vector<8x8xf32> to vector<8x8xbf16>
    %195 = vector.extract_strided_slice %167 {offsets = [0, 8], sizes = [12, 8], strides = [1, 1]} : vector<12x32xf32> to vector<12x8xf32>
    %196 = arith.truncf %195 : vector<12x8xf32> to vector<12x8xbf16>
    %197 = vector.extract_strided_slice %170 {offsets = [0, 8], sizes = [12, 8], strides = [1, 1]} : vector<12x32xf32> to vector<12x8xf32>
    %198 = arith.truncf %197 : vector<12x8xf32> to vector<12x8xbf16>
    %cst_60 = arith.constant dense<0.000000e+00> : vector<8x12xf32>
    %199 = tpu.matmul %194, %196, %cst_60 {dimension_numbers = #tpu.dot_dimension_numbers<[1], [1], [0], [0], [0, 0, 1, 0], [], []>} : vector<8x8xbf16>, vector<12x8xbf16>, vector<8x12xf32> -> vector<8x12xf32>
    %200 = arith.addf %199, %25 : vector<8x12xf32>
    %cst_61 = arith.constant dense<0xFF800000> : vector<8xf32>
    %201 = vector.multi_reduction <maximumf>, %200, %cst_61 [1] : vector<8x12xf32> to vector<8xf32>
    %202 = vector.shape_cast %201 : vector<8xf32> to vector<8x1xf32>
    %203 = vector.broadcast %202 : vector<8x1xf32> to vector<8x12xf32>
    %204 = arith.subf %200, %203 : vector<8x12xf32>
    %205 = math.exp %204 : vector<8x12xf32>
    %cst_62 = arith.constant dense<0.000000e+00> : vector<8xf32>
    %206 = vector.multi_reduction <add>, %205, %cst_62 [1] : vector<8x12xf32> to vector<8xf32>
    %207 = vector.shape_cast %206 : vector<8xf32> to vector<8x1xf32>
    %208 = vector.broadcast %207 : vector<8x1xf32> to vector<8x12xf32>
    %209 = arith.divf %205, %208 : vector<8x12xf32>
    %c0_63 = arith.constant 0 : index
    %c1 = arith.constant 1 : index
    %c0_64 = arith.constant 0 : index
    %c0_65 = arith.constant 0 : index
    %210 = vector.load %arg17[%c0_63, %c1, %c0_64, %c0_65] : memref<1x4x8x12xf32, #tpu.memory_space<vmem>>, vector<1x1x8x12xf32>
    %211 = vector.shape_cast %210 : vector<1x1x8x12xf32> to vector<8x12xf32>
    %212 = vector.shape_cast %209 : vector<8x12xf32> to vector<1x1x8x12xf32>
    tpu.vector_store %arg17[%c0_63, %c1, %c0_64, %c0_65], %212 {strides = array<i32>} : memref<1x4x8x12xf32, #tpu.memory_space<vmem>>, vector<1x1x8x12xf32>,
    %213 = arith.truncf %209 : vector<8x12xf32> to vector<8x12xbf16>
    %cst_66 = arith.constant dense<0.000000e+00> : vector<8x8xf32>
    %214 = tpu.matmul %213, %198, %cst_66 {dimension_numbers = #tpu.dot_dimension_numbers<[1], [0], [0], [1], [0, 0, 1, 1], [], []>} : vector<8x12xbf16>, vector<12x8xbf16>, vector<8x8xf32> -> vector<8x8xf32>
    %215 = vector.extract_strided_slice %162 {offsets = [0, 16], sizes = [8, 8], strides = [1, 1]} : vector<8x32xf32> to vector<8x8xf32>
    %216 = arith.truncf %215 : vector<8x8xf32> to vector<8x8xbf16>
    %217 = vector.extract_strided_slice %167 {offsets = [0, 16], sizes = [12, 8], strides = [1, 1]} : vector<12x32xf32> to vector<12x8xf32>
    %218 = arith.truncf %217 : vector<12x8xf32> to vector<12x8xbf16>
    %219 = vector.extract_strided_slice %170 {offsets = [0, 16], sizes = [12, 8], strides = [1, 1]} : vector<12x32xf32> to vector<12x8xf32>
    %220 = arith.truncf %219 : vector<12x8xf32> to vector<12x8xbf16>
    %cst_67 = arith.constant dense<0.000000e+00> : vector<8x12xf32>
    %221 = tpu.matmul %216, %218, %cst_67 {dimension_numbers = #tpu.dot_dimension_numbers<[1], [1], [0], [0], [0, 0, 1, 0], [], []>} : vector<8x8xbf16>, vector<12x8xbf16>, vector<8x12xf32> -> vector<8x12xf32>
    %222 = arith.addf %221, %25 : vector<8x12xf32>
    %cst_68 = arith.constant dense<0xFF800000> : vector<8xf32>
    %223 = vector.multi_reduction <maximumf>, %222, %cst_68 [1] : vector<8x12xf32> to vector<8xf32>
    %224 = vector.shape_cast %223 : vector<8xf32> to vector<8x1xf32>
    %225 = vector.broadcast %224 : vector<8x1xf32> to vector<8x12xf32>
    %226 = arith.subf %222, %225 : vector<8x12xf32>
    %227 = math.exp %226 : vector<8x12xf32>
    %cst_69 = arith.constant dense<0.000000e+00> : vector<8xf32>
    %228 = vector.multi_reduction <add>, %227, %cst_69 [1] : vector<8x12xf32> to vector<8xf32>
    %229 = vector.shape_cast %228 : vector<8xf32> to vector<8x1xf32>
    %230 = vector.broadcast %229 : vector<8x1xf32> to vector<8x12xf32>
    %231 = arith.divf %227, %230 : vector<8x12xf32>
    %c0_70 = arith.constant 0 : index
    %c2 = arith.constant 2 : index
    %c0_71 = arith.constant 0 : index
    %c0_72 = arith.constant 0 : index
    %232 = vector.load %arg17[%c0_70, %c2, %c0_71, %c0_72] : memref<1x4x8x12xf32, #tpu.memory_space<vmem>>, vector<1x1x8x12xf32>
    %233 = vector.shape_cast %232 : vector<1x1x8x12xf32> to vector<8x12xf32>
    %234 = vector.shape_cast %231 : vector<8x12xf32> to vector<1x1x8x12xf32>
    tpu.vector_store %arg17[%c0_70, %c2, %c0_71, %c0_72], %234 {strides = array<i32>} : memref<1x4x8x12xf32, #tpu.memory_space<vmem>>, vector<1x1x8x12xf32>,
    %235 = arith.truncf %231 : vector<8x12xf32> to vector<8x12xbf16>
    %cst_73 = arith.constant dense<0.000000e+00> : vector<8x8xf32>
    %236 = tpu.matmul %235, %220, %cst_73 {dimension_numbers = #tpu.dot_dimension_numbers<[1], [0], [0], [1], [0, 0, 1, 1], [], []>} : vector<8x12xbf16>, vector<12x8xbf16>, vector<8x8xf32> -> vector<8x8xf32>
    %237 = vector.extract_strided_slice %162 {offsets = [0, 24], sizes = [8, 8], strides = [1, 1]} : vector<8x32xf32> to vector<8x8xf32>
    %238 = arith.truncf %237 : vector<8x8xf32> to vector<8x8xbf16>
    %239 = vector.extract_strided_slice %167 {offsets = [0, 24], sizes = [12, 8], strides = [1, 1]} : vector<12x32xf32> to vector<12x8xf32>
    %240 = arith.truncf %239 : vector<12x8xf32> to vector<12x8xbf16>
    %241 = vector.extract_strided_slice %170 {offsets = [0, 24], sizes = [12, 8], strides = [1, 1]} : vector<12x32xf32> to vector<12x8xf32>
    %242 = arith.truncf %241 : vector<12x8xf32> to vector<12x8xbf16>
    %cst_74 = arith.constant dense<0.000000e+00> : vector<8x12xf32>
    %243 = tpu.matmul %238, %240, %cst_74 {dimension_numbers = #tpu.dot_dimension_numbers<[1], [1], [0], [0], [0, 0, 1, 0], [], []>} : vector<8x8xbf16>, vector<12x8xbf16>, vector<8x12xf32> -> vector<8x12xf32>
    %244 = arith.addf %243, %25 : vector<8x12xf32>
    %cst_75 = arith.constant dense<0xFF800000> : vector<8xf32>
    %245 = vector.multi_reduction <maximumf>, %244, %cst_75 [1] : vector<8x12xf32> to vector<8xf32>
    %246 = vector.shape_cast %245 : vector<8xf32> to vector<8x1xf32>
    %247 = vector.broadcast %246 : vector<8x1xf32> to vector<8x12xf32>
    %248 = arith.subf %244, %247 : vector<8x12xf32>
    %249 = math.exp %248 : vector<8x12xf32>
    %cst_76 = arith.constant dense<0.000000e+00> : vector<8xf32>
    %250 = vector.multi_reduction <add>, %249, %cst_76 [1] : vector<8x12xf32> to vector<8xf32>
    %251 = vector.shape_cast %250 : vector<8xf32> to vector<8x1xf32>
    %252 = vector.broadcast %251 : vector<8x1xf32> to vector<8x12xf32>
    %253 = arith.divf %249, %252 : vector<8x12xf32>
    %c0_77 = arith.constant 0 : index
    %c3 = arith.constant 3 : index
    %c0_78 = arith.constant 0 : index
    %c0_79 = arith.constant 0 : index
    %254 = vector.load %arg17[%c0_77, %c3, %c0_78, %c0_79] : memref<1x4x8x12xf32, #tpu.memory_space<vmem>>, vector<1x1x8x12xf32>
    %255 = vector.shape_cast %254 : vector<1x1x8x12xf32> to vector<8x12xf32>
    %256 = vector.shape_cast %253 : vector<8x12xf32> to vector<1x1x8x12xf32>
    tpu.vector_store %arg17[%c0_77, %c3, %c0_78, %c0_79], %256 {strides = array<i32>} : memref<1x4x8x12xf32, #tpu.memory_space<vmem>>, vector<1x1x8x12xf32>,
    %257 = arith.truncf %253 : vector<8x12xf32> to vector<8x12xbf16>
    %cst_80 = arith.constant dense<0.000000e+00> : vector<8x8xf32>
    %258 = tpu.matmul %257, %242, %cst_80 {dimension_numbers = #tpu.dot_dimension_numbers<[1], [0], [0], [1], [0, 0, 1, 1], [], []>} : vector<8x12xbf16>, vector<12x8xbf16>, vector<8x8xf32> -> vector<8x8xf32>
    %259 = tpu.concatenate %192, %214, %236, %258 in 1 : vector<8x8xf32>, vector<8x8xf32>, vector<8x8xf32>, vector<8x8xf32> -> vector<8x32xf32>
    %260 = arith.truncf %259 : vector<8x32xf32> to vector<8x32xbf16>
    %c0_81 = arith.constant 0 : index
    %c0_82 = arith.constant 0 : index
    %261 = vector.load %arg11[%c0_81, %c0_82] : memref<32x32xbf16, #tpu.memory_space<vmem>>, vector<32x32xbf16>
    %cst_83 = arith.constant dense<0.000000e+00> : vector<8x32xf32>
    %262 = tpu.matmul %260, %261, %cst_83 {dimension_numbers = #tpu.dot_dimension_numbers<[1], [0], [0], [1], [0, 0, 1, 1], [], []>} : vector<8x32xbf16>, vector<32x32xbf16>, vector<8x32xf32> -> vector<8x32xf32>
    %263 = vector.broadcast %158 : vector<1x32xf32> to vector<8x32xf32>
    %264 = arith.addf %262, %263 : vector<8x32xf32>
    %265 = arith.addf %153, %264 : vector<8x32xf32>
    %266 = vector.extract_strided_slice %9 {offsets = [10, 0], sizes = [1, 32], strides = [1, 1]} : vector<16x32xf32> to vector<1x32xf32>
    %267 = vector.extract_strided_slice %9 {offsets = [11, 0], sizes = [1, 32], strides = [1, 1]} : vector<16x32xf32> to vector<1x32xf32>
    %cst_84 = arith.constant dense<0.000000e+00> : vector<8xf32>
    %268 = vector.multi_reduction <add>, %265, %cst_84 [1] : vector<8x32xf32> to vector<8xf32>
    %269 = vector.shape_cast %268 : vector<8xf32> to vector<8x1xf32>
    %cst_85 = arith.constant 3.200000e+01 : f32
    %270 = vector.broadcast %cst_85 : f32 to vector<8x1xf32>
    %271 = arith.divf %269, %270 : vector<8x1xf32>
    %272 = vector.broadcast %271 : vector<8x1xf32> to vector<8x32xf32>
    %273 = arith.subf %265, %272 : vector<8x32xf32>
    %274 = arith.mulf %273, %273 : vector<8x32xf32>
    %cst_86 = arith.constant dense<0.000000e+00> : vector<8xf32>
    %275 = vector.multi_reduction <add>, %274, %cst_86 [1] : vector<8x32xf32> to vector<8xf32>
    %276 = vector.shape_cast %275 : vector<8xf32> to vector<8x1xf32>
    %cst_87 = arith.constant 3.200000e+01 : f32
    %277 = vector.broadcast %cst_87 : f32 to vector<8x1xf32>
    %278 = arith.divf %276, %277 : vector<8x1xf32>
    %279 = vector.broadcast %271 : vector<8x1xf32> to vector<8x32xf32>
    %280 = arith.subf %265, %279 : vector<8x32xf32>
    %cst_88 = arith.constant 9.99999974E-6 : f32
    %281 = vector.broadcast %cst_88 : f32 to vector<8x1xf32>
    %282 = arith.addf %278, %281 : vector<8x1xf32>
    %283 = math.rsqrt %282 : vector<8x1xf32>
    %284 = vector.broadcast %283 : vector<8x1xf32> to vector<8x32xf32>
    %285 = arith.mulf %280, %284 : vector<8x32xf32>
    %286 = vector.broadcast %266 : vector<1x32xf32> to vector<8x32xf32>
    %287 = arith.mulf %285, %286 : vector<8x32xf32>
    %288 = vector.broadcast %267 : vector<1x32xf32> to vector<8x32xf32>
    %289 = arith.addf %287, %288 : vector<8x32xf32>
    %290 = arith.truncf %289 : vector<8x32xf32> to vector<8x32xbf16>
    %c0_89 = arith.constant 0 : index
    %c0_90 = arith.constant 0 : index
    %291 = vector.load %arg12[%c0_89, %c0_90] : memref<32x64xbf16, #tpu.memory_space<vmem>>, vector<32x64xbf16>
    %cst_91 = arith.constant dense<0.000000e+00> : vector<8x64xf32>
    %292 = tpu.matmul %290, %291, %cst_91 {dimension_numbers = #tpu.dot_dimension_numbers<[1], [0], [0], [1], [0, 0, 1, 1], [], []>} : vector<8x32xbf16>, vector<32x64xbf16>, vector<8x64xf32> -> vector<8x64xf32>
    %c0_92 = arith.constant 0 : index
    %c0_93 = arith.constant 0 : index
    %293 = vector.load %arg15[%c0_92, %c0_93] : memref<1x64xf32, #tpu.memory_space<vmem>>, vector<1x64xf32>
    %294 = vector.broadcast %293 : vector<1x64xf32> to vector<8x64xf32>
    %295 = arith.addf %292, %294 : vector<8x64xf32>
    %cst_94 = arith.constant 0.000000e+00 : f32
    %296 = vector.broadcast %cst_94 : f32 to vector<8x64xf32>
    %297 = arith.maximumf %295, %296 : vector<8x64xf32>
    %298 = arith.truncf %297 : vector<8x64xf32> to vector<8x64xbf16>
    %c0_95 = arith.constant 0 : index
    %c0_96 = arith.constant 0 : index
    %299 = vector.load %arg13[%c0_95, %c0_96] : memref<64x32xbf16, #tpu.memory_space<vmem>>, vector<64x32xbf16>
    %cst_97 = arith.constant dense<0.000000e+00> : vector<8x32xf32>
    %300 = tpu.matmul %298, %299, %cst_97 {dimension_numbers = #tpu.dot_dimension_numbers<[1], [0], [0], [1], [0, 0, 1, 1], [], []>} : vector<8x64xbf16>, vector<64x32xbf16>, vector<8x32xf32> -> vector<8x32xf32>
    %301 = vector.extract_strided_slice %9 {offsets = [12, 0], sizes = [1, 32], strides = [1, 1]} : vector<16x32xf32> to vector<1x32xf32>
    %302 = vector.broadcast %301 : vector<1x32xf32> to vector<8x32xf32>
    %303 = arith.addf %300, %302 : vector<8x32xf32>
    %304 = arith.addf %289, %303 : vector<8x32xf32>
    %305 = vector.extract_strided_slice %9 {offsets = [13, 0], sizes = [1, 32], strides = [1, 1]} : vector<16x32xf32> to vector<1x32xf32>
    %306 = vector.extract_strided_slice %9 {offsets = [14, 0], sizes = [1, 32], strides = [1, 1]} : vector<16x32xf32> to vector<1x32xf32>
    %cst_98 = arith.constant dense<0.000000e+00> : vector<8xf32>
    %307 = vector.multi_reduction <add>, %304, %cst_98 [1] : vector<8x32xf32> to vector<8xf32>
    %308 = vector.shape_cast %307 : vector<8xf32> to vector<8x1xf32>
    %cst_99 = arith.constant 3.200000e+01 : f32
    %309 = vector.broadcast %cst_99 : f32 to vector<8x1xf32>
    %310 = arith.divf %308, %309 : vector<8x1xf32>
    %311 = vector.broadcast %310 : vector<8x1xf32> to vector<8x32xf32>
    %312 = arith.subf %304, %311 : vector<8x32xf32>
    %313 = arith.mulf %312, %312 : vector<8x32xf32>
    %cst_100 = arith.constant dense<0.000000e+00> : vector<8xf32>
    %314 = vector.multi_reduction <add>, %313, %cst_100 [1] : vector<8x32xf32> to vector<8xf32>
    %315 = vector.shape_cast %314 : vector<8xf32> to vector<8x1xf32>
    %cst_101 = arith.constant 3.200000e+01 : f32
    %316 = vector.broadcast %cst_101 : f32 to vector<8x1xf32>
    %317 = arith.divf %315, %316 : vector<8x1xf32>
    %318 = vector.broadcast %310 : vector<8x1xf32> to vector<8x32xf32>
    %319 = arith.subf %304, %318 : vector<8x32xf32>
    %cst_102 = arith.constant 9.99999974E-6 : f32
    %320 = vector.broadcast %cst_102 : f32 to vector<8x1xf32>
    %321 = arith.addf %317, %320 : vector<8x1xf32>
    %322 = math.rsqrt %321 : vector<8x1xf32>
    %323 = vector.broadcast %322 : vector<8x1xf32> to vector<8x32xf32>
    %324 = arith.mulf %319, %323 : vector<8x32xf32>
    %325 = vector.broadcast %305 : vector<1x32xf32> to vector<8x32xf32>
    %326 = arith.mulf %324, %325 : vector<8x32xf32>
    %327 = vector.broadcast %306 : vector<1x32xf32> to vector<8x32xf32>
    %328 = arith.addf %326, %327 : vector<8x32xf32>
    %c0_103 = arith.constant 0 : index
    %c0_104 = arith.constant 0 : index
    %c0_105 = arith.constant 0 : index
    %329 = vector.load %arg16[%c0_103, %c0_104, %c0_105] : memref<1x8x32xf32, #tpu.memory_space<vmem>>, vector<1x8x32xf32>
    %330 = vector.shape_cast %329 : vector<1x8x32xf32> to vector<8x32xf32>
    %331 = vector.shape_cast %328 : vector<8x32xf32> to vector<1x8x32xf32>
    tpu.vector_store %arg16[%c0_103, %c0_104, %c0_105], %331 {strides = array<i32>} : memref<1x8x32xf32, #tpu.memory_space<vmem>>, vector<1x8x32xf32>,
    return
  }
  func.func @transform_0(%arg0: i32, %arg1: i32) -> (i32, i32, i32) {
    %c0_i32 = arith.constant 0 : i32
    %c0_i32_0 = arith.constant 0 : i32
    %c0_i32_1 = arith.constant 0 : i32
    return %arg0, %c0_i32, %c0_i32_0 : i32, i32, i32
  }
  func.func @transform_1(%arg0: i32, %arg1: i32) -> (i32, i32, i32) {
    %c0_i32 = arith.constant 0 : i32
    %c0_i32_0 = arith.constant 0 : i32
    %c0_i32_1 = arith.constant 0 : i32
    return %arg0, %c0_i32, %c0_i32_0 : i32, i32, i32
  }
  func.func @transform_2(%arg0: i32, %arg1: i32) -> (i32, i32, i32) {
    %c0_i32 = arith.constant 0 : i32
    %c0_i32_0 = arith.constant 0 : i32
    %c0_i32_1 = arith.constant 0 : i32
    return %arg0, %c0_i32, %c0_i32_0 : i32, i32, i32
  }
  func.func @transform_3(%arg0: i32, %arg1: i32) -> (i32, i32, i32) {
    %c0_i32 = arith.constant 0 : i32
    %c0_i32_0 = arith.constant 0 : i32
    %c0_i32_1 = arith.constant 0 : i32
    return %arg0, %c0_i32, %c0_i32_0 : i32, i32, i32
  }
  func.func @transform_4(%arg0: i32, %arg1: i32) -> (i32, i32) {
    %c0_i32 = arith.constant 0 : i32
    %c0_i32_0 = arith.constant 0 : i32
    %c0_i32_1 = arith.constant 0 : i32
    return %c0_i32, %c0_i32_0 : i32, i32
  }
  func.func @transform_5(%arg0: i32, %arg1: i32) -> (i32, i32) {
    %c0_i32 = arith.constant 0 : i32
    %c0_i32_0 = arith.constant 0 : i32
    %c0_i32_1 = arith.constant 0 : i32
    return %c0_i32, %c0_i32_0 : i32, i32
  }
  func.func @transform_6(%arg0: i32, %arg1: i32) -> (i32, i32) {
    %c0_i32 = arith.constant 0 : i32
    %c0_i32_0 = arith.constant 0 : i32
    %c0_i32_1 = arith.constant 0 : i32
    return %c0_i32, %c0_i32_0 : i32, i32
  }
  func.func @transform_7(%arg0: i32, %arg1: i32) -> (i32, i32) {
    %c0_i32 = arith.constant 0 : i32
    %c0_i32_0 = arith.constant 0 : i32
    %c0_i32_1 = arith.constant 0 : i32
    return %c0_i32, %c0_i32_0 : i32, i32
  }
  func.func @transform_8(%arg0: i32, %arg1: i32) -> (i32, i32) {
    %c0_i32 = arith.constant 0 : i32
    %c0_i32_0 = arith.constant 0 : i32
    %c0_i32_1 = arith.constant 0 : i32
    return %c0_i32, %c0_i32_0 : i32, i32
  }
  func.func @transform_9(%arg0: i32, %arg1: i32) -> (i32, i32) {
    %c0_i32 = arith.constant 0 : i32
    %c0_i32_0 = arith.constant 0 : i32
    %c0_i32_1 = arith.constant 0 : i32
    return %c0_i32, %c0_i32_0 : i32, i32
  }
  func.func @transform_10(%arg0: i32, %arg1: i32) -> (i32, i32) {
    %c0_i32 = arith.constant 0 : i32
    %c0_i32_0 = arith.constant 0 : i32
    %c0_i32_1 = arith.constant 0 : i32
    return %c0_i32, %c0_i32_0 : i32, i32
  }
  func.func @transform_11(%arg0: i32, %arg1: i32) -> (i32, i32) {
    %c0_i32 = arith.constant 0 : i32
    %c0_i32_0 = arith.constant 0 : i32
    %c0_i32_1 = arith.constant 0 : i32
    return %c0_i32, %c0_i32_0 : i32, i32
  }
  func.func @transform_12(%arg0: i32, %arg1: i32) -> (i32, i32) {
    %c0_i32 = arith.constant 0 : i32
    %c0_i32_0 = arith.constant 0 : i32
    %c0_i32_1 = arith.constant 0 : i32
    return %c0_i32, %c0_i32_0 : i32, i32
  }
  func.func @transform_13(%arg0: i32, %arg1: i32) -> (i32, i32) {
    %c0_i32 = arith.constant 0 : i32
    %c0_i32_0 = arith.constant 0 : i32
    %c0_i32_1 = arith.constant 0 : i32
    return %c0_i32, %c0_i32_0 : i32, i32
  }
  func.func @transform_14(%arg0: i32, %arg1: i32) -> (i32, i32, i32) {
    %c0_i32 = arith.constant 0 : i32
    %c0_i32_0 = arith.constant 0 : i32
    return %arg0, %arg1, %c0_i32 : i32, i32, i32
  }
  func.func @transform_15(%arg0: i32, %arg1: i32) -> (i32, i32, i32, i32) {
    %c0_i32 = arith.constant 0 : i32
    %c0_i32_0 = arith.constant 0 : i32
    %c0_i32_1 = arith.constant 0 : i32
    return %arg0, %c0_i32, %arg1, %c0_i32_0 : i32, i32, i32, i32
  }
}

module attributes {stable_mosaic.version = 11 : i64} {
  func.func @decoder_layer_kernel(%arg0: i32, %arg1: i32, %arg2: memref<1x8x32xbf16, #tpu.memory_space<vmem>>, %arg3: memref<1x12x32xbf16, #tpu.memory_space<vmem>>, %arg4: memref<1x1x8xf32, #tpu.memory_space<vmem>>, %arg5: memref<1x1x12xf32, #tpu.memory_space<vmem>>, %arg6: memref<32x32xbf16, #tpu.memory_space<vmem>>, %arg7: memref<32x64xbf16, #tpu.memory_space<vmem>>, %arg8: memref<32x32xbf16, #tpu.memory_space<vmem>>, %arg9: memref<32x32xbf16, #tpu.memory_space<vmem>>, %arg10: memref<32x64xbf16, #tpu.memory_space<vmem>>, %arg11: memref<32x32xbf16, #tpu.memory_space<vmem>>, %arg12: memref<32x64xbf16, #tpu.memory_space<vmem>>, %arg13: memref<64x32xbf16, #tpu.memory_space<vmem>>, %arg14: memref<16x32xf32, #tpu.memory_space<vmem>>, %arg15: memref<1x64xf32, #tpu.memory_space<vmem>>, %arg16: memref<1x8x32xf32, #tpu.memory_space<vmem>>, %arg17: memref<1x4x8x12xf32, #tpu.memory_space<vmem>>) attributes {dimension_semantics = [#tpu.dimension_semantics<parallel>, #tpu.dimension_semantics<parallel>], iteration_bounds = array<i64: 2, 1>, scalar_prefetch = 0 : i64, scratch_operands = 0 : i64, tpu.core_type = #tpu.core_type<tc>, window_params = [{transform_indices = @transform_0, window_bounds = array<i64: 1, 8, 32>}, {transform_indices = @transform_1, window_bounds = array<i64: 1, 12, 32>}, {transform_indices = @transform_2, window_bounds = array<i64: 1, 1, 8>}, {transform_indices = @transform_3, window_bounds = array<i64: 1, 1, 12>}, {pipeline_mode = #tpu.pipeline_mode<synchronous>, transform_indices = @transform_4, window_bounds = array<i64: 32, 32>}, {pipeline_mode = #tpu.pipeline_mode<synchronous>, transform_indices = @transform_5, window_bounds = array<i64: 32, 64>}, {pipeline_mode = #tpu.pipeline_mode<synchronous>, transform_indices = @transform_6, window_bounds = array<i64: 32, 32>}, {pipeline_mode = #tpu.pipeline_mode<synchronous>, transform_indices = @transform_7, window_bounds = array<i64: 32, 32>}, {pipeline_mode = #tpu.pipeline_mode<synchronous>, transform_indices = @transform_8, window_bounds = array<i64: 32, 64>}, {pipeline_mode = #tpu.pipeline_mode<synchronous>, transform_indices = @transform_9, window_bounds = array<i64: 32, 32>}, {pipeline_mode = #tpu.pipeline_mode<synchronous>, transform_indices = @transform_10, window_bounds = array<i64: 32, 64>}, {pipeline_mode = #tpu.pipeline_mode<synchronous>, transform_indices = @transform_11, window_bounds = array<i64: 64, 32>}, {pipeline_mode = #tpu.pipeline_mode<synchronous>, transform_indices = @transform_12, window_bounds = array<i64: 16, 32>}, {pipeline_mode = #tpu.pipeline_mode<synchronous>, transform_indices = @transform_13, window_bounds = array<i64: 1, 64>}, {transform_indices = @transform_14, window_bounds = array<i64: 1, 8, 32>}, {transform_indices = @transform_15, window_bounds = array<i64: 1, 4, 8, 12>}]} {
    %c8_i32 = arith.constant 8 : i32
    %0 = arith.muli %arg1, %c8_i32 : i32
    %1 = tpu.assume_multiple %0, 8 : i32
    %c0 = arith.constant 0 : index
    %c0_0 = arith.constant 0 : index
    %c0_1 = arith.constant 0 : index
    %2 = vector.load %arg2[%c0, %c0_0, %c0_1] : memref<1x8x32xbf16, #tpu.memory_space<vmem>>, vector<1x8x32xbf16>
    %3 = vector.shape_cast %2 : vector<1x8x32xbf16> to vector<8x32xbf16>
    %c0_2 = arith.constant 0 : index
    %c0_3 = arith.constant 0 : index
    %c0_4 = arith.constant 0 : index
    %4 = vector.load %arg3[%c0_2, %c0_3, %c0_4] : memref<1x12x32xbf16, #tpu.memory_space<vmem>>, vector<1x12x32xbf16>
    %5 = vector.shape_cast %4 : vector<1x12x32xbf16> to vector<12x32xbf16>
    %c0_5 = arith.constant 0 : index
    %6 = arith.index_cast %1 : i32 to index
    %c0_6 = arith.constant 0 : index
    %7 = vector.load %arg2[%c0_5, %6, %c0_6] : memref<1x8x32xbf16, #tpu.memory_space<vmem>>, vector<1x8x32xbf16>
    %8 = vector.shape_cast %7 : vector<1x8x32xbf16> to vector<8x32xbf16>
    %c0_7 = arith.constant 0 : index
    %c0_8 = arith.constant 0 : index
    %9 = vector.load %arg14[%c0_7, %c0_8] : memref<16x32xf32, #tpu.memory_space<vmem>>, vector<16x32xf32>
    %10 = tpu.iota {dimensions = array<i32: 0>} : vector<8x8xi32>
    %11 = vector.broadcast %1 : i32 to vector<8x8xi32>
    %12 = arith.addi %11, %10 : vector<8x8xi32>
    %13 = tpu.iota {dimensions = array<i32: 1>} : vector<8x8xi32>
    %14 = arith.cmpi sle, %13, %12 : vector<8x8xi32>
    %cst = arith.constant 0.000000e+00 : f32
    %cst_9 = arith.constant -1.000000e+10 : f32
    %15 = vector.broadcast %cst : f32 to vector<8x8xf32>
    %16 = vector.broadcast %cst_9 : f32 to vector<8x8xf32>
    %17 = arith.select %14, %15, %16 : vector<8x8xi1>, vector<8x8xf32>
    %c0_10 = arith.constant 0 : index
    %c0_11 = arith.constant 0 : index
    %c0_12 = arith.constant 0 : index
    %18 = vector.load %arg4[%c0_10, %c0_11, %c0_12] : memref<1x1x8xf32, #tpu.memory_space<vmem>>, vector<1x1x8xf32>
    %19 = vector.shape_cast %18 : vector<1x1x8xf32> to vector<1x8xf32>
    %20 = vector.broadcast %19 : vector<1x8xf32> to vector<8x8xf32>
    %21 = arith.addf %17, %20 : vector<8x8xf32>
    %c0_13 = arith.constant 0 : index
    %c0_14 = arith.constant 0 : index
    %c0_15 = arith.constant 0 : index
    %22 = vector.load %arg5[%c0_13, %c0_14, %c0_15] : memref<1x1x12xf32, #tpu.memory_space<vmem>>, vector<1x1x12xf32>
    %23 = vector.shape_cast %22 : vector<1x1x12xf32> to vector<1x12xf32>
    %24 = vector.shape_cast %23 : vector<1x12xf32> to vector<1x12xf32>
    %25 = vector.broadcast %24 : vector<1x12xf32> to vector<8x12xf32>
    %26 = vector.extract_strided_slice %9 {offsets = [0, 0], sizes = [1, 32], strides = [1, 1]} : vector<16x32xf32> to vector<1x32xf32>
    %27 = vector.extract_strided_slice %9 {offsets = [1, 0], sizes = [1, 32], strides = [1, 1]} : vector<16x32xf32> to vector<1x32xf32>
    %28 = vector.extract_strided_slice %9 {offsets = [2, 0], sizes = [1, 32], strides = [1, 1]} : vector<16x32xf32> to vector<1x32xf32>
    %29 = vector.extract_strided_slice %9 {offsets = [3, 0], sizes = [1, 32], strides = [1, 1]} : vector<16x32xf32> to vector<1x32xf32>
    %c0_16 = arith.constant 0 : index
    %c0_17 = arith.constant 0 : index
    %30 = vector.load %arg6[%c0_16, %c0_17] : memref<32x32xbf16, #tpu.memory_space<vmem>>, vector<32x32xbf16>
    %cst_18 = arith.constant dense<0.000000e+00> : vector<8x32xf32>
    %31 = tpu.matmul %8, %30, %cst_18 {dimension_numbers = #tpu.dot_dimension_numbers<[1], [0], [0], [1], [0, 0, 1, 1], [], []>} : vector<8x32xbf16>, vector<32x32xbf16>, vector<8x32xf32> -> vector<8x32xf32>
    %32 = vector.broadcast %26 : vector<1x32xf32> to vector<8x32xf32>
    %33 = arith.addf %31, %32 : vector<8x32xf32>
    %c0_19 = arith.constant 0 : index
    %c0_20 = arith.constant 0 : index
    %34 = vector.load %arg7[%c0_19, %c0_20] : memref<32x64xbf16, #tpu.memory_space<vmem>>, vector<32x64xbf16>
    %cst_21 = arith.constant dense<0.000000e+00> : vector<8x64xf32>
    %35 = tpu.matmul %3, %34, %cst_21 {dimension_numbers = #tpu.dot_dimension_numbers<[1], [0], [0], [1], [0, 0, 1, 1], [], []>} : vector<8x32xbf16>, vector<32x64xbf16>, vector<8x64xf32> -> vector<8x64xf32>
    %36 = vector.extract_strided_slice %35 {offsets = [0, 0], sizes = [8, 32], strides = [1, 1]} : vector<8x64xf32> to vector<8x32xf32>
    %37 = vector.broadcast %27 : vector<1x32xf32> to vector<8x32xf32>
    %38 = arith.addf %36, %37 : vector<8x32xf32>
    %39 = vector.extract_strided_slice %35 {offsets = [0, 32], sizes = [8, 32], strides = [1, 1]} : vector<8x64xf32> to vector<8x32xf32>
    %40 = vector.broadcast %28 : vector<1x32xf32> to vector<8x32xf32>
    %41 = arith.addf %39, %40 : vector<8x32xf32>
    %42 = vector.extract_strided_slice %33 {offsets = [0, 0], sizes = [8, 8], strides = [1, 1]} : vector<8x32xf32> to vector<8x8xf32>
    %43 = arith.truncf %42 : vector<8x8xf32> to vector<8x8xbf16>
    %44 = vector.extract_strided_slice %38 {offsets = [0, 0], sizes = [8, 8], strides = [1, 1]} : vector<8x32xf32> to vector<8x8xf32>
    %45 = arith.truncf %44 : vector<8x8xf32> to vector<8x8xbf16>
    %46 = vector.extract_strided_slice %41 {offsets = [0, 0], sizes = [8, 8], strides = [1, 1]} : vector<8x32xf32> to vector<8x8xf32>
    %47 = arith.truncf %46 : vector<8x8xf32> to vector<8x8xbf16>
    %cst_22 = arith.constant dense<0.000000e+00> : vector<8x8xf32>
    %48 = tpu.matmul %43, %45, %cst_22 {dimension_numbers = #tpu.dot_dimension_numbers<[1], [1], [0], [0], [0, 0, 1, 0], [], []>} : vector<8x8xbf16>, vector<8x8xbf16>, vector<8x8xf32> -> vector<8x8xf32>
    %49 = arith.addf %48, %21 : vector<8x8xf32>
    %cst_23 = arith.constant dense<0xFF800000> : vector<8xf32>
    %50 = vector.multi_reduction <maximumf>, %49, %cst_23 [1] : vector<8x8xf32> to vector<8xf32>
    %51 = vector.shape_cast %50 : vector<8xf32> to vector<8x1xf32>
    %52 = vector.broadcast %51 : vector<8x1xf32> to vector<8x8xf32>
    %53 = arith.subf %49, %52 : vector<8x8xf32>
    %54 = math.exp %53 : vector<8x8xf32>
    %cst_24 = arith.constant dense<0.000000e+00> : vector<8xf32>
    %55 = vector.multi_reduction <add>, %54, %cst_24 [1] : vector<8x8xf32> to vector<8xf32>
    %56 = vector.shape_cast %55 : vector<8xf32> to vector<8x1xf32>
    %57 = tpu.reciprocal %56 {approx = true} : vector<8x1xf32> -> vector<8x1xf32>
    %58 = vector.broadcast %57 : vector<8x1xf32> to vector<8x8xf32>
    %59 = arith.mulf %54, %58 : vector<8x8xf32>
    %60 = arith.truncf %59 : vector<8x8xf32> to vector<8x8xbf16>
    %cst_25 = arith.constant dense<0.000000e+00> : vector<8x8xf32>
    %61 = tpu.matmul %60, %47, %cst_25 {dimension_numbers = #tpu.dot_dimension_numbers<[1], [0], [0], [1], [0, 0, 1, 1], [], []>} : vector<8x8xbf16>, vector<8x8xbf16>, vector<8x8xf32> -> vector<8x8xf32>
    %62 = vector.extract_strided_slice %33 {offsets = [0, 8], sizes = [8, 8], strides = [1, 1]} : vector<8x32xf32> to vector<8x8xf32>
    %63 = arith.truncf %62 : vector<8x8xf32> to vector<8x8xbf16>
    %64 = vector.extract_strided_slice %38 {offsets = [0, 8], sizes = [8, 8], strides = [1, 1]} : vector<8x32xf32> to vector<8x8xf32>
    %65 = arith.truncf %64 : vector<8x8xf32> to vector<8x8xbf16>
    %66 = vector.extract_strided_slice %41 {offsets = [0, 8], sizes = [8, 8], strides = [1, 1]} : vector<8x32xf32> to vector<8x8xf32>
    %67 = arith.truncf %66 : vector<8x8xf32> to vector<8x8xbf16>
    %cst_26 = arith.constant dense<0.000000e+00> : vector<8x8xf32>
    %68 = tpu.matmul %63, %65, %cst_26 {dimension_numbers = #tpu.dot_dimension_numbers<[1], [1], [0], [0], [0, 0, 1, 0], [], []>} : vector<8x8xbf16>, vector<8x8xbf16>, vector<8x8xf32> -> vector<8x8xf32>
    %69 = arith.addf %68, %21 : vector<8x8xf32>
    %cst_27 = arith.constant dense<0xFF800000> : vector<8xf32>
    %70 = vector.multi_reduction <maximumf>, %69, %cst_27 [1] : vector<8x8xf32> to vector<8xf32>
    %71 = vector.shape_cast %70 : vector<8xf32> to vector<8x1xf32>
    %72 = vector.broadcast %71 : vector<8x1xf32> to vector<8x8xf32>
    %73 = arith.subf %69, %72 : vector<8x8xf32>
    %74 = math.exp %73 : vector<8x8xf32>
    %cst_28 = arith.constant dense<0.000000e+00> : vector<8xf32>
    %75 = vector.multi_reduction <add>, %74, %cst_28 [1] : vector<8x8xf32> to vector<8xf32>
    %76 = vector.shape_cast %75 : vector<8xf32> to vector<8x1xf32>
    %77 = tpu.reciprocal %76 {approx = true} : vector<8x1xf32> -> vector<8x1xf32>
    %78 = vector.broadcast %77 : vector<8x1xf32> to vector<8x8xf32>
    %79 = arith.mulf %74, %78 : vector<8x8xf32>
    %80 = arith.truncf %79 : vector<8x8xf32> to vector<8x8xbf16>
    %cst_29 = arith.constant dense<0.000000e+00> : vector<8x8xf32>
    %81 = tpu.matmul %80, %67, %cst_29 {dimension_numbers = #tpu.dot_dimension_numbers<[1], [0], [0], [1], [0, 0, 1, 1], [], []>} : vector<8x8xbf16>, vector<8x8xbf16>, vector<8x8xf32> -> vector<8x8xf32>
    %82 = vector.extract_strided_slice %33 {offsets = [0, 16], sizes = [8, 8], strides = [1, 1]} : vector<8x32xf32> to vector<8x8xf32>
    %83 = arith.truncf %82 : vector<8x8xf32> to vector<8x8xbf16>
    %84 = vector.extract_strided_slice %38 {offsets = [0, 16], sizes = [8, 8], strides = [1, 1]} : vector<8x32xf32> to vector<8x8xf32>
    %85 = arith.truncf %84 : vector<8x8xf32> to vector<8x8xbf16>
    %86 = vector.extract_strided_slice %41 {offsets = [0, 16], sizes = [8, 8], strides = [1, 1]} : vector<8x32xf32> to vector<8x8xf32>
    %87 = arith.truncf %86 : vector<8x8xf32> to vector<8x8xbf16>
    %cst_30 = arith.constant dense<0.000000e+00> : vector<8x8xf32>
    %88 = tpu.matmul %83, %85, %cst_30 {dimension_numbers = #tpu.dot_dimension_numbers<[1], [1], [0], [0], [0, 0, 1, 0], [], []>} : vector<8x8xbf16>, vector<8x8xbf16>, vector<8x8xf32> -> vector<8x8xf32>
    %89 = arith.addf %88, %21 : vector<8x8xf32>
    %cst_31 = arith.constant dense<0xFF800000> : vector<8xf32>
    %90 = vector.multi_reduction <maximumf>, %89, %cst_31 [1] : vector<8x8xf32> to vector<8xf32>
    %91 = vector.shape_cast %90 : vector<8xf32> to vector<8x1xf32>
    %92 = vector.broadcast %91 : vector<8x1xf32> to vector<8x8xf32>
    %93 = arith.subf %89, %92 : vector<8x8xf32>
    %94 = math.exp %93 : vector<8x8xf32>
    %cst_32 = arith.constant dense<0.000000e+00> : vector<8xf32>
    %95 = vector.multi_reduction <add>, %94, %cst_32 [1] : vector<8x8xf32> to vector<8xf32>
    %96 = vector.shape_cast %95 : vector<8xf32> to vector<8x1xf32>
    %97 = tpu.reciprocal %96 {approx = true} : vector<8x1xf32> -> vector<8x1xf32>
    %98 = vector.broadcast %97 : vector<8x1xf32> to vector<8x8xf32>
    %99 = arith.mulf %94, %98 : vector<8x8xf32>
    %100 = arith.truncf %99 : vector<8x8xf32> to vector<8x8xbf16>
    %cst_33 = arith.constant dense<0.000000e+00> : vector<8x8xf32>
    %101 = tpu.matmul %100, %87, %cst_33 {dimension_numbers = #tpu.dot_dimension_numbers<[1], [0], [0], [1], [0, 0, 1, 1], [], []>} : vector<8x8xbf16>, vector<8x8xbf16>, vector<8x8xf32> -> vector<8x8xf32>
    %102 = vector.extract_strided_slice %33 {offsets = [0, 24], sizes = [8, 8], strides = [1, 1]} : vector<8x32xf32> to vector<8x8xf32>
    %103 = arith.truncf %102 : vector<8x8xf32> to vector<8x8xbf16>
    %104 = vector.extract_strided_slice %38 {offsets = [0, 24], sizes = [8, 8], strides = [1, 1]} : vector<8x32xf32> to vector<8x8xf32>
    %105 = arith.truncf %104 : vector<8x8xf32> to vector<8x8xbf16>
    %106 = vector.extract_strided_slice %41 {offsets = [0, 24], sizes = [8, 8], strides = [1, 1]} : vector<8x32xf32> to vector<8x8xf32>
    %107 = arith.truncf %106 : vector<8x8xf32> to vector<8x8xbf16>
    %cst_34 = arith.constant dense<0.000000e+00> : vector<8x8xf32>
    %108 = tpu.matmul %103, %105, %cst_34 {dimension_numbers = #tpu.dot_dimension_numbers<[1], [1], [0], [0], [0, 0, 1, 0], [], []>} : vector<8x8xbf16>, vector<8x8xbf16>, vector<8x8xf32> -> vector<8x8xf32>
    %109 = arith.addf %108, %21 : vector<8x8xf32>
    %cst_35 = arith.constant dense<0xFF800000> : vector<8xf32>
    %110 = vector.multi_reduction <maximumf>, %109, %cst_35 [1] : vector<8x8xf32> to vector<8xf32>
    %111 = vector.shape_cast %110 : vector<8xf32> to vector<8x1xf32>
    %112 = vector.broadcast %111 : vector<8x1xf32> to vector<8x8xf32>
    %113 = arith.subf %109, %112 : vector<8x8xf32>
    %114 = math.exp %113 : vector<8x8xf32>
    %cst_36 = arith.constant dense<0.000000e+00> : vector<8xf32>
    %115 = vector.multi_reduction <add>, %114, %cst_36 [1] : vector<8x8xf32> to vector<8xf32>
    %116 = vector.shape_cast %115 : vector<8xf32> to vector<8x1xf32>
    %117 = tpu.reciprocal %116 {approx = true} : vector<8x1xf32> -> vector<8x1xf32>
    %118 = vector.broadcast %117 : vector<8x1xf32> to vector<8x8xf32>
    %119 = arith.mulf %114, %118 : vector<8x8xf32>
    %120 = arith.truncf %119 : vector<8x8xf32> to vector<8x8xbf16>
    %cst_37 = arith.constant dense<0.000000e+00> : vector<8x8xf32>
    %121 = tpu.matmul %120, %107, %cst_37 {dimension_numbers = #tpu.dot_dimension_numbers<[1], [0], [0], [1], [0, 0, 1, 1], [], []>} : vector<8x8xbf16>, vector<8x8xbf16>, vector<8x8xf32> -> vector<8x8xf32>
    %122 = tpu.concatenate %61, %81, %101, %121 in 1 : vector<8x8xf32>, vector<8x8xf32>, vector<8x8xf32>, vector<8x8xf32> -> vector<8x32xf32>
    %123 = arith.truncf %122 : vector<8x32xf32> to vector<8x32xbf16>
    %c0_38 = arith.constant 0 : index
    %c0_39 = arith.constant 0 : index
    %124 = vector.load %arg8[%c0_38, %c0_39] : memref<32x32xbf16, #tpu.memory_space<vmem>>, vector<32x32xbf16>
    %cst_40 = arith.constant dense<0.000000e+00> : vector<8x32xf32>
    %125 = tpu.matmul %123, %124, %cst_40 {dimension_numbers = #tpu.dot_dimension_numbers<[1], [0], [0], [1], [0, 0, 1, 1], [], []>} : vector<8x32xbf16>, vector<32x32xbf16>, vector<8x32xf32> -> vector<8x32xf32>
    %126 = vector.broadcast %29 : vector<1x32xf32> to vector<8x32xf32>
    %127 = arith.addf %125, %126 : vector<8x32xf32>
    %128 = arith.extf %8 : vector<8x32xbf16> to vector<8x32xf32>
    %129 = arith.addf %128, %127 : vector<8x32xf32>
    %130 = vector.extract_strided_slice %9 {offsets = [4, 0], sizes = [1, 32], strides = [1, 1]} : vector<16x32xf32> to vector<1x32xf32>
    %131 = vector.extract_strided_slice %9 {offsets = [5, 0], sizes = [1, 32], strides = [1, 1]} : vector<16x32xf32> to vector<1x32xf32>
    %cst_41 = arith.constant dense<0.000000e+00> : vector<8xf32>
    %132 = vector.multi_reduction <add>, %129, %cst_41 [1] : vector<8x32xf32> to vector<8xf32>
    %133 = vector.shape_cast %132 : vector<8xf32> to vector<8x1xf32>
    %cst_42 = arith.constant 3.200000e+01 : f32
    %134 = vector.broadcast %cst_42 : f32 to vector<8x1xf32>
    %135 = arith.divf %133, %134 : vector<8x1xf32>
    %136 = vector.broadcast %135 : vector<8x1xf32> to vector<8x32xf32>
    %137 = arith.subf %129, %136 : vector<8x32xf32>
    %138 = arith.mulf %137, %137 : vector<8x32xf32>
    %cst_43 = arith.constant dense<0.000000e+00> : vector<8xf32>
    %139 = vector.multi_reduction <add>, %138, %cst_43 [1] : vector<8x32xf32> to vector<8xf32>
    %140 = vector.shape_cast %139 : vector<8xf32> to vector<8x1xf32>
    %cst_44 = arith.constant 3.200000e+01 : f32
    %141 = vector.broadcast %cst_44 : f32 to vector<8x1xf32>
    %142 = arith.divf %140, %141 : vector<8x1xf32>
    %143 = vector.broadcast %135 : vector<8x1xf32> to vector<8x32xf32>
    %144 = arith.subf %129, %143 : vector<8x32xf32>
    %cst_45 = arith.constant 9.99999974E-6 : f32
    %145 = vector.broadcast %cst_45 : f32 to vector<8x1xf32>
    %146 = arith.addf %142, %145 : vector<8x1xf32>
    %147 = math.rsqrt %146 : vector<8x1xf32>
    %148 = vector.broadcast %147 : vector<8x1xf32> to vector<8x32xf32>
    %149 = arith.mulf %144, %148 : vector<8x32xf32>
    %150 = vector.broadcast %130 : vector<1x32xf32> to vector<8x32xf32>
    %151 = arith.mulf %149, %150 : vector<8x32xf32>
    %152 = vector.broadcast %131 : vector<1x32xf32> to vector<8x32xf32>
    %153 = arith.addf %151, %152 : vector<8x32xf32>
    %154 = arith.truncf %153 : vector<8x32xf32> to vector<8x32xbf16>
    %155 = vector.extract_strided_slice %9 {offsets = [6, 0], sizes = [1, 32], strides = [1, 1]} : vector<16x32xf32> to vector<1x32xf32>
    %156 = vector.extract_strided_slice %9 {offsets = [7, 0], sizes = [1, 32], strides = [1, 1]} : vector<16x32xf32> to vector<1x32xf32>
    %157 = vector.extract_strided_slice %9 {offsets = [8, 0], sizes = [1, 32], strides = [1, 1]} : vector<16x32xf32> to vector<1x32xf32>
    %158 = vector.extract_strided_slice %9 {offsets = [9, 0], sizes = [1, 32], strides = [1, 1]} : vector<16x32xf32> to vector<1x32xf32>
    %c0_46 = arith.constant 0 : index
    %c0_47 = arith.constant 0 : index
    %159 = vector.load %arg9[%c0_46, %c0_47] : memref<32x32xbf16, #tpu.memory_space<vmem>>, vector<32x32xbf16>
    %cst_48 = arith.constant dense<0.000000e+00> : vector<8x32xf32>
    %160 = tpu.matmul %154, %159, %cst_48 {dimension_numbers = #tpu.dot_dimension_numbers<[1], [0], [0], [1], [0, 0, 1, 1], [], []>} : vector<8x32xbf16>, vector<32x32xbf16>, vector<8x32xf32> -> vector<8x32xf32>
    %161 = vector.broadcast %155 : vector<1x32xf32> to vector<8x32xf32>
    %162 = arith.addf %160, %161 : vector<8x32xf32>
    %c0_49 = arith.constant 0 : index
    %c0_50 = arith.constant 0 : index
    %163 = vector.load %arg10[%c0_49, %c0_50] : memref<32x64xbf16, #tpu.memory_space<vmem>>, vector<32x64xbf16>
    %cst_51 = arith.constant dense<0.000000e+00> : vector<12x64xf32>
    %164 = tpu.matmul %5, %163, %cst_51 {dimension_numbers = #tpu.dot_dimension_numbers<[1], [0], [0], [1], [0, 0, 1, 1], [], []>} : vector<12x32xbf16>, vector<32x64xbf16>, vector<12x64xf32> -> vector<12x64xf32>
    %165 = vector.extract_strided_slice %164 {offsets = [0, 0], sizes = [12, 32], strides = [1, 1]} : vector<12x64xf32> to vector<12x32xf32>
    %166 = vector.broadcast %156 : vector<1x32xf32> to vector<12x32xf32>
    %167 = arith.addf %165, %166 : vector<12x32xf32>
    %168 = vector.extract_strided_slice %164 {offsets = [0, 32], sizes = [12, 32], strides = [1, 1]} : vector<12x64xf32> to vector<12x32xf32>
    %169 = vector.broadcast %157 : vector<1x32xf32> to vector<12x32xf32>
    %170 = arith.addf %168, %169 : vector<12x32xf32>
    %171 = vector.extract_strided_slice %162 {offsets = [0, 0], sizes = [8, 8], strides = [1, 1]} : vector<8x32xf32> to vector<8x8xf32>
    %172 = arith.truncf %171 : vector<8x8xf32> to vector<8x8xbf16>
    %173 = vector.extract_strided_slice %167 {offsets = [0, 0], sizes = [12, 8], strides = [1, 1]} : vector<12x32xf32> to vector<12x8xf32>
    %174 = arith.truncf %173 : vector<12x8xf32> to vector<12x8xbf16>
    %175 = vector.extract_strided_slice %170 {offsets = [0, 0], sizes = [12, 8], strides = [1, 1]} : vector<12x32xf32> to vector<12x8xf32>
    %176 = arith.truncf %175 : vector<12x8xf32> to vector<12x8xbf16>
    %cst_52 = arith.constant dense<0.000000e+00> : vector<8x12xf32>
    %177 = tpu.matmul %172, %174, %cst_52 {dimension_numbers = #tpu.dot_dimension_numbers<[1], [1], [0], [0], [0, 0, 1, 0], [], []>} : vector<8x8xbf16>, vector<12x8xbf16>, vector<8x12xf32> -> vector<8x12xf32>
    %178 = arith.addf %177, %25 : vector<8x12xf32>
    %cst_53 = arith.constant dense<0xFF800000> : vector<8xf32>
    %179 = vector.multi_reduction <maximumf>, %178, %cst_53 [1] : vector<8x12xf32> to vector<8xf32>
    %180 = vector.shape_cast %179 : vector<8xf32> to vector<8x1xf32>
    %181 = vector.broadcast %180 : vector<8x1xf32> to vector<8x12xf32>
    %182 = arith.subf %178, %181 : vector<8x12xf32>
    %183 = math.exp %182 : vector<8x12xf32>
    %cst_54 = arith.constant dense<0.000000e+00> : vector<8xf32>
    %184 = vector.multi_reduction <add>, %183, %cst_54 [1] : vector<8x12xf32> to vector<8xf32>
    %185 = vector.shape_cast %184 : vector<8xf32> to vector<8x1xf32>
    %186 = vector.broadcast %185 : vector<8x1xf32> to vector<8x12xf32>
    %187 = arith.divf %183, %186 : vector<8x12xf32>
    %c0_55 = arith.constant 0 : index
    %c0_56 = arith.constant 0 : index
    %c0_57 = arith.constant 0 : index
    %c0_58 = arith.constant 0 : index
    %188 = vector.load %arg17[%c0_55, %c0_56, %c0_57, %c0_58] : memref<1x4x8x12xf32, #tpu.memory_space<vmem>>, vector<1x1x8x12xf32>
    %189 = vector.shape_cast %188 : vector<1x1x8x12xf32> to vector<8x12xf32>
    %190 = vector.shape_cast %187 : vector<8x12xf32> to vector<1x1x8x12xf32>
    tpu.vector_store %arg17[%c0_55, %c0_56, %c0_57, %c0_58], %190 {strides = array<i32>} : memref<1x4x8x12xf32, #tpu.memory_space<vmem>>, vector<1x1x8x12xf32>,
    %191 = arith.truncf %187 : vector<8x12xf32> to vector<8x12xbf16>
    %cst_59 = arith.constant dense<0.000000e+00> : vector<8x8xf32>
    %192 = tpu.matmul %191, %176, %cst_59 {dimension_numbers = #tpu.dot_dimension_numbers<[1], [0], [0], [1], [0, 0, 1, 1], [], []>} : vector<8x12xbf16>, vector<12x8xbf16>, vector<8x8xf32> -> vector<8x8xf32>
    %193 = vector.extract_strided_slice %162 {offsets = [0, 8], sizes = [8, 8], strides = [1, 1]} : vector<8x32xf32> to vector<8x8xf32>
    %194 = arith.truncf %193 : vector<8x8xf32> to vector<8x8xbf16>
    %195 = vector.extract_strided_slice %167 {offsets = [0, 8], sizes = [12, 8], strides = [1, 1]} : vector<12x32xf32> to vector<12x8xf32>
    %196 = arith.truncf %195 : vector<12x8xf32> to vector<12x8xbf16>
    %197 = vector.extract_strided_slice %170 {offsets = [0, 8], sizes = [12, 8], strides = [1, 1]} : vector<12x32xf32> to vector<12x8xf32>
    %198 = arith.truncf %197 : vector<12x8xf32> to vector<12x8xbf16>
    %cst_60 = arith.constant dense<0.000000e+00> : vector<8x12xf32>
    %199 = tpu.matmul %194, %196, %cst_60 {dimension_numbers = #tpu.dot_dimension_numbers<[1], [1], [0], [0], [0, 0, 1, 0], [], []>} : vector<8x8xbf16>, vector<12x8xbf16>, vector<8x12xf32> -> vector<8x12xf32>
    %200 = arith.addf %199, %25 : vector<8x12xf32>
    %cst_61 = arith.constant dense<0xFF800000> : vector<8xf32>
    %201 = vector.multi_reduction <maximumf>, %200, %cst_61 [1] : vector<8x12xf32> to vector<8xf32>
    %202 = vector.shape_cast %201 : vector<8xf32> to vector<8x1xf32>
    %203 = vector.broadcast %202 : vector<8x1xf32> to vector<8x12xf32>
    %204 = arith.subf %200, %203 : vector<8x12xf32>
    %205 = math.exp %204 : vector<8x12xf32>
    %cst_62 = arith.constant dense<0.000000e+00> : vector<8xf32>
    %206 = vector.multi_reduction <add>, %205, %cst_62 [1] : vector<8x12xf32> to vector<8xf32>
    %207 = vector.shape_cast %206 : vector<8xf32> to vector<8x1xf32>
    %208 = vector.broadcast %207 : vector<8x1xf32> to vector<8x12xf32>
    %209 = arith.divf %205, %208 : vector<8x12xf32>
    %c0_63 = arith.constant 0 : index
    %c1 = arith.constant 1 : index
    %c0_64 = arith.constant 0 : index
    %c0_65 = arith.constant 0 : index
    %210 = vector.load %arg17[%c0_63, %c1, %c0_64, %c0_65] : memref<1x4x8x12xf32, #tpu.memory_space<vmem>>, vector<1x1x8x12xf32>
    %211 = vector.shape_cast %210 : vector<1x1x8x12xf32> to vector<8x12xf32>
    %212 = vector.shape_cast %209 : vector<8x12xf32> to vector<1x1x8x12xf32>
    tpu.vector_store %arg17[%c0_63, %c1, %c0_64, %c0_65], %212 {strides = array<i32>} : memref<1x4x8x12xf32, #tpu.memory_space<vmem>>, vector<1x1x8x12xf32>,
    %213 = arith.truncf %209 : vector<8x12xf32> to vector<8x12xbf16>
    %cst_66 = arith.constant dense<0.000000e+00> : vector<8x8xf32>
    %214 = tpu.matmul %213, %198, %cst_66 {dimension_numbers = #tpu.dot_dimension_numbers<[1], [0], [0], [1], [0, 0, 1, 1], [], []>} : vector<8x12xbf16>, vector<12x8xbf16>, vector<8x8xf32> -> vector<8x8xf32>
    %215 = vector.extract_strided_slice %162 {offsets = [0, 16], sizes = [8, 8], strides = [1, 1]} : vector<8x32xf32> to vector<8x8xf32>
    %216 = arith.truncf %215 : vector<8x8xf32> to vector<8x8xbf16>
    %217 = vector.extract_strided_slice %167 {offsets = [0, 16], sizes = [12, 8], strides = [1, 1]} : vector<12x32xf32> to vector<12x8xf32>
    %218 = arith.truncf %217 : vector<12x8xf32> to vector<12x8xbf16>
    %219 = vector.extract_strided_slice %170 {offsets = [0, 16], sizes = [12, 8], strides = [1, 1]} : vector<12x32xf32> to vector<12x8xf32>
    %220 = arith.truncf %219 : vector<12x8xf32> to vector<12x8xbf16>
    %cst_67 = arith.constant dense<0.000000e+00> : vector<8x12xf32>
    %221 = tpu.matmul %216, %218, %cst_67 {dimension_numbers = #tpu.dot_dimension_numbers<[1], [1], [0], [0], [0, 0, 1, 0], [], []>} : vector<8x8xbf16>, vector<12x8xbf16>, vector<8x12xf32> -> vector<8x12xf32>
    %222 = arith.addf %221, %25 : vector<8x12xf32>
    %cst_68 = arith.constant dense<0xFF800000> : vector<8xf32>
    %223 = vector.multi_reduction <maximumf>, %222, %cst_68 [1] : vector<8x12xf32> to vector<8xf32>
    %224 = vector.shape_cast %223 : vector<8xf32> to vector<8x1xf32>
    %225 = vector.broadcast %224 : vector<8x1xf32> to vector<8x12xf32>
    %226 = arith.subf %222, %225 : vector<8x12xf32>
    %227 = math.exp %226 : vector<8x12xf32>
    %cst_69 = arith.constant dense<0.000000e+00> : vector<8xf32>
    %228 = vector.multi_reduction <add>, %227, %cst_69 [1] : vector<8x12xf32> to vector<8xf32>
    %229 = vector.shape_cast %228 : vector<8xf32> to vector<8x1xf32>
    %230 = vector.broadcast %229 : vector<8x1xf32> to vector<8x12xf32>
    %231 = arith.divf %227, %230 : vector<8x12xf32>
    %c0_70 = arith.constant 0 : index
    %c2 = arith.constant 2 : index
    %c0_71 = arith.constant 0 : index
    %c0_72 = arith.constant 0 : index
    %232 = vector.load %arg17[%c0_70, %c2, %c0_71, %c0_72] : memref<1x4x8x12xf32, #tpu.memory_space<vmem>>, vector<1x1x8x12xf32>
    %233 = vector.shape_cast %232 : vector<1x1x8x12xf32> to vector<8x12xf32>
    %234 = vector.shape_cast %231 : vector<8x12xf32> to vector<1x1x8x12xf32>
    tpu.vector_store %arg17[%c0_70, %c2, %c0_71, %c0_72], %234 {strides = array<i32>} : memref<1x4x8x12xf32, #tpu.memory_space<vmem>>, vector<1x1x8x12xf32>,
    %235 = arith.truncf %231 : vector<8x12xf32> to vector<8x12xbf16>
    %cst_73 = arith.constant dense<0.000000e+00> : vector<8x8xf32>
    %236 = tpu.matmul %235, %220, %cst_73 {dimension_numbers = #tpu.dot_dimension_numbers<[1], [0], [0], [1], [0, 0, 1, 1], [], []>} : vector<8x12xbf16>, vector<12x8xbf16>, vector<8x8xf32> -> vector<8x8xf32>
    %237 = vector.extract_strided_slice %162 {offsets = [0, 24], sizes = [8, 8], strides = [1, 1]} : vector<8x32xf32> to vector<8x8xf32>
    %238 = arith.truncf %237 : vector<8x8xf32> to vector<8x8xbf16>
    %239 = vector.extract_strided_slice %167 {offsets = [0, 24], sizes = [12, 8], strides = [1, 1]} : vector<12x32xf32> to vector<12x8xf32>
    %240 = arith.truncf %239 : vector<12x8xf32> to vector<12x8xbf16>
    %241 = vector.extract_strided_slice %170 {offsets = [0, 24], sizes = [12, 8], strides = [1, 1]} : vector<12x32xf32> to vector<12x8xf32>
    %242 = arith.truncf %241 : vector<12x8xf32> to vector<12x8xbf16>
    %cst_74 = arith.constant dense<0.000000e+00> : vector<8x12xf32>
    %243 = tpu.matmul %238, %240, %cst_74 {dimension_numbers = #tpu.dot_dimension_numbers<[1], [1], [0], [0], [0, 0, 1, 0], [], []>} : vector<8x8xbf16>, vector<12x8xbf16>, vector<8x12xf32> -> vector<8x12xf32>
    %244 = arith.addf %243, %25 : vector<8x12xf32>
    %cst_75 = arith.constant dense<0xFF800000> : vector<8xf32>
    %245 = vector.multi_reduction <maximumf>, %244, %cst_75 [1] : vector<8x12xf32> to vector<8xf32>
    %246 = vector.shape_cast %245 : vector<8xf32> to vector<8x1xf32>
    %247 = vector.broadcast %246 : vector<8x1xf32> to vector<8x12xf32>
    %248 = arith.subf %244, %247 : vector<8x12xf32>
    %249 = math.exp %248 : vector<8x12xf32>
    %cst_76 = arith.constant dense<0.000000e+00> : vector<8xf32>
    %250 = vector.multi_reduction <add>, %249, %cst_76 [1] : vector<8x12xf32> to vector<8xf32>
    %251 = vector.shape_cast %250 : vector<8xf32> to vector<8x1xf32>
    %252 = vector.broadcast %251 : vector<8x1xf32> to vector<8x12xf32>
    %253 = arith.divf %249, %252 : vector<8x12xf32>
    %c0_77 = arith.constant 0 : index
    %c3 = arith.constant 3 : index
    %c0_78 = arith.constant 0 : index
    %c0_79 = arith.constant 0 : index
    %254 = vector.load %arg17[%c0_77, %c3, %c0_78, %c0_79] : memref<1x4x8x12xf32, #tpu.memory_space<vmem>>, vector<1x1x8x12xf32>
    %255 = vector.shape_cast %254 : vector<1x1x8x12xf32> to vector<8x12xf32>
    %256 = vector.shape_cast %253 : vector<8x12xf32> to vector<1x1x8x12xf32>
    tpu.vector_store %arg17[%c0_77, %c3, %c0_78, %c0_79], %256 {strides = array<i32>} : memref<1x4x8x12xf32, #tpu.memory_space<vmem>>, vector<1x1x8x12xf32>,
    %257 = arith.truncf %253 : vector<8x12xf32> to vector<8x12xbf16>
    %cst_80 = arith.constant dense<0.000000e+00> : vector<8x8xf32>
    %258 = tpu.matmul %257, %242, %cst_80 {dimension_numbers = #tpu.dot_dimension_numbers<[1], [0], [0], [1], [0, 0, 1, 1], [], []>} : vector<8x12xbf16>, vector<12x8xbf16>, vector<8x8xf32> -> vector<8x8xf32>
    %259 = tpu.concatenate %192, %214, %236, %258 in 1 : vector<8x8xf32>, vector<8x8xf32>, vector<8x8xf32>, vector<8x8xf32> -> vector<8x32xf32>
    %260 = arith.truncf %259 : vector<8x32xf32> to vector<8x32xbf16>
    %c0_81 = arith.constant 0 : index
    %c0_82 = arith.constant 0 : index
    %261 = vector.load %arg11[%c0_81, %c0_82] : memref<32x32xbf16, #tpu.memory_space<vmem>>, vector<32x32xbf16>
    %cst_83 = arith.constant dense<0.000000e+00> : vector<8x32xf32>
    %262 = tpu.matmul %260, %261, %cst_83 {dimension_numbers = #tpu.dot_dimension_numbers<[1], [0], [0], [1], [0, 0, 1, 1], [], []>} : vector<8x32xbf16>, vector<32x32xbf16>, vector<8x32xf32> -> vector<8x32xf32>
    %263 = vector.broadcast %158 : vector<1x32xf32> to vector<8x32xf32>
    %264 = arith.addf %262, %263 : vector<8x32xf32>
    %265 = arith.addf %153, %264 : vector<8x32xf32>
    %266 = vector.extract_strided_slice %9 {offsets = [10, 0], sizes = [1, 32], strides = [1, 1]} : vector<16x32xf32> to vector<1x32xf32>
    %267 = vector.extract_strided_slice %9 {offsets = [11, 0], sizes = [1, 32], strides = [1, 1]} : vector<16x32xf32> to vector<1x32xf32>
    %cst_84 = arith.constant dense<0.000000e+00> : vector<8xf32>
    %268 = vector.multi_reduction <add>, %265, %cst_84 [1] : vector<8x32xf32> to vector<8xf32>
    %269 = vector.shape_cast %268 : vector<8xf32> to vector<8x1xf32>
    %cst_85 = arith.constant 3.200000e+01 : f32
    %270 = vector.broadcast %cst_85 : f32 to vector<8x1xf32>
    %271 = arith.divf %269, %270 : vector<8x1xf32>
    %272 = vector.broadcast %271 : vector<8x1xf32> to vector<8x32xf32>
    %273 = arith.subf %265, %272 : vector<8x32xf32>
    %274 = arith.mulf %273, %273 : vector<8x32xf32>
    %cst_86 = arith.constant dense<0.000000e+00> : vector<8xf32>
    %275 = vector.multi_reduction <add>, %274, %cst_86 [1] : vector<8x32xf32> to vector<8xf32>
    %276 = vector.shape_cast %275 : vector<8xf32> to vector<8x1xf32>
    %cst_87 = arith.constant 3.200000e+01 : f32
    %277 = vector.broadcast %cst_87 : f32 to vector<8x1xf32>
    %278 = arith.divf %276, %277 : vector<8x1xf32>
    %279 = vector.broadcast %271 : vector<8x1xf32> to vector<8x32xf32>
    %280 = arith.subf %265, %279 : vector<8x32xf32>
    %cst_88 = arith.constant 9.99999974E-6 : f32
    %281 = vector.broadcast %cst_88 : f32 to vector<8x1xf32>
    %282 = arith.addf %278, %281 : vector<8x1xf32>
    %283 = math.rsqrt %282 : vector<8x1xf32>
    %284 = vector.broadcast %283 : vector<8x1xf32> to vector<8x32xf32>
    %285 = arith.mulf %280, %284 : vector<8x32xf32>
    %286 = vector.broadcast %266 : vector<1x32xf32> to vector<8x32xf32>
    %287 = arith.mulf %285, %286 : vector<8x32xf32>
    %288 = vector.broadcast %267 : vector<1x32xf32> to vector<8x32xf32>
    %289 = arith.addf %287, %288 : vector<8x32xf32>
    %290 = arith.truncf %289 : vector<8x32xf32> to vector<8x32xbf16>
    %c0_89 = arith.constant 0 : index
    %c0_90 = arith.constant 0 : index
    %291 = vector.load %arg12[%c0_89, %c0_90] : memref<32x64xbf16, #tpu.memory_space<vmem>>, vector<32x64xbf16>
    %cst_91 = arith.constant dense<0.000000e+00> : vector<8x64xf32>
    %292 = tpu.matmul %290, %291, %cst_91 {dimension_numbers = #tpu.dot_dimension_numbers<[1], [0], [0], [1], [0, 0, 1, 1], [], []>} : vector<8x32xbf16>, vector<32x64xbf16>, vector<8x64xf32> -> vector<8x64xf32>
    %c0_92 = arith.constant 0 : index
    %c0_93 = arith.constant 0 : index
    %293 = vector.load %arg15[%c0_92, %c0_93] : memref<1x64xf32, #tpu.memory_space<vmem>>, vector<1x64xf32>
    %294 = vector.broadcast %293 : vector<1x64xf32> to vector<8x64xf32>
    %295 = arith.addf %292, %294 : vector<8x64xf32>
    %cst_94 = arith.constant 0.000000e+00 : f32
    %296 = vector.broadcast %cst_94 : f32 to vector<8x64xf32>
    %297 = arith.maximumf %295, %296 : vector<8x64xf32>
    %298 = arith.truncf %297 : vector<8x64xf32> to vector<8x64xbf16>
    %c0_95 = arith.constant 0 : index
    %c0_96 = arith.constant 0 : index
    %299 = vector.load %arg13[%c0_95, %c0_96] : memref<64x32xbf16, #tpu.memory_space<vmem>>, vector<64x32xbf16>
    %cst_97 = arith.constant dense<0.000000e+00> : vector<8x32xf32>
    %300 = tpu.matmul %298, %299, %cst_97 {dimension_numbers = #tpu.dot_dimension_numbers<[1], [0], [0], [1], [0, 0, 1, 1], [], []>} : vector<8x64xbf16>, vector<64x32xbf16>, vector<8x32xf32> -> vector<8x32xf32>
    %301 = vector.extract_strided_slice %9 {offsets = [12, 0], sizes = [1, 32], strides = [1, 1]} : vector<16x32xf32> to vector<1x32xf32>
    %302 = vector.broadcast %301 : vector<1x32xf32> to vector<8x32xf32>
    %303 = arith.addf %300, %302 : vector<8x32xf32>
    %304 = arith.addf %289, %303 : vector<8x32xf32>
    %305 = vector.extract_strided_slice %9 {offsets = [13, 0], sizes = [1, 32], strides = [1, 1]} : vector<16x32xf32> to vector<1x32xf32>
    %306 = vector.extract_strided_slice %9 {offsets = [14, 0], sizes = [1, 32], strides = [1, 1]} : vector<16x32xf32> to vector<1x32xf32>
    %cst_98 = arith.constant dense<0.000000e+00> : vector<8xf32>
    %307 = vector.multi_reduction <add>, %304, %cst_98 [1] : vector<8x32xf32> to vector<8xf32>
    %308 = vector.shape_cast %307 : vector<8xf32> to vector<8x1xf32>
    %cst_99 = arith.constant 3.200000e+01 : f32
    %309 = vector.broadcast %cst_99 : f32 to vector<8x1xf32>
    %310 = arith.divf %308, %309 : vector<8x1xf32>
    %311 = vector.broadcast %310 : vector<8x1xf32> to vector<8x32xf32>
    %312 = arith.subf %304, %311 : vector<8x32xf32>
    %313 = arith.mulf %312, %312 : vector<8x32xf32>
    %cst_100 = arith.constant dense<0.000000e+00> : vector<8xf32>
    %314 = vector.multi_reduction <add>, %313, %cst_100 [1] : vector<8x32xf32> to vector<8xf32>
    %315 = vector.shape_cast %314 : vector<8xf32> to vector<8x1xf32>
    %cst_101 = arith.constant 3.200000e+01 : f32
    %316 = vector.broadcast %cst_101 : f32 to vector<8x1xf32>
    %317 = arith.divf %315, %316 : vector<8x1xf32>
    %318 = vector.broadcast %310 : vector<8x1xf32> to vector<8x32xf32>
    %319 = arith.subf %304, %318 : vector<8x32xf32>
    %cst_102 = arith.constant 9.99999974E-6 : f32
    %320 = vector.broadcast %cst_102 : f32 to vector<8x1xf32>
    %321 = arith.addf %317, %320 : vector<8x1xf32>
    %322 = math.rsqrt %321 : vector<8x1xf32>
    %323 = vector.broadcast %322 : vector<8x1xf32> to vector<8x32xf32>
    %324 = arith.mulf %319, %323 : vector<8x32xf32>
    %325 = vector.broadcast %305 : vector<1x32xf32> to vector<8x32xf32>
    %326 = arith.mulf %324, %325 : vector<8x32xf32>
    %327 = vector.broadcast %306 : vector<1x32xf32> to vector<8x32xf32>
    %328 = arith.addf %326, %327 : vector<8x32xf32>
    %c0_103 = arith.constant 0 : index
    %c0_104 = arith.constant 0 : index
    %c0_105 = arith.constant 0 : index
    %329 = vector.load %arg16[%c0_103, %c0_104, %c0_105] : memref<1x8x32xf32, #tpu.memory_space<vmem>>, vector<1x8x32xf32>
    %330 = vector.shape_cast %329 : vector<1x8x32xf32> to vector<8x32xf32>
    %331 = vector.shape_cast %328 : vector<8x32xf32> to vector<1x8x32xf32>
    tpu.vector_store %arg16[%c0_103, %c0_104, %c0_105], %331 {strides = array<i32>} : memref<1x8x32xf32, #tpu.memory_space<vmem>>, vector<1x8x32xf32>,
    return
  }
  func.func @transform_0(%arg0: i32, %arg1: i32) -> (i32, i32, i32) {
    %c0_i32 = arith.constant 0 : i32
    %c0_i32_0 = arith.constant 0 : i32
    %c0_i32_1 = arith.constant 0 : i32
    return %arg0, %c0_i32, %c0_i32_0 : i32, i32, i32
  }
  func.func @transform_1(%arg0: i32, %arg1: i32) -> (i32, i32, i32) {
    %c0_i32 = arith.constant 0 : i32
    %c0_i32_0 = arith.constant 0 : i32
    %c0_i32_1 = arith.constant 0 : i32
    return %arg0, %c0_i32, %c0_i32_0 : i32, i32, i32
  }
  func.func @transform_2(%arg0: i32, %arg1: i32) -> (i32, i32, i32) {
    %c0_i32 = arith.constant 0 : i32
    %c0_i32_0 = arith.constant 0 : i32
    %c0_i32_1 = arith.constant 0 : i32
    return %arg0, %c0_i32, %c0_i32_0 : i32, i32, i32
  }
  func.func @transform_3(%arg0: i32, %arg1: i32) -> (i32, i32, i32) {
    %c0_i32 = arith.constant 0 : i32
    %c0_i32_0 = arith.constant 0 : i32
    %c0_i32_1 = arith.constant 0 : i32
    return %arg0, %c0_i32, %c0_i32_0 : i32, i32, i32
  }
  func.func @transform_4(%arg0: i32, %arg1: i32) -> (i32, i32) {
    %c0_i32 = arith.constant 0 : i32
    %c0_i32_0 = arith.constant 0 : i32
    %c0_i32_1 = arith.constant 0 : i32
    return %c0_i32, %c0_i32_0 : i32, i32
  }
  func.func @transform_5(%arg0: i32, %arg1: i32) -> (i32, i32) {
    %c0_i32 = arith.constant 0 : i32
    %c0_i32_0 = arith.constant 0 : i32
    %c0_i32_1 = arith.constant 0 : i32
    return %c0_i32, %c0_i32_0 : i32, i32
  }
  func.func @transform_6(%arg0: i32, %arg1: i32) -> (i32, i32) {
    %c0_i32 = arith.constant 0 : i32
    %c0_i32_0 = arith.constant 0 : i32
    %c0_i32_1 = arith.constant 0 : i32
    return %c0_i32, %c0_i32_0 : i32, i32
  }
  func.func @transform_7(%arg0: i32, %arg1: i32) -> (i32, i32) {
    %c0_i32 = arith.constant 0 : i32
    %c0_i32_0 = arith.constant 0 : i32
    %c0_i32_1 = arith.constant 0 : i32
    return %c0_i32, %c0_i32_0 : i32, i32
  }
  func.func @transform_8(%arg0: i32, %arg1: i32) -> (i32, i32) {
    %c0_i32 = arith.constant 0 : i32
    %c0_i32_0 = arith.constant 0 : i32
    %c0_i32_1 = arith.constant 0 : i32
    return %c0_i32, %c0_i32_0 : i32, i32
  }
  func.func @transform_9(%arg0: i32, %arg1: i32) -> (i32, i32) {
    %c0_i32 = arith.constant 0 : i32
    %c0_i32_0 = arith.constant 0 : i32
    %c0_i32_1 = arith.constant 0 : i32
    return %c0_i32, %c0_i32_0 : i32, i32
  }
  func.func @transform_10(%arg0: i32, %arg1: i32) -> (i32, i32) {
    %c0_i32 = arith.constant 0 : i32
    %c0_i32_0 = arith.constant 0 : i32
    %c0_i32_1 = arith.constant 0 : i32
    return %c0_i32, %c0_i32_0 : i32, i32
  }
  func.func @transform_11(%arg0: i32, %arg1: i32) -> (i32, i32) {
    %c0_i32 = arith.constant 0 : i32
    %c0_i32_0 = arith.constant 0 : i32
    %c0_i32_1 = arith.constant 0 : i32
    return %c0_i32, %c0_i32_0 : i32, i32
  }
  func.func @transform_12(%arg0: i32, %arg1: i32) -> (i32, i32) {
    %c0_i32 = arith.constant 0 : i32
    %c0_i32_0 = arith.constant 0 : i32
    %c0_i32_1 = arith.constant 0 : i32
    return %c0_i32, %c0_i32_0 : i32, i32
  }
  func.func @transform_13(%arg0: i32, %arg1: i32) -> (i32, i32) {
    %c0_i32 = arith.constant 0 : i32
    %c0_i32_0 = arith.constant 0 : i32
    %c0_i32_1 = arith.constant 0 : i32
    return %c0_i32, %c0_i32_0 : i32, i32
  }
  func.func @transform_14(%arg0: i32, %arg1: i32) -> (i32, i32, i32) {
    %c0_i32 = arith.constant 0 : i32
    %c0_i32_0 = arith.constant 0 : i32
    return %arg0, %arg1, %c0_i32 : i32, i32, i32
  }
  func.func @transform_15(%arg0: i32, %arg1: i32) -> (i32, i32, i32, i32) {
    %c0_i32 = arith.constant 0 : i32
    %c0_i32_0 = arith.constant 0 : i32
    %c0_i32_1 = arith.constant 0 : i32
    return %arg0, %c0_i32, %arg1, %c0_i32_0 : i32, i32, i32, i32
  }
}

</mosaic_0001>

<llo_original>
// kernel: tpu_custom_call.1
$region0: #{tpu_custom_call.1}
  #allocation0 [shape = 'u32[]', space=smem, size = 0x4, offset = 0x4, fixed_abs, tag = 'smem constant byte address 0x4 - core index']
  #allocation1 [shape = 'u32[144,128]{1,0:T(1,128)}', space=vmem, size = 0x12000, scoped, tag = 'internal scratch']
  %s0 = inlined_call_operand.hbm [shape: bf16[2,8,32], index: 0, kind: input, shape index: {}]
  %s1 = inlined_call_operand.vmem [shape: bf16[2,12,32], index: 1, kind: input, shape index: {}]
  %s2 = inlined_call_operand.hbm [shape: f32[2,1,8], index: 2, kind: input, shape index: {}]
  %s3 = inlined_call_operand.hbm [shape: f32[2,1,12], index: 3, kind: input, shape index: {}]
  %s4 = inlined_call_operand.vmem [shape: bf16[32,32], index: 4, kind: input, shape index: {}]
  %s5 = inlined_call_operand.vmem [shape: bf16[32,64], index: 5, kind: input, shape index: {}]
  %s6 = inlined_call_operand.vmem [shape: bf16[32,32], index: 6, kind: input, shape index: {}]
  %s7 = inlined_call_operand.vmem [shape: bf16[32,32], index: 7, kind: input, shape index: {}]
  %s8 = inlined_call_operand.vmem [shape: bf16[32,64], index: 8, kind: input, shape index: {}]
  %s9 = inlined_call_operand.hbm [shape: bf16[32,32], index: 9, kind: input, shape index: {}]
  %s10 = inlined_call_operand.hbm [shape: bf16[32,64], index: 10, kind: input, shape index: {}]
  %s11 = inlined_call_operand.vmem [shape: bf16[64,32], index: 11, kind: input, shape index: {}]
  %s12 = inlined_call_operand.vmem [shape: f32[16,32], index: 12, kind: input, shape index: {}]
  %s13 = inlined_call_operand.vmem [shape: f32[1,64], index: 13, kind: input, shape index: {}]
  %s14 = inlined_call_operand.hbm [shape: f32[2,8,32], index: 14, kind: output, shape index: {0}]
  %s15 = inlined_call_operand.hbm [shape: f32[2,4,8,12], index: 15, kind: output, shape index: {1}]
  %16 = xla_tuple %s14, %s15
  %s17 = sld [smem:[#allocation0]]
  $region117: #{tpu_custom_call.1} parent=0
    _
  %s19 = ssub.s32 1, %s17
  %s20 = scalar_select 0, %s19, %s17
  $region1: #{tpu_custom_call.1} parent=0
    #allocation2 [shape = 'u8[4096]{0}', space=vmem, size = 0x1000, scoped, tag = 'input window, operand 0']
    #allocation3 [shape = 's32[2]{0}', space=sflag, size = 0x8, scoped, tag = 'scoped memory for tpu_custom_call.1']
    #allocation4 [shape = 's32[2]{0}', space=sflag, size = 0x8, scoped, tag = 'scoped memory for tpu_custom_call.1']
    #allocation5 [shape = 'u8[1024]{0}', space=vmem, size = 0x400, scoped, tag = 'input window, operand 2']
    #allocation6 [shape = 's32[2]{0}', space=sflag, size = 0x8, scoped, tag = 'scoped memory for tpu_custom_call.1']
    #allocation7 [shape = 'u8[1024]{0}', space=vmem, size = 0x400, scoped, tag = 'input window, operand 3']
    #allocation8 [shape = 'u8[8192]{0}', space=vmem, size = 0x2000, scoped, tag = 'input window, operand 9, single buffered']
    #allocation9 [shape = 's32[1]{0}', space=sflag, size = 0x4, scoped, tag = 'scoped memory for tpu_custom_call.1']
    #allocation10 [shape = 'u8[8192]{0}', space=vmem, size = 0x2000, scoped, tag = 'input window, operand 10, single buffered']
    #allocation11 [shape = 'u8[8192]{0}', space=vmem, size = 0x2000, scoped, tag = 'output window, operand 0']
    #allocation12 [shape = 'u8[32768]{0}', space=vmem, size = 0x8000, scoped, tag = 'output window, operand 1']
    #allocation13 [shape = 's32[2]{0}', space=sflag, size = 0x8, scoped, tag = 'scoped memory for tpu_custom_call.1']
    %21 = vsyncpa [#allocation3], 0
    %s22 = scalar_lea.sflag [#allocation3], 1
    %23 = vsyncpa %s22, 0
    %24 = vsyncpa [#allocation6], 0
    %s25 = scalar_lea.sflag [#allocation6], 1
    %26 = vsyncpa %s25, 0
    %27 = vsyncpa [#allocation9], 0
    %28 = vsyncpa [#allocation4], 0
    %s29 = scalar_lea.sflag [#allocation4], 1
    %30 = vsyncpa %s29, 0
    %31 = vsyncpa [#allocation13], 0
    %s32 = scalar_lea.sflag [#allocation13], 1
    %33 = vsyncpa %s32, 0
    loop: start=0, step=1, limit=4
    $region2: #{tpu_custom_call.1} parent=1 // loop_pre_header
      _
    $region3: #{tpu_custom_call.1} parent=1 // loop_header
      %s35 = sphi 0, %s39
      %p36 = scmp.ge.s32.totalorder %s35, 4
      %s42 = sphi 0, %s54
      %s43 = sphi 0, %s50
      %s44 = sphi 0, %s42
      %s45 = sphi 0, %s43
      %s46 = sphi 0, %s44
      %s47 = sphi 0, %s45
      %s57 = sphi 0, %s59
      %s60 = sphi 0, %s57
      %s61 = sphi 0, %s60
      %s77 = sphi 0, %s61
      %s83 = sphi 0, %s85
      %s86 = sphi 0, %s83
      %s87 = sphi 0, %s86
      %s103 = sphi 0, %s87
      %s109 = sphi 0, %s111
      %s112 = sphi 0, %s109
      %s113 = sphi 0, %s112
      %s129 = sphi 0, %s113
      %s135 = sphi 0, %s137
      %s138 = sphi 0, %s135
      %s139 = sphi 0, %s138
      %s155 = sphi 0, %s139
      %s159 = sphi 0, %s159
      %s161 = sphi 0, %s159
      %s162 = sphi 0, %s161
      %s176 = sphi 0, %s162
      %s180 = sphi 0, %s180
      %s182 = sphi 0, %s180
      %s183 = sphi 0, %s182
      %s197 = sphi 0, %s183
      %s201 = sphi 0, %s201
      %s203 = sphi 0, %s201
      %s204 = sphi 0, %s203
      %s218 = sphi 0, %s204
      %s222 = sphi 0, %s222
      %s224 = sphi 0, %s222
      %s225 = sphi 0, %s224
      %s239 = sphi 0, %s225
      %s243 = sphi 0, %s243
      %s245 = sphi 0, %s243
      %s246 = sphi 0, %s245
      %s260 = sphi 0, %s246
      %s264 = sphi 0, %s264
      %s266 = sphi 0, %s264
      %s267 = sphi 0, %s266
      %s281 = sphi 0, %s267
      %s285 = sphi 0, %s285
      %s287 = sphi 0, %s285
      %s288 = sphi 0, %s287
      %s302 = sphi 0, %s288
      %s306 = sphi 0, %s306
      %s308 = sphi 0, %s306
      %s309 = sphi 0, %s308
      %s323 = sphi 0, %s309
      %s327 = sphi 0, %s327
      %s329 = sphi 0, %s327
      %s330 = sphi 0, %s329
      %s344 = sphi 0, %s330
      %s348 = sphi 0, %s348
      %s350 = sphi 0, %s348
      %s351 = sphi 0, %s350
      %s365 = sphi 0, %s351
      %s373 = sphi 0, %s375
      %s376 = sphi 0, %s373
      %s377 = sphi 0, %s376
      %s393 = sphi 0, %s377
      %s401 = sphi 0, %s403
      %s404 = sphi 0, %s401
      %s405 = sphi 0, %s404
      %s421 = sphi 0, %s405
    $region4: #{tpu_custom_call.1} parent=1 // loop_header_branch
      %38 = sbr.rel (%p36) target = $region8
    $region5: #{tpu_custom_call.1} parent=1 // loop_body
      %s40 = ssub.s32 %s35, 1
      %s41 = ssub.s32 %s35, 2
      %s48 = sadd.s32 1, %s43
      %p49 = scmp.ge.s32.totalorder %s48, 1
      %s50 = scalar_select %p49, 0, %s48
      %s51 = sadd.s32 1, %s42
      %s52 = scalar_select %p49, %s51, %s42
      %p53 = scmp.ge.s32.totalorder %s52, 2
      %s54 = scalar_select %p53, 0, %s52
      %s55 = ssub.s32 %s42, %s54
      %p56 = scmp.eq.s32.totalorder %s55, 0
      %s58 = sadd.s32 %s57, 1
      %s59 = scalar_select %p56, %s57, %s58
      %p62 = pneg %p56
      %p63 = scmp.eq.s32.totalorder %s35, 1
      %p64 = por %p62, %p63
      %p65 = scmp.ne.s32.totalorder %s57, %s60
      %p66 = scmp.eq.s32.totalorder %s35, 0
      %p67 = por %p65, %p66
      %p68 = scmp.ne.s32.totalorder %s57, %s60
      %p69 = scmp.eq.s32.totalorder %s40, 1
      %p70 = por %p68, %p69
      %p71 = scmp.ne.s32.totalorder %s60, %s61
      %p72 = scmp.eq.s32.totalorder %s40, 0
      %p73 = por %p71, %p72
      %p74 = scmp.ne.s32.totalorder %s60, %s61
      %p75 = scmp.eq.s32.totalorder %s41, 1
      %p76 = por %p74, %p75
      %p78 = scmp.ne.s32.totalorder %s61, %s77
      %p79 = scmp.eq.s32.totalorder %s41, 0
      %p80 = por %p78, %p79
      %s81 = ssub.s32 %s42, %s54
      %p82 = scmp.eq.s32.totalorder %s81, 0
      %s84 = sadd.s32 %s83, 1
      %s85 = scalar_select %p82, %s83, %s84
      %p88 = pneg %p82
      %p89 = scmp.eq.s32.totalorder %s35, 1
      %p90 = por %p88, %p89
      %p91 = scmp.ne.s32.totalorder %s83, %s86
      %p92 = scmp.eq.s32.totalorder %s35, 0
      %p93 = por %p91, %p92
      %p94 = scmp.ne.s32.totalorder %s83, %s86
      %p95 = scmp.eq.s32.totalorder %s40, 1
      %p96 = por %p94, %p95
      %p97 = scmp.ne.s32.totalorder %s86, %s87
      %p98 = scmp.eq.s32.totalorder %s40, 0
      %p99 = por %p97, %p98
      %p100 = scmp.ne.s32.totalorder %s86, %s87
      %p101 = scmp.eq.s32.totalorder %s41, 1
      %p102 = por %p100, %p101
      %p104 = scmp.ne.s32.totalorder %s87, %s103
      %p105 = scmp.eq.s32.totalorder %s41, 0
      %p106 = por %p104, %p105
      %s107 = ssub.s32 %s42, %s54
      %p108 = scmp.eq.s32.totalorder %s107, 0
      %s110 = sadd.s32 %s109, 1
      %s111 = scalar_select %p108, %s109, %s110
      %p114 = pneg %p108
      %p115 = scmp.eq.s32.totalorder %s35, 1
      %p116 = por %p114, %p115
      %p117 = scmp.ne.s32.totalorder %s109, %s112
      %p118 = scmp.eq.s32.totalorder %s35, 0
      %p119 = por %p117, %p118
      %p120 = scmp.ne.s32.totalorder %s109, %s112
      %p121 = scmp.eq.s32.totalorder %s40, 1
      %p122 = por %p120, %p121
      %p123 = scmp.ne.s32.totalorder %s112, %s113
      %p124 = scmp.eq.s32.totalorder %s40, 0
      %p125 = por %p123, %p124
      %p126 = scmp.ne.s32.totalorder %s112, %s113
      %p127 = scmp.eq.s32.totalorder %s41, 1
      %p128 = por %p126, %p127
      %p130 = scmp.ne.s32.totalorder %s113, %s129
      %p131 = scmp.eq.s32.totalorder %s41, 0
      %p132 = por %p130, %p131
      %s133 = ssub.s32 %s42, %s54
      %p134 = scmp.eq.s32.totalorder %s133, 0
      %s136 = sadd.s32 %s135, 1
      %s137 = scalar_select %p134, %s135, %s136
      %p140 = pneg %p134
      %p141 = scmp.eq.s32.totalorder %s35, 1
      %p142 = por %p140, %p141
      %p143 = scmp.ne.s32.totalorder %s135, %s138
      %p144 = scmp.eq.s32.totalorder %s35, 0
      %p145 = por %p143, %p144
      %p146 = scmp.ne.s32.totalorder %s135, %s138
      %p147 = scmp.eq.s32.totalorder %s40, 1
      %p148 = por %p146, %p147
      %p149 = scmp.ne.s32.totalorder %s138, %s139
      %p150 = scmp.eq.s32.totalorder %s40, 0
      %p151 = por %p149, %p150
      %p152 = scmp.ne.s32.totalorder %s138, %s139
      %p153 = scmp.eq.s32.totalorder %s41, 1
      %p154 = por %p152, %p153
      %p156 = scmp.ne.s32.totalorder %s139, %s155
      %p157 = scmp.eq.s32.totalorder %s41, 0
      %p158 = por %p156, %p157
      %s160 = sadd.s32 %s159, 1
      %p163 = scmp.eq.s32.totalorder %s35, 1
      %p164 = scmp.ne.s32.totalorder %s159, %s161
      %p165 = scmp.eq.s32.totalorder %s35, 0
      %p166 = por %p164, %p165
      %p167 = scmp.ne.s32.totalorder %s159, %s161
      %p168 = scmp.eq.s32.totalorder %s40, 1
      %p169 = por %p167, %p168
      %p170 = scmp.ne.s32.totalorder %s161, %s162
      %p171 = scmp.eq.s32.totalorder %s40, 0
      %p172 = por %p170, %p171
      %p173 = scmp.ne.s32.totalorder %s161, %s162
      %p174 = scmp.eq.s32.totalorder %s41, 1
      %p175 = por %p173, %p174
      %p177 = scmp.ne.s32.totalorder %s162, %s176
      %p178 = scmp.eq.s32.totalorder %s41, 0
      %p179 = por %p177, %p178
      %s181 = sadd.s32 %s180, 1
      %p184 = scmp.eq.s32.totalorder %s35, 1
      %p185 = scmp.ne.s32.totalorder %s180, %s182
      %p186 = scmp.eq.s32.totalorder %s35, 0
      %p187 = por %p185, %p186
      %p188 = scmp.ne.s32.totalorder %s180, %s182
      %p189 = scmp.eq.s32.totalorder %s40, 1
      %p190 = por %p188, %p189
      %p191 = scmp.ne.s32.totalorder %s182, %s183
      %p192 = scmp.eq.s32.totalorder %s40, 0
      %p193 = por %p191, %p192
      %p194 = scmp.ne.s32.totalorder %s182, %s183
      %p195 = scmp.eq.s32.totalorder %s41, 1
      %p196 = por %p194, %p195
      %p198 = scmp.ne.s32.totalorder %s183, %s197
      %p199 = scmp.eq.s32.totalorder %s41, 0
      %p200 = por %p198, %p199
      %s202 = sadd.s32 %s201, 1
      %p205 = scmp.eq.s32.totalorder %s35, 1
      %p206 = scmp.ne.s32.totalorder %s201, %s203
      %p207 = scmp.eq.s32.totalorder %s35, 0
      %p208 = por %p206, %p207
      %p209 = scmp.ne.s32.totalorder %s201, %s203
      %p210 = scmp.eq.s32.totalorder %s40, 1
      %p211 = por %p209, %p210
      %p212 = scmp.ne.s32.totalorder %s203, %s204
      %p213 = scmp.eq.s32.totalorder %s40, 0
      %p214 = por %p212, %p213
      %p215 = scmp.ne.s32.totalorder %s203, %s204
      %p216 = scmp.eq.s32.totalorder %s41, 1
      %p217 = por %p215, %p216
      %p219 = scmp.ne.s32.totalorder %s204, %s218
      %p220 = scmp.eq.s32.totalorder %s41, 0
      %p221 = por %p219, %p220
      %s223 = sadd.s32 %s222, 1
      %p226 = scmp.eq.s32.totalorder %s35, 1
      %p227 = scmp.ne.s32.totalorder %s222, %s224
      %p228 = scmp.eq.s32.totalorder %s35, 0
      %p229 = por %p227, %p228
      %p230 = scmp.ne.s32.totalorder %s222, %s224
      %p231 = scmp.eq.s32.totalorder %s40, 1
      %p232 = por %p230, %p231
      %p233 = scmp.ne.s32.totalorder %s224, %s225
      %p234 = scmp.eq.s32.totalorder %s40, 0
      %p235 = por %p233, %p234
      %p236 = scmp.ne.s32.totalorder %s224, %s225
      %p237 = scmp.eq.s32.totalorder %s41, 1
      %p238 = por %p236, %p237
      %p240 = scmp.ne.s32.totalorder %s225, %s239
      %p241 = scmp.eq.s32.totalorder %s41, 0
      %p242 = por %p240, %p241
      %s244 = sadd.s32 %s243, 1
      %p247 = scmp.eq.s32.totalorder %s35, 1
      %p248 = scmp.ne.s32.totalorder %s243, %s245
      %p249 = scmp.eq.s32.totalorder %s35, 0
      %p250 = por %p248, %p249
      %p251 = scmp.ne.s32.totalorder %s243, %s245
      %p252 = scmp.eq.s32.totalorder %s40, 1
      %p253 = por %p251, %p252
      %p254 = scmp.ne.s32.totalorder %s245, %s246
      %p255 = scmp.eq.s32.totalorder %s40, 0
      %p256 = por %p254, %p255
      %p257 = scmp.ne.s32.totalorder %s245, %s246
      %p258 = scmp.eq.s32.totalorder %s41, 1
      %p259 = por %p257, %p258
      %p261 = scmp.ne.s32.totalorder %s246, %s260
      %p262 = scmp.eq.s32.totalorder %s41, 0
      %p263 = por %p261, %p262
      %s265 = sadd.s32 %s264, 1
      %p268 = scmp.eq.s32.totalorder %s35, 1
      %p269 = scmp.ne.s32.totalorder %s264, %s266
      %p270 = scmp.eq.s32.totalorder %s35, 0
      %p271 = por %p269, %p270
      %p272 = scmp.ne.s32.totalorder %s264, %s266
      %p273 = scmp.eq.s32.totalorder %s40, 1
      %p274 = por %p272, %p273
      %p275 = scmp.ne.s32.totalorder %s266, %s267
      %p276 = scmp.eq.s32.totalorder %s40, 0
      %p277 = por %p275, %p276
      %p278 = scmp.ne.s32.totalorder %s266, %s267
      %p279 = scmp.eq.s32.totalorder %s41, 1
      %p280 = por %p278, %p279
      %p282 = scmp.ne.s32.totalorder %s267, %s281
      %p283 = scmp.eq.s32.totalorder %s41, 0
      %p284 = por %p282, %p283
      %s286 = sadd.s32 %s285, 1
      %p289 = scmp.eq.s32.totalorder %s35, 1
      %p290 = scmp.ne.s32.totalorder %s285, %s287
      %p291 = scmp.eq.s32.totalorder %s35, 0
      %p292 = por %p290, %p291
      %p293 = scmp.ne.s32.totalorder %s285, %s287
      %p294 = scmp.eq.s32.totalorder %s40, 1
      %p295 = por %p293, %p294
      %p296 = scmp.ne.s32.totalorder %s287, %s288
      %p297 = scmp.eq.s32.totalorder %s40, 0
      %p298 = por %p296, %p297
      %p299 = scmp.ne.s32.totalorder %s287, %s288
      %p300 = scmp.eq.s32.totalorder %s41, 1
      %p301 = por %p299, %p300
      %p303 = scmp.ne.s32.totalorder %s288, %s302
      %p304 = scmp.eq.s32.totalorder %s41, 0
      %p305 = por %p303, %p304
      %s307 = sadd.s32 %s306, 1
      %p310 = scmp.eq.s32.totalorder %s35, 1
      %p311 = scmp.ne.s32.totalorder %s306, %s308
      %p312 = scmp.eq.s32.totalorder %s35, 0
      %p313 = por %p311, %p312
      %p314 = scmp.ne.s32.totalorder %s306, %s308
      %p315 = scmp.eq.s32.totalorder %s40, 1
      %p316 = por %p314, %p315
      %p317 = scmp.ne.s32.totalorder %s308, %s309
      %p318 = scmp.eq.s32.totalorder %s40, 0
      %p319 = por %p317, %p318
      %p320 = scmp.ne.s32.totalorder %s308, %s309
      %p321 = scmp.eq.s32.totalorder %s41, 1
      %p322 = por %p320, %p321
      %p324 = scmp.ne.s32.totalorder %s309, %s323
      %p325 = scmp.eq.s32.totalorder %s41, 0
      %p326 = por %p324, %p325
      %s328 = sadd.s32 %s327, 1
      %p331 = scmp.eq.s32.totalorder %s35, 1
      %p332 = scmp.ne.s32.totalorder %s327, %s329
      %p333 = scmp.eq.s32.totalorder %s35, 0
      %p334 = por %p332, %p333
      %p335 = scmp.ne.s32.totalorder %s327, %s329
      %p336 = scmp.eq.s32.totalorder %s40, 1
      %p337 = por %p335, %p336
      %p338 = scmp.ne.s32.totalorder %s329, %s330
      %p339 = scmp.eq.s32.totalorder %s40, 0
      %p340 = por %p338, %p339
      %p341 = scmp.ne.s32.totalorder %s329, %s330
      %p342 = scmp.eq.s32.totalorder %s41, 1
      %p343 = por %p341, %p342
      %p345 = scmp.ne.s32.totalorder %s330, %s344
      %p346 = scmp.eq.s32.totalorder %s41, 0
      %p347 = por %p345, %p346
      %s349 = sadd.s32 %s348, 1
      %p352 = scmp.eq.s32.totalorder %s35, 1
      %p353 = scmp.ne.s32.totalorder %s348, %s350
      %p354 = scmp.eq.s32.totalorder %s35, 0
      %p355 = por %p353, %p354
      %p356 = scmp.ne.s32.totalorder %s348, %s350
      %p357 = scmp.eq.s32.totalorder %s40, 1
      %p358 = por %p356, %p357
      %p359 = scmp.ne.s32.totalorder %s350, %s351
      %p360 = scmp.eq.s32.totalorder %s40, 0
      %p361 = por %p359, %p360
      %p362 = scmp.ne.s32.totalorder %s350, %s351
      %p363 = scmp.eq.s32.totalorder %s41, 1
      %p364 = por %p362, %p363
      %p366 = scmp.ne.s32.totalorder %s351, %s365
      %p367 = scmp.eq.s32.totalorder %s41, 0
      %p368 = por %p366, %p367
      %s369 = ssub.s32 %s42, %s54
      %s370 = ssub.s32 %s43, %s50
      %s371 = sor.u32 %s369, %s370
      %p372 = scmp.eq.s32.totalorder %s371, 0
      %s374 = sadd.s32 %s373, 1
      %s375 = scalar_select %p372, %s373, %s374
      %p378 = pneg %p372
      %p379 = scmp.eq.s32.totalorder %s35, 1
      %p380 = por %p378, %p379
      %p381 = scmp.ne.s32.totalorder %s373, %s376
      %p382 = scmp.eq.s32.totalorder %s35, 0
      %p383 = por %p381, %p382
      %p384 = scmp.ne.s32.totalorder %s373, %s376
      %p385 = scmp.eq.s32.totalorder %s40, 1
      %p386 = por %p384, %p385
      %p387 = scmp.ne.s32.totalorder %s376, %s377
      %p388 = scmp.eq.s32.totalorder %s40, 0
      %p389 = por %p387, %p388
      %p390 = scmp.ne.s32.totalorder %s376, %s377
      %p391 = scmp.eq.s32.totalorder %s41, 1
      %p392 = por %p390, %p391
      %p394 = scmp.ne.s32.totalorder %s377, %s393
      %p395 = scmp.eq.s32.totalorder %s41, 0
      %p396 = por %p394, %p395
      %s397 = ssub.s32 %s42, %s54
      %s398 = ssub.s32 %s43, %s50
      %s399 = sor.u32 %s397, %s398
      %p400 = scmp.eq.s32.totalorder %s399, 0
      %s402 = sadd.s32 %s401, 1
      %s403 = scalar_select %p400, %s401, %s402
      %p406 = pneg %p400
      %p407 = scmp.eq.s32.totalorder %s35, 1
      %p408 = por %p406, %p407
      %p409 = scmp.ne.s32.totalorder %s401, %s404
      %p410 = scmp.eq.s32.totalorder %s35, 0
      %p411 = por %p409, %p410
      %p412 = scmp.ne.s32.totalorder %s401, %s404
      %p413 = scmp.eq.s32.totalorder %s40, 1
      %p414 = por %p412, %p413
      %p415 = scmp.ne.s32.totalorder %s404, %s405
      %p416 = scmp.eq.s32.totalorder %s40, 0
      %p417 = por %p415, %p416
      %p418 = scmp.ne.s32.totalorder %s404, %s405
      %p419 = scmp.eq.s32.totalorder %s41, 1
      %p420 = por %p418, %p419
      %p422 = scmp.ne.s32.totalorder %s405, %s421
      %p423 = scmp.eq.s32.totalorder %s41, 0
      %p424 = por %p422, %p423
      %p425 = scmp.le.s32.totalorder 1, %s35
      %p426 = scmp.lt.s32.totalorder %s35, 3
      %p427 = pnand %p425, %p426
      %p428 = pneg %p427
      // Predicated region
      $region9: #{tpu_custom_call.1} parent=5 // pred_check
        _
      $region10: #{tpu_custom_call.1} parent=5 // pred_check_branch
        %430 = sbr.rel (%p427) target = $region12
      $region11: #{tpu_custom_call.1} parent=5 // pred_region
        %s431 = ssub.s32 %s35, 1
        // Predicated region
        $region13: #{tpu_custom_call.1} parent=11 // pred_check
          %p432 = pneg %p172
        $region14: #{tpu_custom_call.1} parent=11 // pred_check_branch
          %434 = sbr.rel (%p432) target = $region16
        $region15: #{tpu_custom_call.1} parent=11 // pred_region
          _
        $region16: #{tpu_custom_call.1} parent=11 // pred_fallthru
          _
        // Predicated region
        $region17: #{tpu_custom_call.1} parent=11 // pred_check
          %p435 = pneg %p193
        $region18: #{tpu_custom_call.1} parent=11 // pred_check_branch
          %437 = sbr.rel (%p435) target = $region20
        $region19: #{tpu_custom_call.1} parent=11 // pred_region
          _
        $region20: #{tpu_custom_call.1} parent=11 // pred_fallthru
          _
        // Predicated region
        $region21: #{tpu_custom_call.1} parent=11 // pred_check
          %p438 = pneg %p214
        $region22: #{tpu_custom_call.1} parent=11 // pred_check_branch
          %440 = sbr.rel (%p438) target = $region24
        $region23: #{tpu_custom_call.1} parent=11 // pred_region
          _
        $region24: #{tpu_custom_call.1} parent=11 // pred_fallthru
          _
        // Predicated region
        $region25: #{tpu_custom_call.1} parent=11 // pred_check
          %p441 = pneg %p235
        $region26: #{tpu_custom_call.1} parent=11 // pred_check_branch
          %443 = sbr.rel (%p441) target = $region28
        $region27: #{tpu_custom_call.1} parent=11 // pred_region
          _
        $region28: #{tpu_custom_call.1} parent=11 // pred_fallthru
          _
        // Predicated region
        $region29: #{tpu_custom_call.1} parent=11 // pred_check
          %p444 = pneg %p256
        $region30: #{tpu_custom_call.1} parent=11 // pred_check_branch
          %446 = sbr.rel (%p444) target = $region32
        $region31: #{tpu_custom_call.1} parent=11 // pred_region
          _
        $region32: #{tpu_custom_call.1} parent=11 // pred_fallthru
          _
        // Predicated region
        $region33: #{tpu_custom_call.1} parent=11 // pred_check
          %p447 = pneg %p277
        $region34: #{tpu_custom_call.1} parent=11 // pred_check_branch
          %449 = sbr.rel (%p447) target = $region36
        $region35: #{tpu_custom_call.1} parent=11 // pred_region
          %s451 = ssub.s32 256, 256
          %452 = vsyncadd [#allocation9], %s451
          %s453 = sshll.u32 [#allocation8], 4
          %s454 = int_to_ptr.vmem [resolvable:$true] %s453
          %459 = dma.hbm_to_vmem [thread:$0]  %s9, 256, %s454, [#allocation9], 64, 64, 4
        $region36: #{tpu_custom_call.1} parent=11 // pred_fallthru
          _
        // Predicated region
        $region37: #{tpu_custom_call.1} parent=11 // pred_check
          %p460 = pneg %p298
        $region38: #{tpu_custom_call.1} parent=11 // pred_check_branch
          %462 = sbr.rel (%p460) target = $region40
        $region39: #{tpu_custom_call.1} parent=11 // pred_region
          %s464 = ssub.s32 256, 256
          %465 = vsyncadd [#allocation9], %s464
          %s466 = sshll.u32 [#allocation10], 4
          %s467 = int_to_ptr.vmem [resolvable:$true] %s466
          %472 = dma.hbm_to_vmem [thread:$0]  %s10, 256, %s467, [#allocation9], 64, 64, 4
        $region40: #{tpu_custom_call.1} parent=11 // pred_fallthru
          _
        // Predicated region
        $region41: #{tpu_custom_call.1} parent=11 // pred_check
          %p473 = pneg %p319
        $region42: #{tpu_custom_call.1} parent=11 // pred_check_branch
          %475 = sbr.rel (%p473) target = $region44
        $region43: #{tpu_custom_call.1} parent=11 // pred_region
          _
        $region44: #{tpu_custom_call.1} parent=11 // pred_fallthru
          _
        // Predicated region
        $region45: #{tpu_custom_call.1} parent=11 // pred_check
          %p476 = pneg %p340
        $region46: #{tpu_custom_call.1} parent=11 // pred_check_branch
          %478 = sbr.rel (%p476) target = $region48
        $region47: #{tpu_custom_call.1} parent=11 // pred_region
          _
        $region48: #{tpu_custom_call.1} parent=11 // pred_fallthru
          _
        // Predicated region
        $region49: #{tpu_custom_call.1} parent=11 // pred_check
          %p479 = pneg %p361
        $region50: #{tpu_custom_call.1} parent=11 // pred_check_branch
          %481 = sbr.rel (%p479) target = $region52
        $region51: #{tpu_custom_call.1} parent=11 // pred_region
          _
        $region52: #{tpu_custom_call.1} parent=11 // pred_fallthru
          _
      $region12: #{tpu_custom_call.1} parent=5 // pred_fallthru
        _
      %p482 = scmp.lt.s32.totalorder %s35, 2
      // Predicated region
      $region53: #{tpu_custom_call.1} parent=5 // pred_check
        %p483 = pneg %p482
      $region54: #{tpu_custom_call.1} parent=5 // pred_check_branch
        %485 = sbr.rel (%p483) target = $region56
      $region55: #{tpu_custom_call.1} parent=5 // pred_region
        // Predicated region
        $region57: #{tpu_custom_call.1} parent=55 // pred_check
          %p486 = pneg %p67
        $region58: #{tpu_custom_call.1} parent=55 // pred_check_branch
          %488 = sbr.rel (%p486) target = $region60
        $region59: #{tpu_custom_call.1} parent=55 // pred_region
          %s489 = sand.u32 %s57, 1
          %s490 = scalar_lea.sflag [#allocation3], %s489
          %s491 = sand.u32 %s57, 1
          %s492 = smul.addr %s491, 4
          %s493 = scalar_lea.vmem [#allocation2], %s492
          %s495 = ssub.s32 64, 64
          %496 = vsyncadd %s490, %s495
          %s497 = smul.addr %s42, 64
          %s498 = scalar_lea.hbm %s0, %s497
          %s500 = sshll.u32 %s493, 4
          %s501 = int_to_ptr.vmem [resolvable:$true] %s500
          %503 = dma.hbm_to_vmem [thread:$0]  %s498, 64, %s501, %s490
        $region60: #{tpu_custom_call.1} parent=55 // pred_fallthru
          _
        // Predicated region
        $region61: #{tpu_custom_call.1} parent=55 // pred_check
          %p504 = pneg %p93
        $region62: #{tpu_custom_call.1} parent=55 // pred_check_branch
          %506 = sbr.rel (%p504) target = $region64
        $region63: #{tpu_custom_call.1} parent=55 // pred_region
          %p507 = scmp.lt.s32.totalorder %s42, 1
          %s508 = scalar_select %p507, %s42, 1
          %s509 = smul.addr %s508, 2
          %s510 = smul.addr %s509, 4
          %s511 = scalar_lea.vmem %s1, %s510
        $region64: #{tpu_custom_call.1} parent=55 // pred_fallthru
          _
        // Predicated region
        $region65: #{tpu_custom_call.1} parent=55 // pred_check
          %p512 = pneg %p119
        $region66: #{tpu_custom_call.1} parent=55 // pred_check_branch
          %514 = sbr.rel (%p512) target = $region68
        $region67: #{tpu_custom_call.1} parent=55 // pred_region
          %s515 = sand.u32 %s35, 1
          %s516 = scalar_lea.sflag [#allocation6], %s515
          %s517 = sand.u32 %s109, 1
          %s518 = scalar_lea.vmem [#allocation5], %s517
          %s520 = ssub.s32 16, 16
          %521 = vsyncadd %s516, %s520
          %s522 = smul.addr %s42, 16
          %s523 = scalar_lea.hbm %s2, %s522
          %s525 = sshll.u32 %s518, 4
          %s526 = int_to_ptr.vmem [resolvable:$true] %s525
          %528 = dma.hbm_to_vmem [thread:$0]  %s523, 16, %s526, %s516
        $region68: #{tpu_custom_call.1} parent=55 // pred_fallthru
          _
        // Predicated region
        $region69: #{tpu_custom_call.1} parent=55 // pred_check
          %p529 = pneg %p145
        $region70: #{tpu_custom_call.1} parent=55 // pred_check_branch
          %531 = sbr.rel (%p529) target = $region72
        $region71: #{tpu_custom_call.1} parent=55 // pred_region
          %s532 = sand.u32 %s35, 1
          %s533 = scalar_lea.sflag [#allocation6], %s532
          %s534 = sand.u32 %s135, 1
          %s535 = scalar_lea.vmem [#allocation7], %s534
          %s537 = ssub.s32 16, 16
          %538 = vsyncadd %s533, %s537
          %s539 = smul.addr %s42, 16
          %s540 = scalar_lea.hbm %s3, %s539
          %s542 = sshll.u32 %s535, 4
          %s543 = int_to_ptr.vmem [resolvable:$true] %s542
          %545 = dma.hbm_to_vmem [thread:$0]  %s540, 16, %s543, %s533
        $region72: #{tpu_custom_call.1} parent=55 // pred_fallthru
          _
      $region56: #{tpu_custom_call.1} parent=5 // pred_fallthru
        _
      %p546 = scmp.le.s32.totalorder 1, %s35
      %p547 = scmp.lt.s32.totalorder %s35, 3
      %p548 = pnand %p546, %p547
      %p549 = pneg %p548
      // Predicated region
      $region73: #{tpu_custom_call.1} parent=5 // pred_check
        _
      $region74: #{tpu_custom_call.1} parent=5 // pred_check_branch
        %551 = sbr.rel (%p548) target = $region76
      $region75: #{tpu_custom_call.1} parent=5 // pred_region
        %s552 = ssub.s32 %s35, 1
        %s553 = sand.u32 %s60, 1
        %s554 = scalar_lea.sflag [#allocation3], %s553
        %s555 = sand.u32 %s60, 1
        %s556 = smul.addr %s555, 4
        %s557 = scalar_lea.vmem [#allocation2], %s556
        // Predicated region
        $region77: #{tpu_custom_call.1} parent=75 // pred_check
          %p558 = pneg %p73
        $region78: #{tpu_custom_call.1} parent=75 // pred_check_branch
          %560 = sbr.rel (%p558) target = $region80
        $region79: #{tpu_custom_call.1} parent=75 // pred_region
          %561 = dma.done %s554, 64
        $region80: #{tpu_custom_call.1} parent=75 // pred_fallthru
          _
        %s562 = sand.u32 %s40, 1
        %s563 = scalar_lea.sflag [#allocation6], %s562
        %s564 = sand.u32 %s112, 1
        %s565 = scalar_lea.vmem [#allocation5], %s564
        // Predicated region
        $region81: #{tpu_custom_call.1} parent=75 // pred_check
          %p566 = pneg %p125
        $region82: #{tpu_custom_call.1} parent=75 // pred_check_branch
          %568 = sbr.rel (%p566) target = $region84
        $region83: #{tpu_custom_call.1} parent=75 // pred_region
          %569 = dma.done %s563, 16
        $region84: #{tpu_custom_call.1} parent=75 // pred_fallthru
          _
        %s570 = sand.u32 %s40, 1
        %s571 = scalar_lea.sflag [#allocation6], %s570
        %s572 = sand.u32 %s138, 1
        %s573 = scalar_lea.vmem [#allocation7], %s572
        // Predicated region
        $region85: #{tpu_custom_call.1} parent=75 // pred_check
          %p574 = pneg %p151
        $region86: #{tpu_custom_call.1} parent=75 // pred_check_branch
          %576 = sbr.rel (%p574) target = $region88
        $region87: #{tpu_custom_call.1} parent=75 // pred_region
          %577 = dma.done %s571, 16
        $region88: #{tpu_custom_call.1} parent=75 // pred_fallthru
          _
        // Predicated region
        $region89: #{tpu_custom_call.1} parent=75 // pred_check
          %p578 = pneg %p277
        $region90: #{tpu_custom_call.1} parent=75 // pred_check_branch
          %580 = sbr.rel (%p578) target = $region92
        $region91: #{tpu_custom_call.1} parent=75 // pred_region
          %581 = dma.done [#allocation9], 256
        $region92: #{tpu_custom_call.1} parent=75 // pred_fallthru
          _
        // Predicated region
        $region93: #{tpu_custom_call.1} parent=75 // pred_check
          %p582 = pneg %p298
        $region94: #{tpu_custom_call.1} parent=75 // pred_check_branch
          %584 = sbr.rel (%p582) target = $region96
        $region95: #{tpu_custom_call.1} parent=75 // pred_region
          %585 = dma.done [#allocation9], 256
        $region96: #{tpu_custom_call.1} parent=75 // pred_fallthru
          _
        %s586 = sand.u32 %s60, 1
        %s587 = scalar_lea.sflag [#allocation3], %s586
        %s588 = sand.u32 %s60, 1
        %s589 = smul.addr %s588, 4
        %s590 = scalar_lea.vmem [#allocation2], %s589
        %p591 = pneg %p73
        %p592 = pneg %p70
        %p593 = scmp.lt.s32.totalorder %s44, 1
        %s594 = scalar_select %p593, %s44, 1
        %s595 = smul.addr %s594, 2
        %s596 = smul.addr %s595, 4
        %s597 = scalar_lea.vmem %s1, %s596
        %p598 = pneg %p99
        %p599 = pneg %p96
        %s600 = sand.u32 %s40, 1
        %s601 = scalar_lea.sflag [#allocation6], %s600
        %s602 = sand.u32 %s112, 1
        %s603 = scalar_lea.vmem [#allocation5], %s602
        %p604 = pneg %p125
        %p605 = pneg %p122
        %s606 = sand.u32 %s40, 1
        %s607 = scalar_lea.sflag [#allocation6], %s606
        %s608 = sand.u32 %s138, 1
        %s609 = scalar_lea.vmem [#allocation7], %s608
        %p610 = pneg %p151
        %p611 = pneg %p148
        %p612 = pneg %p172
        %p613 = pneg %p169
        %p614 = pneg %p193
        %p615 = pneg %p190
        %p616 = pneg %p214
        %p617 = pneg %p211
        %p618 = pneg %p235
        %p619 = pneg %p232
        %p620 = pneg %p256
        %p621 = pneg %p253
        %p622 = pneg %p277
        %p623 = pneg %p274
        %p624 = pneg %p298
        %p625 = pneg %p295
        %p626 = pneg %p319
        %p627 = pneg %p316
        %p628 = pneg %p340
        %p629 = pneg %p337
        %p630 = pneg %p361
        %p631 = pneg %p358
        %p632 = pneg %p389
        %p633 = pneg %p386
        %s634 = sand.u32 %s376, 1
        %s635 = scalar_lea.sflag [#allocation4], %s634
        %s636 = sand.u32 %s376, 1
        %s637 = smul.addr %s636, 8
        %s638 = scalar_lea.vmem [#allocation11], %s637
        %p639 = pneg %p417
        %p640 = pneg %p414
        %s641 = sand.u32 %s404, 1
        %s642 = scalar_lea.sflag [#allocation13], %s641
        %s643 = sand.u32 %s404, 1
        %s644 = smul.addr %s643, 32
        %s645 = scalar_lea.vmem [#allocation12], %s644
        %p646 = scmp.lt.s32.totalorder %s44, 1
        %s647 = scalar_select %p646, %s44, 1
        %s648 = smul.addr %s647, 2
        %s649 = smul.addr %s648, 4
        %s650 = scalar_lea.vmem %s1, %s649
        %s652 = smul.u32 %s45, 8
        %v653 = vld [vmem:[%s557] sm:$0xf]
        %v654 = vld [vmem:[%s650] sm:$0xf]
        %v655 = vld [vmem:[%s650 + $0x4] sm:$0x3]
        %s656 = sshra.s32 %s652, 3
        %s657 = sand.u32 %s652, 7
        %s658 = smul.addr %s656, 4
        %s659 = scalar_lea.vmem %s557, %s658 [#allocation2]
        %v660 = vld [vmem:[%s659] sm:$0xf]
        %v661 = vld [vmem:[%s12] sm:$0xff]
        %v662 = vld [vmem:[%s12 + $0x8] sm:$0xff]
        %v663 = vlaneseq
        %v664 = vshrl.u32 %v663, 7
        %v665 = vstv %s652
        %v666 = vadd.s32 %v665, %v664
        %v667 = vlaneseq
        %v668 = vand.u32 %v667, 127
        %vm669 = vcmp.le.s32.totalorder %v668, %v666
        %v670 = vsel %vm669, 0.0, -1e+10
        %v671 = vld [vmem:[%s565] sm:$0x1]
        %v673 = vlaneseq
        %v674 = vshrl.u32 %v673, 7
        %v675 = vsub.s32 0, %v674
        %v676 = vrot.slane %v671, %v675
        %v678 = vadd.f32 %v670, %v676
        %v679 = vld [vmem:[%s573] sm:$0x1]
        %v681 = vlaneseq
        %v682 = vshrl.u32 %v681, 7
        %v683 = vsub.s32 0, %v682
        %v684 = vrot.slane %v679, %v683
        %v686 = vld [vmem:[%s4] sm:$0xf]
        %v687 = vld [vmem:[%s4 + $0x4] sm:$0xf]
        %v688 = vld [vmem:[%s4 + $0x8] sm:$0xf]
        %v689 = vld [vmem:[%s4 + $0xc] sm:$0xf]
        %v690 = vlaneseq
        %v691 = vshrl.u32 %v690, 7
        %v692 = vsub.s32 0, %v691
        %v693 = vrot.slane %v661, %v692
        %v698 = vunpack.c.l.b16 %v686
        %v699 = vunpack.c.l.b16 %v687
        %v700 = vunpack.c.l.b16 %v688
        %v701 = vunpack.c.l.b16 %v689
        %v702 = vpack.c.b16 %v699, %v698
        %v703 = vpack.c.b16 %v701, %v700
        %vm706 = vcmask 261120
        %v708 = vsel %vm706, %v660, 0
        %710 = vmatprep.subr.bf16.mxu0 0
        %711 = vmatpush1.bf16.msra.mxu0 0
        %712 = vmatprep.subr.bf16.mxu0 0
        %713 = vmatpush1.bf16.msra.mxu0 0
        %714 = vmatprep.subr.bf16.mxu0 0
        %715 = vmatpush1.bf16.msra.mxu0 0
        %716 = vmatprep.subr.bf16.mxu0 0
        %717 = vmatpush1.bf16.msra.mxu0 0
        %718 = vmatprep.subr.bf16.mxu0 0
        %719 = vmatpush1.bf16.msra.mxu0 0
        %720 = vmatprep.subr.bf16.mxu0 0
        %721 = vmatpush1.bf16.msra.mxu0 0
        %722 = vmatprep.subr.bf16.mxu0 0
        %723 = vmatpush1.bf16.msra.mxu0 %v703
        %724 = vmatprep.subr.bf16.mxu0 0
        %725 = vmatpush1.bf16.msra.mxu0 %v702
        %726 = vmatprep.subr.bf16.mxu0 0
        %727 = vmatpush2.bf16.msra.mxu0 0
        %728 = vmatprep.subr.bf16.mxu0 0
        %729 = vmatpush2.bf16.msra.mxu0 0
        %730 = vmatprep.subr.bf16.mxu0 0
        %731 = vmatpush2.bf16.msra.mxu0 0
        %732 = vmatprep.subr.bf16.mxu0 0
        %733 = vmatpush2.bf16.msra.mxu0 0
        %734 = vmatprep.subr.bf16.mxu0 0
        %735 = vmatpush2.bf16.msra.mxu0 0
        %736 = vmatprep.subr.bf16.mxu0 0
        %737 = vmatpush2.bf16.msra.mxu0 0
        %738 = vmatprep.subr.bf16.mxu0 0
        %739 = vmatpush2.bf16.msra.mxu0 0
        %740 = vmatprep.subr.bf16.mxu0 0
        %741 = vmatpush2.bf16.msra.mxu0 0
        %742 = vmatprep.mubr.bf16.mxu0 0
        %743 = vmatmul.mubr.bf16.gmra.mxu0 %v708
        %v744 = vpop.f32.mrf.mxu0
        %v745 = vadd.f32 %v693, %v744
        %v746 = vpop.f32.mrf.mxu0
        %v747 = vpop.f32.mrf.mxu0
        %v748 = vpop.f32.mrf.mxu0
        %749 = vdwg.mxu0
        %v750 = vld [vmem:[%s5] sm:$0xf]
        %v751 = vld [vmem:[%s5 + $0x4] sm:$0xf]
        %v752 = vld [vmem:[%s5 + $0x8] sm:$0xf]
        %v753 = vld [vmem:[%s5 + $0xc] sm:$0xf]
        %v758 = vunpack.c.l.b16 %v750
        %v759 = vunpack.c.l.b16 %v751
        %v760 = vunpack.c.l.b16 %v752
        %v761 = vunpack.c.l.b16 %v753
        %v762 = vpack.c.b16 %v759, %v758
        %v763 = vpack.c.b16 %v761, %v760
        %v767 = vsel %vm706, %v653, 0
        %769 = vmatprep.subr.bf16.mxu0 0
        %770 = vmatpush1.bf16.msra.mxu0 0
        %771 = vmatprep.subr.bf16.mxu0 0
        %772 = vmatpush1.bf16.msra.mxu0 0
        %773 = vmatprep.subr.bf16.mxu0 0
        %774 = vmatpush1.bf16.msra.mxu0 0
        %775 = vmatprep.subr.bf16.mxu0 0
        %776 = vmatpush1.bf16.msra.mxu0 0
        %777 = vmatprep.subr.bf16.mxu0 0
        %778 = vmatpush1.bf16.msra.mxu0 0
        %779 = vmatprep.subr.bf16.mxu0 0
        %780 = vmatpush1.bf16.msra.mxu0 0
        %781 = vmatprep.subr.bf16.mxu0 0
        %782 = vmatpush1.bf16.msra.mxu0 %v763
        %783 = vmatprep.subr.bf16.mxu0 0
        %784 = vmatpush1.bf16.msra.mxu0 %v762
        %785 = vmatprep.subr.bf16.mxu0 0
        %786 = vmatpush2.bf16.msra.mxu0 0
        %787 = vmatprep.subr.bf16.mxu0 0
        %788 = vmatpush2.bf16.msra.mxu0 0
        %789 = vmatprep.subr.bf16.mxu0 0
        %790 = vmatpush2.bf16.msra.mxu0 0
        %791 = vmatprep.subr.bf16.mxu0 0
        %792 = vmatpush2.bf16.msra.mxu0 0
        %793 = vmatprep.subr.bf16.mxu0 0
        %794 = vmatpush2.bf16.msra.mxu0 0
        %795 = vmatprep.subr.bf16.mxu0 0
        %796 = vmatpush2.bf16.msra.mxu0 0
        %797 = vmatprep.subr.bf16.mxu0 0
        %798 = vmatpush2.bf16.msra.mxu0 0
        %799 = vmatprep.subr.bf16.mxu0 0
        %800 = vmatpush2.bf16.msra.mxu0 0
        %801 = vmatprep.mubr.bf16.mxu0 0
        %802 = vmatmul.mubr.bf16.gmra.mxu0 %v767
        %v803 = vpop.f32.mrf.mxu0
        %v804 = vadd.f32 0.0, %v803
        %v805 = vpop.f32.mrf.mxu0
        %v806 = vpop.f32.mrf.mxu0
        %v807 = vpop.f32.mrf.mxu0
        %808 = vdwg.mxu0
        %v809 = vlaneseq
        %v810 = vshrl.u32 %v809, 7
        %v811 = vsub.s32 1, %v810
        %v812 = vrot.slane %v661, %v811
        %v813 = vadd.f32 %v804, %v812
        %v814 = vlaneseq
        %v815 = vshrl.u32 %v814, 7
        %v816 = vsub.s32 2, %v815
        %v817 = vrot.slane %v661, %v816
        %819 = vrot.lane.b32.xlu0 %v817, 32
        %v820 = vpop.permute.xlu0 %819
        %v822 = vadd.f32 %v804, %v820
        %v823 = vpack.c.bf16 %v745, %v745
        %v824 = vpack.c.bf16 %v813, %v813
        %v825 = vpack.c.bf16 %v822, %v822
        %vm826 = vcmask 64512
        %v828 = vsel %vm826, %v823, 0
        %v831 = vsel %vm826, %v824, 0
        %833 = vmatprep.subr.bf16.mxu0 0
        %834 = vmatpush1.bf16.xpose.msra.mxu0 0
        %835 = vmatprep.subr.bf16.mxu0 0
        %836 = vmatpush1.bf16.xpose.msra.mxu0 0
        %837 = vmatprep.subr.bf16.mxu0 0
        %838 = vmatpush1.bf16.xpose.msra.mxu0 0
        %839 = vmatprep.subr.bf16.mxu0 0
        %840 = vmatpush1.bf16.xpose.msra.mxu0 0
        %841 = vmatprep.subr.bf16.mxu0 0
        %842 = vmatpush1.bf16.xpose.msra.mxu0 0
        %843 = vmatprep.subr.bf16.mxu0 0
        %844 = vmatpush1.bf16.xpose.msra.mxu0 0
        %845 = vmatprep.subr.bf16.mxu0 0
        %846 = vmatpush1.bf16.xpose.msra.mxu0 0
        %847 = vmatprep.subr.bf16.mxu0 0
        %848 = vmatpush1.bf16.xpose.msra.mxu0 %v831
        %849 = vmatprep.subr.bf16.mxu0 0
        %850 = vmatpush2.bf16.xpose.msra.mxu0 0
        %851 = vmatprep.subr.bf16.mxu0 0
        %852 = vmatpush2.bf16.xpose.msra.mxu0 0
        %853 = vmatprep.subr.bf16.mxu0 0
        %854 = vmatpush2.bf16.xpose.msra.mxu0 0
        %855 = vmatprep.subr.bf16.mxu0 0
        %856 = vmatpush2.bf16.xpose.msra.mxu0 0
        %857 = vmatprep.subr.bf16.mxu0 0
        %858 = vmatpush2.bf16.xpose.msra.mxu0 0
        %859 = vmatprep.subr.bf16.mxu0 0
        %860 = vmatpush2.bf16.xpose.msra.mxu0 0
        %861 = vmatprep.subr.bf16.mxu0 0
        %862 = vmatpush2.bf16.xpose.msra.mxu0 0
        %863 = vmatprep.subr.bf16.mxu0 0
        %864 = vmatpush2.bf16.xpose.msra.mxu0 0
        %865 = vmatprep.mubr.bf16.mxu0 0
        %866 = vmatmul.mubr.bf16.gmra.mxu0 %v828
        %v867 = vpop.f32.mrf.mxu0
        %v868 = vadd.f32 %v678, %v867
        %v869 = vpop.f32.mrf.mxu0
        %v870 = vpop.f32.mrf.mxu0
        %v871 = vpop.f32.mrf.mxu0
        %872 = vdwg.mxu0
        %v873 = vsel %vm826, %v868, -inf
        %874 = vmax.xlane.f32.xlu0 %v873
        %v875 = vpop.xlane.xlu0 %874
        %v876 = vsub.f32 %v868, %v875
        %v877 = vmul.f32 %v876, 1.442695
        %v878 = vpow.pop %v877
        %v879 = vsel %vm826, %v878, 0.0
        %880 = vadd.xlane.f32.xlu0 %v879
        %v881 = vpop.xlane.xlu0 %880
        %v882 = vrcp.pop %v881
        %v883 = vmul.f32 %v878, %v882
        %v884 = vpack.c.bf16 %v883, %v883
        %886 = vrot.lane.b32.xlu0 %v825, 96
        %v887 = vpop.permute.xlu0 %886
        %v889 = vsel %vm826, %v884, 0
        %vm891 = vcmask 1043456
        %v893 = vsel %vm891, %v887, 0
        %895 = vmatprep.subr.bf16.mxu0 0
        %896 = vmatpush1.bf16.msra.mxu0 0
        %897 = vmatprep.subr.bf16.mxu0 0
        %898 = vmatpush1.bf16.msra.mxu0 0
        %899 = vmatprep.subr.bf16.mxu0 0
        %900 = vmatpush1.bf16.msra.mxu0 0
        %901 = vmatprep.subr.bf16.mxu0 0
        %902 = vmatpush1.bf16.msra.mxu0 0
        %903 = vmatprep.subr.bf16.mxu0 0
        %904 = vmatpush1.bf16.msra.mxu0 0
        %905 = vmatprep.subr.bf16.mxu0 0
        %906 = vmatpush1.bf16.msra.mxu0 0
        %907 = vmatprep.subr.bf16.mxu0 0
        %908 = vmatpush1.bf16.msra.mxu0 0
        %909 = vmatprep.subr.bf16.mxu0 0
        %910 = vmatpush1.bf16.msra.mxu0 %v893
        %911 = vmatprep.subr.bf16.mxu0 0
        %912 = vmatpush2.bf16.msra.mxu0 0
        %913 = vmatprep.subr.bf16.mxu0 0
        %914 = vmatpush2.bf16.msra.mxu0 0
        %915 = vmatprep.subr.bf16.mxu0 0
        %916 = vmatpush2.bf16.msra.mxu0 0
        %917 = vmatprep.subr.bf16.mxu0 0
        %918 = vmatpush2.bf16.msra.mxu0 0
        %919 = vmatprep.subr.bf16.mxu0 0
        %920 = vmatpush2.bf16.msra.mxu0 0
        %921 = vmatprep.subr.bf16.mxu0 0
        %922 = vmatpush2.bf16.msra.mxu0 0
        %923 = vmatprep.subr.bf16.mxu0 0
        %924 = vmatpush2.bf16.msra.mxu0 0
        %925 = vmatprep.subr.bf16.mxu0 0
        %926 = vmatpush2.bf16.msra.mxu0 0
        %927 = vmatprep.mubr.bf16.mxu0 0
        %928 = vmatmul.mubr.bf16.gmra.mxu0 %v889
        %v929 = vpop.f32.mrf.mxu0
        %v930 = vadd.f32 0.0, %v929
        %v931 = vpop.f32.mrf.mxu0
        %v932 = vpop.f32.mrf.mxu0
        %v933 = vpop.f32.mrf.mxu0
        %934 = vdwg.mxu0
        %936 = vrot.lane.b32.xlu0 %v823, 120
        %v937 = vpop.permute.xlu0 %936
        %939 = vrot.lane.b32.xlu0 %v824, 120
        %v940 = vpop.permute.xlu0 %939
        %v942 = vsel %vm826, %v937, 0
        %v945 = vsel %vm826, %v940, 0
        %947 = vmatprep.subr.bf16.mxu0 0
        %948 = vmatpush1.bf16.xpose.msra.mxu0 0
        %949 = vmatprep.subr.bf16.mxu0 0
        %950 = vmatpush1.bf16.xpose.msra.mxu0 0
        %951 = vmatprep.subr.bf16.mxu0 0
        %952 = vmatpush1.bf16.xpose.msra.mxu0 0
        %953 = vmatprep.subr.bf16.mxu0 0
        %954 = vmatpush1.bf16.xpose.msra.mxu0 0
        %955 = vmatprep.subr.bf16.mxu0 0
        %956 = vmatpush1.bf16.xpose.msra.mxu0 0
        %957 = vmatprep.subr.bf16.mxu0 0
        %958 = vmatpush1.bf16.xpose.msra.mxu0 0
        %959 = vmatprep.subr.bf16.mxu0 0
        %960 = vmatpush1.bf16.xpose.msra.mxu0 0
        %961 = vmatprep.subr.bf16.mxu0 0
        %962 = vmatpush1.bf16.xpose.msra.mxu0 %v945
        %963 = vmatprep.subr.bf16.mxu0 0
        %964 = vmatpush2.bf16.xpose.msra.mxu0 0
        %965 = vmatprep.subr.bf16.mxu0 0
        %966 = vmatpush2.bf16.xpose.msra.mxu0 0
        %967 = vmatprep.subr.bf16.mxu0 0
        %968 = vmatpush2.bf16.xpose.msra.mxu0 0
        %969 = vmatprep.subr.bf16.mxu0 0
        %970 = vmatpush2.bf16.xpose.msra.mxu0 0
        %971 = vmatprep.subr.bf16.mxu0 0
        %972 = vmatpush2.bf16.xpose.msra.mxu0 0
        %973 = vmatprep.subr.bf16.mxu0 0
        %974 = vmatpush2.bf16.xpose.msra.mxu0 0
        %975 = vmatprep.subr.bf16.mxu0 0
        %976 = vmatpush2.bf16.xpose.msra.mxu0 0
        %977 = vmatprep.subr.bf16.mxu0 0
        %978 = vmatpush2.bf16.xpose.msra.mxu0 0
        %979 = vmatprep.mubr.bf16.mxu0 0
        %980 = vmatmul.mubr.bf16.gmra.mxu0 %v942
        %v981 = vpop.f32.mrf.mxu0
        %v982 = vadd.f32 %v678, %v981
        %v983 = vpop.f32.mrf.mxu0
        %v984 = vpop.f32.mrf.mxu0
        %v985 = vpop.f32.mrf.mxu0
        %986 = vdwg.mxu0
        %v987 = vsel %vm826, %v982, -inf
        %988 = vmax.xlane.f32.xlu0 %v987
        %v989 = vpop.xlane.xlu0 %988
        %v990 = vsub.f32 %v982, %v989
        %v991 = vmul.f32 %v990, 1.442695
        %v992 = vpow.pop %v991
        %v993 = vsel %vm826, %v992, 0.0
        %994 = vadd.xlane.f32.xlu0 %v993
        %v995 = vpop.xlane.xlu0 %994
        %v996 = vrcp.pop %v995
        %v997 = vmul.f32 %v992, %v996
        %v998 = vpack.c.bf16 %v997, %v997
        %999 = vrot.lane.b32.xlu0 %v825, 88
        %v1000 = vpop.permute.xlu0 %999
        %v1002 = vsel %vm826, %v998, 0
        %v1005 = vsel %vm891, %v1000, 0
        %1007 = vmatprep.subr.bf16.mxu0 0
        %1008 = vmatpush1.bf16.msra.mxu0 0
        %1009 = vmatprep.subr.bf16.mxu0 0
        %1010 = vmatpush1.bf16.msra.mxu0 0
        %1011 = vmatprep.subr.bf16.mxu0 0
        %1012 = vmatpush1.bf16.msra.mxu0 0
        %1013 = vmatprep.subr.bf16.mxu0 0
        %1014 = vmatpush1.bf16.msra.mxu0 0
        %1015 = vmatprep.subr.bf16.mxu0 0
        %1016 = vmatpush1.bf16.msra.mxu0 0
        %1017 = vmatprep.subr.bf16.mxu0 0
        %1018 = vmatpush1.bf16.msra.mxu0 0
        %1019 = vmatprep.subr.bf16.mxu0 0
        %1020 = vmatpush1.bf16.msra.mxu0 0
        %1021 = vmatprep.subr.bf16.mxu0 0
        %1022 = vmatpush1.bf16.msra.mxu0 %v1005
        %1023 = vmatprep.subr.bf16.mxu0 0
        %1024 = vmatpush2.bf16.msra.mxu0 0
        %1025 = vmatprep.subr.bf16.mxu0 0
        %1026 = vmatpush2.bf16.msra.mxu0 0
        %1027 = vmatprep.subr.bf16.mxu0 0
        %1028 = vmatpush2.bf16.msra.mxu0 0
        %1029 = vmatprep.subr.bf16.mxu0 0
        %1030 = vmatpush2.bf16.msra.mxu0 0
        %1031 = vmatprep.subr.bf16.mxu0 0
        %1032 = vmatpush2.bf16.msra.mxu0 0
        %1033 = vmatprep.subr.bf16.mxu0 0
        %1034 = vmatpush2.bf16.msra.mxu0 0
        %1035 = vmatprep.subr.bf16.mxu0 0
        %1036 = vmatpush2.bf16.msra.mxu0 0
        %1037 = vmatprep.subr.bf16.mxu0 0
        %1038 = vmatpush2.bf16.msra.mxu0 0
        %1039 = vmatprep.mubr.bf16.mxu0 0
        %1040 = vmatmul.mubr.bf16.gmra.mxu0 %v1002
        %v1041 = vpop.f32.mrf.mxu0
        %v1042 = vadd.f32 0.0, %v1041
        %v1043 = vpop.f32.mrf.mxu0
        %v1044 = vpop.f32.mrf.mxu0
        %v1045 = vpop.f32.mrf.mxu0
        %1046 = vdwg.mxu0
        %1047 = vrot.lane.b32.xlu0 %v823, 112
        %v1048 = vpop.permute.xlu0 %1047
        %1049 = vrot.lane.b32.xlu0 %v824, 112
        %v1050 = vpop.permute.xlu0 %1049
        %v1052 = vsel %vm826, %v1048, 0
        %v1055 = vsel %vm826, %v1050, 0
        %1057 = vmatprep.subr.bf16.mxu0 0
        %1058 = vmatpush1.bf16.xpose.msra.mxu0 0
        %1059 = vmatprep.subr.bf16.mxu0 0
        %1060 = vmatpush1.bf16.xpose.msra.mxu0 0
        %1061 = vmatprep.subr.bf16.mxu0 0
        %1062 = vmatpush1.bf16.xpose.msra.mxu0 0
        %1063 = vmatprep.subr.bf16.mxu0 0
        %1064 = vmatpush1.bf16.xpose.msra.mxu0 0
        %1065 = vmatprep.subr.bf16.mxu0 0
        %1066 = vmatpush1.bf16.xpose.msra.mxu0 0
        %1067 = vmatprep.subr.bf16.mxu0 0
        %1068 = vmatpush1.bf16.xpose.msra.mxu0 0
        %1069 = vmatprep.subr.bf16.mxu0 0
        %1070 = vmatpush1.bf16.xpose.msra.mxu0 0
        %1071 = vmatprep.subr.bf16.mxu0 0
        %1072 = vmatpush1.bf16.xpose.msra.mxu0 %v1055
        %1073 = vmatprep.subr.bf16.mxu0 0
        %1074 = vmatpush2.bf16.xpose.msra.mxu0 0
        %1075 = vmatprep.subr.bf16.mxu0 0
        %1076 = vmatpush2.bf16.xpose.msra.mxu0 0
        %1077 = vmatprep.subr.bf16.mxu0 0
        %1078 = vmatpush2.bf16.xpose.msra.mxu0 0
        %1079 = vmatprep.subr.bf16.mxu0 0
        %1080 = vmatpush2.bf16.xpose.msra.mxu0 0
        %1081 = vmatprep.subr.bf16.mxu0 0
        %1082 = vmatpush2.bf16.xpose.msra.mxu0 0
        %1083 = vmatprep.subr.bf16.mxu0 0
        %1084 = vmatpush2.bf16.xpose.msra.mxu0 0
        %1085 = vmatprep.subr.bf16.mxu0 0
        %1086 = vmatpush2.bf16.xpose.msra.mxu0 0
        %1087 = vmatprep.subr.bf16.mxu0 0
        %1088 = vmatpush2.bf16.xpose.msra.mxu0 0
        %1089 = vmatprep.mubr.bf16.mxu0 0
        %1090 = vmatmul.mubr.bf16.gmra.mxu0 %v1052
        %v1091 = vpop.f32.mrf.mxu0
        %v1092 = vadd.f32 %v678, %v1091
        %v1093 = vpop.f32.mrf.mxu0
        %v1094 = vpop.f32.mrf.mxu0
        %v1095 = vpop.f32.mrf.mxu0
        %1096 = vdwg.mxu0
        %v1097 = vsel %vm826, %v1092, -inf
        %1098 = vmax.xlane.f32.xlu0 %v1097
        %v1099 = vpop.xlane.xlu0 %1098
        %v1100 = vsub.f32 %v1092, %v1099
        %v1101 = vmul.f32 %v1100, 1.442695
        %v1102 = vpow.pop %v1101
        %v1103 = vsel %vm826, %v1102, 0.0
        %1104 = vadd.xlane.f32.xlu0 %v1103
        %v1105 = vpop.xlane.xlu0 %1104
        %v1106 = vrcp.pop %v1105
        %v1107 = vmul.f32 %v1102, %v1106
        %v1108 = vpack.c.bf16 %v1107, %v1107
        %1109 = vrot.lane.b32.xlu0 %v825, 80
        %v1110 = vpop.permute.xlu0 %1109
        %v1112 = vsel %vm826, %v1108, 0
        %v1115 = vsel %vm891, %v1110, 0
        %1117 = vmatprep.subr.bf16.mxu0 0
        %1118 = vmatpush1.bf16.msra.mxu0 0
        %1119 = vmatprep.subr.bf16.mxu0 0
        %1120 = vmatpush1.bf16.msra.mxu0 0
        %1121 = vmatprep.subr.bf16.mxu0 0
        %1122 = vmatpush1.bf16.msra.mxu0 0
        %1123 = vmatprep.subr.bf16.mxu0 0
        %1124 = vmatpush1.bf16.msra.mxu0 0
        %1125 = vmatprep.subr.bf16.mxu0 0
        %1126 = vmatpush1.bf16.msra.mxu0 0
        %1127 = vmatprep.subr.bf16.mxu0 0
        %1128 = vmatpush1.bf16.msra.mxu0 0
        %1129 = vmatprep.subr.bf16.mxu0 0
        %1130 = vmatpush1.bf16.msra.mxu0 0
        %1131 = vmatprep.subr.bf16.mxu0 0
        %1132 = vmatpush1.bf16.msra.mxu0 %v1115
        %1133 = vmatprep.subr.bf16.mxu0 0
        %1134 = vmatpush2.bf16.msra.mxu0 0
        %1135 = vmatprep.subr.bf16.mxu0 0
        %1136 = vmatpush2.bf16.msra.mxu0 0
        %1137 = vmatprep.subr.bf16.mxu0 0
        %1138 = vmatpush2.bf16.msra.mxu0 0
        %1139 = vmatprep.subr.bf16.mxu0 0
        %1140 = vmatpush2.bf16.msra.mxu0 0
        %1141 = vmatprep.subr.bf16.mxu0 0
        %1142 = vmatpush2.bf16.msra.mxu0 0
        %1143 = vmatprep.subr.bf16.mxu0 0
        %1144 = vmatpush2.bf16.msra.mxu0 0
        %1145 = vmatprep.subr.bf16.mxu0 0
        %1146 = vmatpush2.bf16.msra.mxu0 0
        %1147 = vmatprep.subr.bf16.mxu0 0
        %1148 = vmatpush2.bf16.msra.mxu0 0
        %1149 = vmatprep.mubr.bf16.mxu0 0
        %1150 = vmatmul.mubr.bf16.gmra.mxu0 %v1112
        %v1151 = vpop.f32.mrf.mxu0
        %v1152 = vadd.f32 0.0, %v1151
        %v1153 = vpop.f32.mrf.mxu0
        %v1154 = vpop.f32.mrf.mxu0
        %v1155 = vpop.f32.mrf.mxu0
        %1156 = vdwg.mxu0
        %1157 = vrot.lane.b32.xlu0 %v823, 104
        %v1158 = vpop.permute.xlu0 %1157
        %1159 = vrot.lane.b32.xlu0 %v824, 104
        %v1160 = vpop.permute.xlu0 %1159
        %v1162 = vsel %vm826, %v1158, 0
        %v1165 = vsel %vm826, %v1160, 0
        %1167 = vmatprep.subr.bf16.mxu0 0
        %1168 = vmatpush1.bf16.xpose.msra.mxu0 0
        %1169 = vmatprep.subr.bf16.mxu0 0
        %1170 = vmatpush1.bf16.xpose.msra.mxu0 0
        %1171 = vmatprep.subr.bf16.mxu0 0
        %1172 = vmatpush1.bf16.xpose.msra.mxu0 0
        %1173 = vmatprep.subr.bf16.mxu0 0
        %1174 = vmatpush1.bf16.xpose.msra.mxu0 0
        %1175 = vmatprep.subr.bf16.mxu0 0
        %1176 = vmatpush1.bf16.xpose.msra.mxu0 0
        %1177 = vmatprep.subr.bf16.mxu0 0
        %1178 = vmatpush1.bf16.xpose.msra.mxu0 0
        %1179 = vmatprep.subr.bf16.mxu0 0
        %1180 = vmatpush1.bf16.xpose.msra.mxu0 0
        %1181 = vmatprep.subr.bf16.mxu0 0
        %1182 = vmatpush1.bf16.xpose.msra.mxu0 %v1165
        %1183 = vmatprep.subr.bf16.mxu0 0
        %1184 = vmatpush2.bf16.xpose.msra.mxu0 0
        %1185 = vmatprep.subr.bf16.mxu0 0
        %1186 = vmatpush2.bf16.xpose.msra.mxu0 0
        %1187 = vmatprep.subr.bf16.mxu0 0
        %1188 = vmatpush2.bf16.xpose.msra.mxu0 0
        %1189 = vmatprep.subr.bf16.mxu0 0
        %1190 = vmatpush2.bf16.xpose.msra.mxu0 0
        %1191 = vmatprep.subr.bf16.mxu0 0
        %1192 = vmatpush2.bf16.xpose.msra.mxu0 0
        %1193 = vmatprep.subr.bf16.mxu0 0
        %1194 = vmatpush2.bf16.xpose.msra.mxu0 0
        %1195 = vmatprep.subr.bf16.mxu0 0
        %1196 = vmatpush2.bf16.xpose.msra.mxu0 0
        %1197 = vmatprep.subr.bf16.mxu0 0
        %1198 = vmatpush2.bf16.xpose.msra.mxu0 0
        %1199 = vmatprep.mubr.bf16.mxu0 0
        %1200 = vmatmul.mubr.bf16.gmra.mxu0 %v1162
        %v1201 = vpop.f32.mrf.mxu0
        %v1202 = vadd.f32 %v678, %v1201
        %v1203 = vpop.f32.mrf.mxu0
        %v1204 = vpop.f32.mrf.mxu0
        %v1205 = vpop.f32.mrf.mxu0
        %1206 = vdwg.mxu0
        %v1207 = vsel %vm826, %v1202, -inf
        %1208 = vmax.xlane.f32.xlu0 %v1207
        %v1209 = vpop.xlane.xlu0 %1208
        %v1210 = vsub.f32 %v1202, %v1209
        %v1211 = vmul.f32 %v1210, 1.442695
        %v1212 = vpow.pop %v1211
        %v1213 = vsel %vm826, %v1212, 0.0
        %1214 = vadd.xlane.f32.xlu0 %v1213
        %v1215 = vpop.xlane.xlu0 %1214
        %v1216 = vrcp.pop %v1215
        %v1217 = vmul.f32 %v1212, %v1216
        %v1218 = vpack.c.bf16 %v1217, %v1217
        %1219 = vrot.lane.b32.xlu0 %v825, 72
        %v1220 = vpop.permute.xlu0 %1219
        %v1222 = vsel %vm826, %v1218, 0
        %v1225 = vsel %vm891, %v1220, 0
        %1227 = vmatprep.subr.bf16.mxu0 0
        %1228 = vmatpush1.bf16.msra.mxu0 0
        %1229 = vmatprep.subr.bf16.mxu0 0
        %1230 = vmatpush1.bf16.msra.mxu0 0
        %1231 = vmatprep.subr.bf16.mxu0 0
        %1232 = vmatpush1.bf16.msra.mxu0 0
        %1233 = vmatprep.subr.bf16.mxu0 0
        %1234 = vmatpush1.bf16.msra.mxu0 0
        %1235 = vmatprep.subr.bf16.mxu0 0
        %1236 = vmatpush1.bf16.msra.mxu0 0
        %1237 = vmatprep.subr.bf16.mxu0 0
        %1238 = vmatpush1.bf16.msra.mxu0 0
        %1239 = vmatprep.subr.bf16.mxu0 0
        %1240 = vmatpush1.bf16.msra.mxu0 0
        %1241 = vmatprep.subr.bf16.mxu0 0
        %1242 = vmatpush1.bf16.msra.mxu0 %v1225
        %1243 = vmatprep.subr.bf16.mxu0 0
        %1244 = vmatpush2.bf16.msra.mxu0 0
        %1245 = vmatprep.subr.bf16.mxu0 0
        %1246 = vmatpush2.bf16.msra.mxu0 0
        %1247 = vmatprep.subr.bf16.mxu0 0
        %1248 = vmatpush2.bf16.msra.mxu0 0
        %1249 = vmatprep.subr.bf16.mxu0 0
        %1250 = vmatpush2.bf16.msra.mxu0 0
        %1251 = vmatprep.subr.bf16.mxu0 0
        %1252 = vmatpush2.bf16.msra.mxu0 0
        %1253 = vmatprep.subr.bf16.mxu0 0
        %1254 = vmatpush2.bf16.msra.mxu0 0
        %1255 = vmatprep.subr.bf16.mxu0 0
        %1256 = vmatpush2.bf16.msra.mxu0 0
        %1257 = vmatprep.subr.bf16.mxu0 0
        %1258 = vmatpush2.bf16.msra.mxu0 0
        %1259 = vmatprep.mubr.bf16.mxu0 0
        %1260 = vmatmul.mubr.bf16.gmra.mxu0 %v1222
        %v1261 = vpop.f32.mrf.mxu0
        %v1262 = vadd.f32 0.0, %v1261
        %v1263 = vpop.f32.mrf.mxu0
        %v1264 = vpop.f32.mrf.mxu0
        %v1265 = vpop.f32.mrf.mxu0
        %1266 = vdwg.mxu0
        %1268 = vrot.lane.b32.xlu0 %v1042, 8
        %v1269 = vpop.permute.xlu0 %1268
        %1272 = vrot.lane.b32.xlu0 %v1152, 16
        %v1273 = vpop.permute.xlu0 %1272
        %1276 = vrot.lane.b32.xlu0 %v1262, 24
        %v1277 = vpop.permute.xlu0 %1276
        %v1279 = vsel %vm826, %v930, %v1269
        %vm1280 = vcmask 130048
        %v1281 = vsel %vm1280, %v1279, %v1273
        %vm1282 = vcmask 195584
        %v1283 = vsel %vm1282, %v1281, %v1277
        %v1284 = vpack.c.bf16 %v1283, %v1283
        %v1285 = vld [vmem:[%s6] sm:$0xf]
        %v1286 = vld [vmem:[%s6 + $0x4] sm:$0xf]
        %v1287 = vld [vmem:[%s6 + $0x8] sm:$0xf]
        %v1288 = vld [vmem:[%s6 + $0xc] sm:$0xf]
        %v1289 = vlaneseq
        %v1290 = vshrl.u32 %v1289, 7
        %v1291 = vsub.s32 3, %v1290
        %v1292 = vrot.slane %v661, %v1291
        %v1297 = vunpack.c.l.b16 %v1285
        %v1298 = vunpack.c.l.b16 %v1286
        %v1299 = vunpack.c.l.b16 %v1287
        %v1300 = vunpack.c.l.b16 %v1288
        %v1301 = vpack.c.b16 %v1298, %v1297
        %v1302 = vpack.c.b16 %v1300, %v1299
        %v1306 = vsel %vm706, %v1284, 0
        %1308 = vmatprep.subr.bf16.mxu0 0
        %1309 = vmatpush1.bf16.msra.mxu0 0
        %1310 = vmatprep.subr.bf16.mxu0 0
        %1311 = vmatpush1.bf16.msra.mxu0 0
        %1312 = vmatprep.subr.bf16.mxu0 0
        %1313 = vmatpush1.bf16.msra.mxu0 0
        %1314 = vmatprep.subr.bf16.mxu0 0
        %1315 = vmatpush1.bf16.msra.mxu0 0
        %1316 = vmatprep.subr.bf16.mxu0 0
        %1317 = vmatpush1.bf16.msra.mxu0 0
        %1318 = vmatprep.subr.bf16.mxu0 0
        %1319 = vmatpush1.bf16.msra.mxu0 0
        %1320 = vmatprep.subr.bf16.mxu0 0
        %1321 = vmatpush1.bf16.msra.mxu0 %v1302
        %1322 = vmatprep.subr.bf16.mxu0 0
        %1323 = vmatpush1.bf16.msra.mxu0 %v1301
        %1324 = vmatprep.subr.bf16.mxu0 0
        %1325 = vmatpush2.bf16.msra.mxu0 0
        %1326 = vmatprep.subr.bf16.mxu0 0
        %1327 = vmatpush2.bf16.msra.mxu0 0
        %1328 = vmatprep.subr.bf16.mxu0 0
        %1329 = vmatpush2.bf16.msra.mxu0 0
        %1330 = vmatprep.subr.bf16.mxu0 0
        %1331 = vmatpush2.bf16.msra.mxu0 0
        %1332 = vmatprep.subr.bf16.mxu0 0
        %1333 = vmatpush2.bf16.msra.mxu0 0
        %1334 = vmatprep.subr.bf16.mxu0 0
        %1335 = vmatpush2.bf16.msra.mxu0 0
        %1336 = vmatprep.subr.bf16.mxu0 0
        %1337 = vmatpush2.bf16.msra.mxu0 0
        %1338 = vmatprep.subr.bf16.mxu0 0
        %1339 = vmatpush2.bf16.msra.mxu0 0
        %1340 = vmatprep.mubr.bf16.mxu0 0
        %1341 = vmatmul.mubr.bf16.gmra.mxu0 %v1306
        %v1342 = vpop.f32.mrf.mxu0
        %v1343 = vadd.f32 %v1292, %v1342
        %v1344 = vpop.f32.mrf.mxu0
        %v1345 = vpop.f32.mrf.mxu0
        %v1346 = vpop.f32.mrf.mxu0
        %1347 = vdwg.mxu0
        %v1348 = vunpack.c.l.bf16 %v660
        %v1349 = vadd.f32 %v1348, %v1343
        %v1350 = vsel %vm706, %v1349, 0.0
        %1351 = vadd.xlane.f32.xlu0 %v1350
        %v1352 = vpop.xlane.xlu0 %1351
        %v1353 = vrcp.pop 32.0
        %v1354 = vmul.f32 %v1352, %v1353
        %v1355 = vsub.f32 %v1349, %v1354
        %v1356 = vmul.f32 %v1355, %v1355
        %v1357 = vsel %vm706, %v1356, 0.0
        %1358 = vadd.xlane.f32.xlu0 %v1357
        %v1359 = vpop.xlane.xlu0 %1358
        %v1360 = vmul.f32 %v1359, %v1353
        %v1361 = vadd.f32 %v1360, 1e-05
        %v1362 = vrsqrt.pop %v1361
        %v1363 = vmul.f32 %v1355, %v1362
        %v1364 = vlaneseq
        %v1365 = vshrl.u32 %v1364, 7
        %v1366 = vsub.s32 4, %v1365
        %v1367 = vrot.slane %v661, %v1366
        %v1368 = vmul.f32 %v1363, %v1367
        %v1369 = vlaneseq
        %v1370 = vshrl.u32 %v1369, 7
        %v1371 = vsub.s32 5, %v1370
        %v1372 = vrot.slane %v661, %v1371
        %v1373 = vadd.f32 %v1368, %v1372
        %v1374 = vpack.c.bf16 %v1373, %v1373
        %v1375 = vld [vmem:[%s7] sm:$0xf]
        %v1376 = vld [vmem:[%s7 + $0x4] sm:$0xf]
        %v1377 = vld [vmem:[%s7 + $0x8] sm:$0xf]
        %v1378 = vld [vmem:[%s7 + $0xc] sm:$0xf]
        %v1379 = vlaneseq
        %v1380 = vshrl.u32 %v1379, 7
        %v1381 = vsub.s32 6, %v1380
        %v1382 = vrot.slane %v661, %v1381
        %v1387 = vunpack.c.l.b16 %v1375
        %v1388 = vunpack.c.l.b16 %v1376
        %v1389 = vunpack.c.l.b16 %v1377
        %v1390 = vunpack.c.l.b16 %v1378
        %v1391 = vpack.c.b16 %v1388, %v1387
        %v1392 = vpack.c.b16 %v1390, %v1389
        %v1396 = vsel %vm706, %v1374, 0
        %1398 = vmatprep.subr.bf16.mxu0 0
        %1399 = vmatpush1.bf16.msra.mxu0 0
        %1400 = vmatprep.subr.bf16.mxu0 0
        %1401 = vmatpush1.bf16.msra.mxu0 0
        %1402 = vmatprep.subr.bf16.mxu0 0
        %1403 = vmatpush1.bf16.msra.mxu0 0
        %1404 = vmatprep.subr.bf16.mxu0 0
        %1405 = vmatpush1.bf16.msra.mxu0 0
        %1406 = vmatprep.subr.bf16.mxu0 0
        %1407 = vmatpush1.bf16.msra.mxu0 0
        %1408 = vmatprep.subr.bf16.mxu0 0
        %1409 = vmatpush1.bf16.msra.mxu0 0
        %1410 = vmatprep.subr.bf16.mxu0 0
        %1411 = vmatpush1.bf16.msra.mxu0 %v1392
        %1412 = vmatprep.subr.bf16.mxu0 0
        %1413 = vmatpush1.bf16.msra.mxu0 %v1391
        %1414 = vmatprep.subr.bf16.mxu0 0
        %1415 = vmatpush2.bf16.msra.mxu0 0
        %1416 = vmatprep.subr.bf16.mxu0 0
        %1417 = vmatpush2.bf16.msra.mxu0 0
        %1418 = vmatprep.subr.bf16.mxu0 0
        %1419 = vmatpush2.bf16.msra.mxu0 0
        %1420 = vmatprep.subr.bf16.mxu0 0
        %1421 = vmatpush2.bf16.msra.mxu0 0
        %1422 = vmatprep.subr.bf16.mxu0 0
        %1423 = vmatpush2.bf16.msra.mxu0 0
        %1424 = vmatprep.subr.bf16.mxu0 0
        %1425 = vmatpush2.bf16.msra.mxu0 0
        %1426 = vmatprep.subr.bf16.mxu0 0
        %1427 = vmatpush2.bf16.msra.mxu0 0
        %1428 = vmatprep.subr.bf16.mxu0 0
        %1429 = vmatpush2.bf16.msra.mxu0 0
        %1430 = vmatprep.mubr.bf16.mxu0 0
        %1431 = vmatmul.mubr.bf16.gmra.mxu0 %v1396
        %v1432 = vpop.f32.mrf.mxu0
        %v1433 = vadd.f32 %v1382, %v1432
        %v1434 = vpop.f32.mrf.mxu0
        %v1435 = vpop.f32.mrf.mxu0
        %v1436 = vpop.f32.mrf.mxu0
        %1437 = vdwg.mxu0
        %v1438 = vld [vmem:[%s8] sm:$0xf]
        %v1439 = vld [vmem:[%s8 + $0x4] sm:$0xf]
        %v1440 = vld [vmem:[%s8 + $0x8] sm:$0xf]
        %v1441 = vld [vmem:[%s8 + $0xc] sm:$0xf]
        %v1444 = vunpack.c.l.b16 %v654
        %v1445 = vunpack.c.l.b16 %v655
        %v1446 = vpack.c.b16 %v1445, %v1444
        %v1451 = vunpack.c.l.b16 %v1438
        %v1452 = vunpack.c.l.b16 %v1439
        %v1453 = vunpack.c.l.b16 %v1440
        %v1454 = vunpack.c.l.b16 %v1441
        %v1455 = vpack.c.b16 %v1452, %v1451
        %v1456 = vpack.c.b16 %v1454, %v1453
        %v1460 = vsel %vm706, %v1446, 0
        %1462 = vmatprep.subr.bf16.mxu0 0
        %1463 = vmatpush1.bf16.msra.mxu0 0
        %1464 = vmatprep.subr.bf16.mxu0 0
        %1465 = vmatpush1.bf16.msra.mxu0 0
        %1466 = vmatprep.subr.bf16.mxu0 0
        %1467 = vmatpush1.bf16.msra.mxu0 0
        %1468 = vmatprep.subr.bf16.mxu0 0
        %1469 = vmatpush1.bf16.msra.mxu0 0
        %1470 = vmatprep.subr.bf16.mxu0 0
        %1471 = vmatpush1.bf16.msra.mxu0 0
        %1472 = vmatprep.subr.bf16.mxu0 0
        %1473 = vmatpush1.bf16.msra.mxu0 0
        %1474 = vmatprep.subr.bf16.mxu0 0
        %1475 = vmatpush1.bf16.msra.mxu0 %v1456
        %1476 = vmatprep.subr.bf16.mxu0 0
        %1477 = vmatpush1.bf16.msra.mxu0 %v1455
        %1478 = vmatprep.subr.bf16.mxu0 0
        %1479 = vmatpush2.bf16.msra.mxu0 0
        %1480 = vmatprep.subr.bf16.mxu0 0
        %1481 = vmatpush2.bf16.msra.mxu0 0
        %1482 = vmatprep.subr.bf16.mxu0 0
        %1483 = vmatpush2.bf16.msra.mxu0 0
        %1484 = vmatprep.subr.bf16.mxu0 0
        %1485 = vmatpush2.bf16.msra.mxu0 0
        %1486 = vmatprep.subr.bf16.mxu0 0
        %1487 = vmatpush2.bf16.msra.mxu0 0
        %1488 = vmatprep.subr.bf16.mxu0 0
        %1489 = vmatpush2.bf16.msra.mxu0 0
        %1490 = vmatprep.subr.bf16.mxu0 0
        %1491 = vmatpush2.bf16.msra.mxu0 0
        %1492 = vmatprep.subr.bf16.mxu0 0
        %1493 = vmatpush2.bf16.msra.mxu0 0
        %1494 = vmatprep.mubr.bf16.mxu0 0
        %1495 = vmatmul.mubr.bf16.gmra.mxu0 %v1460
        %v1496 = vpop.f32.mrf.mxu0
        %v1497 = vadd.f32 0.0, %v1496
        %v1498 = vpop.f32.mrf.mxu0
        %v1499 = vpop.f32.mrf.mxu0
        %v1500 = vadd.f32 0.0, %v1499
        %v1501 = vpop.f32.mrf.mxu0
        %1502 = vdwg.mxu0
        %v1503 = vlaneseq
        %v1504 = vshrl.u32 %v1503, 7
        %v1505 = vsub.s32 7, %v1504
        %v1506 = vrot.slane %v661, %v1505
        %v1507 = vadd.f32 %v1497, %v1506
        %v1508 = vadd.f32 %v1500, %v1506
        %v1509 = vlaneseq
        %v1510 = vshrl.u32 %v1509, 7
        %v1511 = vsub.s32 0, %v1510
        %v1512 = vrot.slane %v662, %v1511
        %1514 = vrot.lane.b32.xlu0 %v1512, 32
        %v1515 = vpop.permute.xlu0 %1514
        %v1517 = vadd.f32 %v1497, %v1515
        %v1518 = vadd.f32 %v1500, %v1515
        %v1519 = vpack.c.bf16 %v1433, %v1433
        %v1520 = vpack.c.bf16 %v1508, %v1507
        %v1521 = vpack.c.bf16 %v1518, %v1517
        %v1523 = vsel %vm826, %v1519, 0
        %v1526 = vsel %vm826, %v1520, 0
        %1528 = vmatprep.subr.bf16.mxu0 0
        %1529 = vmatpush1.bf16.xpose.msra.mxu0 0
        %1530 = vmatprep.subr.bf16.mxu0 0
        %1531 = vmatpush1.bf16.xpose.msra.mxu0 0
        %1532 = vmatprep.subr.bf16.mxu0 0
        %1533 = vmatpush1.bf16.xpose.msra.mxu0 0
        %1534 = vmatprep.subr.bf16.mxu0 0
        %1535 = vmatpush1.bf16.xpose.msra.mxu0 0
        %1536 = vmatprep.subr.bf16.mxu0 0
        %1537 = vmatpush1.bf16.xpose.msra.mxu0 0
        %1538 = vmatprep.subr.bf16.mxu0 0
        %1539 = vmatpush1.bf16.xpose.msra.mxu0 0
        %1540 = vmatprep.subr.bf16.mxu0 0
        %1541 = vmatpush1.bf16.xpose.msra.mxu0 0
        %1542 = vmatprep.subr.bf16.mxu0 0
        %1543 = vmatpush1.bf16.xpose.msra.mxu0 %v1526
        %1544 = vmatprep.subr.bf16.mxu0 0
        %1545 = vmatpush2.bf16.xpose.msra.mxu0 0
        %1546 = vmatprep.subr.bf16.mxu0 0
        %1547 = vmatpush2.bf16.xpose.msra.mxu0 0
        %1548 = vmatprep.subr.bf16.mxu0 0
        %1549 = vmatpush2.bf16.xpose.msra.mxu0 0
        %1550 = vmatprep.subr.bf16.mxu0 0
        %1551 = vmatpush2.bf16.xpose.msra.mxu0 0
        %1552 = vmatprep.subr.bf16.mxu0 0
        %1553 = vmatpush2.bf16.xpose.msra.mxu0 0
        %1554 = vmatprep.subr.bf16.mxu0 0
        %1555 = vmatpush2.bf16.xpose.msra.mxu0 0
        %1556 = vmatprep.subr.bf16.mxu0 0
        %1557 = vmatpush2.bf16.xpose.msra.mxu0 0
        %1558 = vmatprep.subr.bf16.mxu0 0
        %1559 = vmatpush2.bf16.xpose.msra.mxu0 0
        %1560 = vmatprep.mubr.bf16.mxu0 0
        %1561 = vmatmul.mubr.bf16.gmra.mxu0 %v1523
        %v1562 = vpop.f32.mrf.mxu0
        %v1563 = vadd.f32 %v684, %v1562
        %v1564 = vpop.f32.mrf.mxu0
        %v1565 = vpop.f32.mrf.mxu0
        %v1566 = vpop.f32.mrf.mxu0
        %1567 = vdwg.mxu0
        %vm1568 = vcmask 97280
        %v1569 = vsel %vm1568, %v1563, -inf
        %1570 = vmax.xlane.f32.xlu0 %v1569
        %v1571 = vpop.xlane.xlu0 %1570
        %v1572 = vsub.f32 %v1563, %v1571
        %v1573 = vmul.f32 %v1572, 1.442695
        %v1574 = vpow.pop %v1573
        %v1575 = vsel %vm1568, %v1574, 0.0
        %1576 = vadd.xlane.f32.xlu0 %v1575
        %v1577 = vpop.xlane.xlu0 %1576
        %v1578 = vrcp.pop %v1577
        %v1579 = vmul.f32 %v1574, %v1578
        %1580 = vst.msk [vmem:[%s645] sm:$0xff] %vm1568, %v1579
        %v1581 = vpack.c.bf16 %v1579, %v1579
        %1583 = vrot.lane.b32.xlu0 %v1521, 96
        %v1584 = vpop.permute.xlu0 %1583
        %v1586 = vsel %vm1568, %v1581, 0
        %vm1588 = vcmask 1045504
        %v1590 = vsel %vm1588, %v1584, 0
        %1592 = vmatprep.subr.bf16.mxu0 0
        %1593 = vmatpush1.bf16.msra.mxu0 0
        %1594 = vmatprep.subr.bf16.mxu0 0
        %1595 = vmatpush1.bf16.msra.mxu0 0
        %1596 = vmatprep.subr.bf16.mxu0 0
        %1597 = vmatpush1.bf16.msra.mxu0 0
        %1598 = vmatprep.subr.bf16.mxu0 0
        %1599 = vmatpush1.bf16.msra.mxu0 0
        %1600 = vmatprep.subr.bf16.mxu0 0
        %1601 = vmatpush1.bf16.msra.mxu0 0
        %1602 = vmatprep.subr.bf16.mxu0 0
        %1603 = vmatpush1.bf16.msra.mxu0 0
        %1604 = vmatprep.subr.bf16.mxu0 0
        %1605 = vmatpush1.bf16.msra.mxu0 0
        %1606 = vmatprep.subr.bf16.mxu0 0
        %1607 = vmatpush1.bf16.msra.mxu0 %v1590
        %1608 = vmatprep.subr.bf16.mxu0 0
        %1609 = vmatpush2.bf16.msra.mxu0 0
        %1610 = vmatprep.subr.bf16.mxu0 0
        %1611 = vmatpush2.bf16.msra.mxu0 0
        %1612 = vmatprep.subr.bf16.mxu0 0
        %1613 = vmatpush2.bf16.msra.mxu0 0
        %1614 = vmatprep.subr.bf16.mxu0 0
        %1615 = vmatpush2.bf16.msra.mxu0 0
        %1616 = vmatprep.subr.bf16.mxu0 0
        %1617 = vmatpush2.bf16.msra.mxu0 0
        %1618 = vmatprep.subr.bf16.mxu0 0
        %1619 = vmatpush2.bf16.msra.mxu0 0
        %1620 = vmatprep.subr.bf16.mxu0 0
        %1621 = vmatpush2.bf16.msra.mxu0 0
        %1622 = vmatprep.subr.bf16.mxu0 0
        %1623 = vmatpush2.bf16.msra.mxu0 0
        %1624 = vmatprep.mubr.bf16.mxu0 0
        %1625 = vmatmul.mubr.bf16.gmra.mxu0 %v1586
        %v1626 = vpop.f32.mrf.mxu0
        %v1627 = vadd.f32 0.0, %v1626
        %v1628 = vpop.f32.mrf.mxu0
        %v1629 = vpop.f32.mrf.mxu0
        %v1630 = vpop.f32.mrf.mxu0
        %1631 = vdwg.mxu0
        %1633 = vrot.lane.b32.xlu0 %v1519, 120
        %v1634 = vpop.permute.xlu0 %1633
        %1636 = vrot.lane.b32.xlu0 %v1520, 120
        %v1637 = vpop.permute.xlu0 %1636
        %v1639 = vsel %vm826, %v1634, 0
        %v1642 = vsel %vm826, %v1637, 0
        %1644 = vmatprep.subr.bf16.mxu0 0
        %1645 = vmatpush1.bf16.xpose.msra.mxu0 0
        %1646 = vmatprep.subr.bf16.mxu0 0
        %1647 = vmatpush1.bf16.xpose.msra.mxu0 0
        %1648 = vmatprep.subr.bf16.mxu0 0
        %1649 = vmatpush1.bf16.xpose.msra.mxu0 0
        %1650 = vmatprep.subr.bf16.mxu0 0
        %1651 = vmatpush1.bf16.xpose.msra.mxu0 0
        %1652 = vmatprep.subr.bf16.mxu0 0
        %1653 = vmatpush1.bf16.xpose.msra.mxu0 0
        %1654 = vmatprep.subr.bf16.mxu0 0
        %1655 = vmatpush1.bf16.xpose.msra.mxu0 0
        %1656 = vmatprep.subr.bf16.mxu0 0
        %1657 = vmatpush1.bf16.xpose.msra.mxu0 0
        %1658 = vmatprep.subr.bf16.mxu0 0
        %1659 = vmatpush1.bf16.xpose.msra.mxu0 %v1642
        %1660 = vmatprep.subr.bf16.mxu0 0
        %1661 = vmatpush2.bf16.xpose.msra.mxu0 0
        %1662 = vmatprep.subr.bf16.mxu0 0
        %1663 = vmatpush2.bf16.xpose.msra.mxu0 0
        %1664 = vmatprep.subr.bf16.mxu0 0
        %1665 = vmatpush2.bf16.xpose.msra.mxu0 0
        %1666 = vmatprep.subr.bf16.mxu0 0
        %1667 = vmatpush2.bf16.xpose.msra.mxu0 0
        %1668 = vmatprep.subr.bf16.mxu0 0
        %1669 = vmatpush2.bf16.xpose.msra.mxu0 0
        %1670 = vmatprep.subr.bf16.mxu0 0
        %1671 = vmatpush2.bf16.xpose.msra.mxu0 0
        %1672 = vmatprep.subr.bf16.mxu0 0
        %1673 = vmatpush2.bf16.xpose.msra.mxu0 0
        %1674 = vmatprep.subr.bf16.mxu0 0
        %1675 = vmatpush2.bf16.xpose.msra.mxu0 0
        %1676 = vmatprep.mubr.bf16.mxu0 0
        %1677 = vmatmul.mubr.bf16.gmra.mxu0 %v1639
        %v1678 = vpop.f32.mrf.mxu0
        %v1679 = vadd.f32 %v684, %v1678
        %v1680 = vpop.f32.mrf.mxu0
        %v1681 = vpop.f32.mrf.mxu0
        %v1682 = vpop.f32.mrf.mxu0
        %1683 = vdwg.mxu0
        %v1684 = vsel %vm1568, %v1679, -inf
        %1685 = vmax.xlane.f32.xlu0 %v1684
        %v1686 = vpop.xlane.xlu0 %1685
        %v1687 = vsub.f32 %v1679, %v1686
        %v1688 = vmul.f32 %v1687, 1.442695
        %v1689 = vpow.pop %v1688
        %v1690 = vsel %vm1568, %v1689, 0.0
        %1691 = vadd.xlane.f32.xlu0 %v1690
        %v1692 = vpop.xlane.xlu0 %1691
        %v1693 = vrcp.pop %v1692
        %v1694 = vmul.f32 %v1689, %v1693
        %s1695 = scalar_lea.vmem %s645, 8 [#allocation12]
        %1696 = vst.msk [vmem:[%s1695] sm:$0xff] %vm1568, %v1694
        %v1697 = vpack.c.bf16 %v1694, %v1694
        %1698 = vrot.lane.b32.xlu0 %v1521, 88
        %v1699 = vpop.permute.xlu0 %1698
        %v1701 = vsel %vm1568, %v1697, 0
        %v1704 = vsel %vm1588, %v1699, 0
        %1706 = vmatprep.subr.bf16.mxu0 0
        %1707 = vmatpush1.bf16.msra.mxu0 0
        %1708 = vmatprep.subr.bf16.mxu0 0
        %1709 = vmatpush1.bf16.msra.mxu0 0
        %1710 = vmatprep.subr.bf16.mxu0 0
        %1711 = vmatpush1.bf16.msra.mxu0 0
        %1712 = vmatprep.subr.bf16.mxu0 0
        %1713 = vmatpush1.bf16.msra.mxu0 0
        %1714 = vmatprep.subr.bf16.mxu0 0
        %1715 = vmatpush1.bf16.msra.mxu0 0
        %1716 = vmatprep.subr.bf16.mxu0 0
        %1717 = vmatpush1.bf16.msra.mxu0 0
        %1718 = vmatprep.subr.bf16.mxu0 0
        %1719 = vmatpush1.bf16.msra.mxu0 0
        %1720 = vmatprep.subr.bf16.mxu0 0
        %1721 = vmatpush1.bf16.msra.mxu0 %v1704
        %1722 = vmatprep.subr.bf16.mxu0 0
        %1723 = vmatpush2.bf16.msra.mxu0 0
        %1724 = vmatprep.subr.bf16.mxu0 0
        %1725 = vmatpush2.bf16.msra.mxu0 0
        %1726 = vmatprep.subr.bf16.mxu0 0
        %1727 = vmatpush2.bf16.msra.mxu0 0
        %1728 = vmatprep.subr.bf16.mxu0 0
        %1729 = vmatpush2.bf16.msra.mxu0 0
        %1730 = vmatprep.subr.bf16.mxu0 0
        %1731 = vmatpush2.bf16.msra.mxu0 0
        %1732 = vmatprep.subr.bf16.mxu0 0
        %1733 = vmatpush2.bf16.msra.mxu0 0
        %1734 = vmatprep.subr.bf16.mxu0 0
        %1735 = vmatpush2.bf16.msra.mxu0 0
        %1736 = vmatprep.subr.bf16.mxu0 0
        %1737 = vmatpush2.bf16.msra.mxu0 0
        %1738 = vmatprep.mubr.bf16.mxu0 0
        %1739 = vmatmul.mubr.bf16.gmra.mxu0 %v1701
        %v1740 = vpop.f32.mrf.mxu0
        %v1741 = vadd.f32 0.0, %v1740
        %v1742 = vpop.f32.mrf.mxu0
        %v1743 = vpop.f32.mrf.mxu0
        %v1744 = vpop.f32.mrf.mxu0
        %1745 = vdwg.mxu0
        %1746 = vrot.lane.b32.xlu0 %v1519, 112
        %v1747 = vpop.permute.xlu0 %1746
        %1748 = vrot.lane.b32.xlu0 %v1520, 112
        %v1749 = vpop.permute.xlu0 %1748
        %v1751 = vsel %vm826, %v1747, 0
        %v1754 = vsel %vm826, %v1749, 0
        %1756 = vmatprep.subr.bf16.mxu0 0
        %1757 = vmatpush1.bf16.xpose.msra.mxu0 0
        %1758 = vmatprep.subr.bf16.mxu0 0
        %1759 = vmatpush1.bf16.xpose.msra.mxu0 0
        %1760 = vmatprep.subr.bf16.mxu0 0
        %1761 = vmatpush1.bf16.xpose.msra.mxu0 0
        %1762 = vmatprep.subr.bf16.mxu0 0
        %1763 = vmatpush1.bf16.xpose.msra.mxu0 0
        %1764 = vmatprep.subr.bf16.mxu0 0
        %1765 = vmatpush1.bf16.xpose.msra.mxu0 0
        %1766 = vmatprep.subr.bf16.mxu0 0
        %1767 = vmatpush1.bf16.xpose.msra.mxu0 0
        %1768 = vmatprep.subr.bf16.mxu0 0
        %1769 = vmatpush1.bf16.xpose.msra.mxu0 0
        %1770 = vmatprep.subr.bf16.mxu0 0
        %1771 = vmatpush1.bf16.xpose.msra.mxu0 %v1754
        %1772 = vmatprep.subr.bf16.mxu0 0
        %1773 = vmatpush2.bf16.xpose.msra.mxu0 0
        %1774 = vmatprep.subr.bf16.mxu0 0
        %1775 = vmatpush2.bf16.xpose.msra.mxu0 0
        %1776 = vmatprep.subr.bf16.mxu0 0
        %1777 = vmatpush2.bf16.xpose.msra.mxu0 0
        %1778 = vmatprep.subr.bf16.mxu0 0
        %1779 = vmatpush2.bf16.xpose.msra.mxu0 0
        %1780 = vmatprep.subr.bf16.mxu0 0
        %1781 = vmatpush2.bf16.xpose.msra.mxu0 0
        %1782 = vmatprep.subr.bf16.mxu0 0
        %1783 = vmatpush2.bf16.xpose.msra.mxu0 0
        %1784 = vmatprep.subr.bf16.mxu0 0
        %1785 = vmatpush2.bf16.xpose.msra.mxu0 0
        %1786 = vmatprep.subr.bf16.mxu0 0
        %1787 = vmatpush2.bf16.xpose.msra.mxu0 0
        %1788 = vmatprep.mubr.bf16.mxu0 0
        %1789 = vmatmul.mubr.bf16.gmra.mxu0 %v1751
        %v1790 = vpop.f32.mrf.mxu0
        %v1791 = vadd.f32 %v684, %v1790
        %v1792 = vpop.f32.mrf.mxu0
        %v1793 = vpop.f32.mrf.mxu0
        %v1794 = vpop.f32.mrf.mxu0
        %1795 = vdwg.mxu0
        %v1796 = vsel %vm1568, %v1791, -inf
        %1797 = vmax.xlane.f32.xlu0 %v1796
        %v1798 = vpop.xlane.xlu0 %1797
        %v1799 = vsub.f32 %v1791, %v1798
        %v1800 = vmul.f32 %v1799, 1.442695
        %v1801 = vpow.pop %v1800
        %v1802 = vsel %vm1568, %v1801, 0.0
        %1803 = vadd.xlane.f32.xlu0 %v1802
        %v1804 = vpop.xlane.xlu0 %1803
        %v1805 = vrcp.pop %v1804
        %v1806 = vmul.f32 %v1801, %v1805
        %s1807 = scalar_lea.vmem %s645, 16 [#allocation12]
        %1808 = vst.msk [vmem:[%s1807] sm:$0xff] %vm1568, %v1806
        %v1809 = vpack.c.bf16 %v1806, %v1806
        %1810 = vrot.lane.b32.xlu0 %v1521, 80
        %v1811 = vpop.permute.xlu0 %1810
        %v1813 = vsel %vm1568, %v1809, 0
        %v1816 = vsel %vm1588, %v1811, 0
        %1818 = vmatprep.subr.bf16.mxu0 0
        %1819 = vmatpush1.bf16.msra.mxu0 0
        %1820 = vmatprep.subr.bf16.mxu0 0
        %1821 = vmatpush1.bf16.msra.mxu0 0
        %1822 = vmatprep.subr.bf16.mxu0 0
        %1823 = vmatpush1.bf16.msra.mxu0 0
        %1824 = vmatprep.subr.bf16.mxu0 0
        %1825 = vmatpush1.bf16.msra.mxu0 0
        %1826 = vmatprep.subr.bf16.mxu0 0
        %1827 = vmatpush1.bf16.msra.mxu0 0
        %1828 = vmatprep.subr.bf16.mxu0 0
        %1829 = vmatpush1.bf16.msra.mxu0 0
        %1830 = vmatprep.subr.bf16.mxu0 0
        %1831 = vmatpush1.bf16.msra.mxu0 0
        %1832 = vmatprep.subr.bf16.mxu0 0
        %1833 = vmatpush1.bf16.msra.mxu0 %v1816
        %1834 = vmatprep.subr.bf16.mxu0 0
        %1835 = vmatpush2.bf16.msra.mxu0 0
        %1836 = vmatprep.subr.bf16.mxu0 0
        %1837 = vmatpush2.bf16.msra.mxu0 0
        %1838 = vmatprep.subr.bf16.mxu0 0
        %1839 = vmatpush2.bf16.msra.mxu0 0
        %1840 = vmatprep.subr.bf16.mxu0 0
        %1841 = vmatpush2.bf16.msra.mxu0 0
        %1842 = vmatprep.subr.bf16.mxu0 0
        %1843 = vmatpush2.bf16.msra.mxu0 0
        %1844 = vmatprep.subr.bf16.mxu0 0
        %1845 = vmatpush2.bf16.msra.mxu0 0
        %1846 = vmatprep.subr.bf16.mxu0 0
        %1847 = vmatpush2.bf16.msra.mxu0 0
        %1848 = vmatprep.subr.bf16.mxu0 0
        %1849 = vmatpush2.bf16.msra.mxu0 0
        %1850 = vmatprep.mubr.bf16.mxu0 0
        %1851 = vmatmul.mubr.bf16.gmra.mxu0 %v1813
        %v1852 = vpop.f32.mrf.mxu0
        %v1853 = vadd.f32 0.0, %v1852
        %v1854 = vpop.f32.mrf.mxu0
        %v1855 = vpop.f32.mrf.mxu0
        %v1856 = vpop.f32.mrf.mxu0
        %1857 = vdwg.mxu0
        %1858 = vrot.lane.b32.xlu0 %v1519, 104
        %v1859 = vpop.permute.xlu0 %1858
        %1860 = vrot.lane.b32.xlu0 %v1520, 104
        %v1861 = vpop.permute.xlu0 %1860
        %v1863 = vsel %vm826, %v1859, 0
        %v1866 = vsel %vm826, %v1861, 0
        %1868 = vmatprep.subr.bf16.mxu0 0
        %1869 = vmatpush1.bf16.xpose.msra.mxu0 0
        %1870 = vmatprep.subr.bf16.mxu0 0
        %1871 = vmatpush1.bf16.xpose.msra.mxu0 0
        %1872 = vmatprep.subr.bf16.mxu0 0
        %1873 = vmatpush1.bf16.xpose.msra.mxu0 0
        %1874 = vmatprep.subr.bf16.mxu0 0
        %1875 = vmatpush1.bf16.xpose.msra.mxu0 0
        %1876 = vmatprep.subr.bf16.mxu0 0
        %1877 = vmatpush1.bf16.xpose.msra.mxu0 0
        %1878 = vmatprep.subr.bf16.mxu0 0
        %1879 = vmatpush1.bf16.xpose.msra.mxu0 0
        %1880 = vmatprep.subr.bf16.mxu0 0
        %1881 = vmatpush1.bf16.xpose.msra.mxu0 0
        %1882 = vmatprep.subr.bf16.mxu0 0
        %1883 = vmatpush1.bf16.xpose.msra.mxu0 %v1866
        %1884 = vmatprep.subr.bf16.mxu0 0
        %1885 = vmatpush2.bf16.xpose.msra.mxu0 0
        %1886 = vmatprep.subr.bf16.mxu0 0
        %1887 = vmatpush2.bf16.xpose.msra.mxu0 0
        %1888 = vmatprep.subr.bf16.mxu0 0
        %1889 = vmatpush2.bf16.xpose.msra.mxu0 0
        %1890 = vmatprep.subr.bf16.mxu0 0
        %1891 = vmatpush2.bf16.xpose.msra.mxu0 0
        %1892 = vmatprep.subr.bf16.mxu0 0
        %1893 = vmatpush2.bf16.xpose.msra.mxu0 0
        %1894 = vmatprep.subr.bf16.mxu0 0
        %1895 = vmatpush2.bf16.xpose.msra.mxu0 0
        %1896 = vmatprep.subr.bf16.mxu0 0
        %1897 = vmatpush2.bf16.xpose.msra.mxu0 0
        %1898 = vmatprep.subr.bf16.mxu0 0
        %1899 = vmatpush2.bf16.xpose.msra.mxu0 0
        %1900 = vmatprep.mubr.bf16.mxu0 0
        %1901 = vmatmul.mubr.bf16.gmra.mxu0 %v1863
        %v1902 = vpop.f32.mrf.mxu0
        %v1903 = vadd.f32 %v684, %v1902
        %v1904 = vpop.f32.mrf.mxu0
        %v1905 = vpop.f32.mrf.mxu0
        %v1906 = vpop.f32.mrf.mxu0
        %1907 = vdwg.mxu0
        %v1908 = vsel %vm1568, %v1903, -inf
        %1909 = vmax.xlane.f32.xlu0 %v1908
        %v1910 = vpop.xlane.xlu0 %1909
        %v1911 = vsub.f32 %v1903, %v1910
        %v1912 = vmul.f32 %v1911, 1.442695
        %v1913 = vpow.pop %v1912
        %v1914 = vsel %vm1568, %v1913, 0.0
        %1915 = vadd.xlane.f32.xlu0 %v1914
        %v1916 = vpop.xlane.xlu0 %1915
        %v1917 = vrcp.pop %v1916
        %v1918 = vmul.f32 %v1913, %v1917
        %s1919 = scalar_lea.vmem %s645, 24 [#allocation12]
        %1920 = vst.msk [vmem:[%s1919] sm:$0xff] %vm1568, %v1918
        %v1921 = vpack.c.bf16 %v1918, %v1918
        %1922 = vrot.lane.b32.xlu0 %v1521, 72
        %v1923 = vpop.permute.xlu0 %1922
        %v1925 = vsel %vm1568, %v1921, 0
        %v1928 = vsel %vm1588, %v1923, 0
        %1930 = vmatprep.subr.bf16.mxu0 0
        %1931 = vmatpush1.bf16.msra.mxu0 0
        %1932 = vmatprep.subr.bf16.mxu0 0
        %1933 = vmatpush1.bf16.msra.mxu0 0
        %1934 = vmatprep.subr.bf16.mxu0 0
        %1935 = vmatpush1.bf16.msra.mxu0 0
        %1936 = vmatprep.subr.bf16.mxu0 0
        %1937 = vmatpush1.bf16.msra.mxu0 0
        %1938 = vmatprep.subr.bf16.mxu0 0
        %1939 = vmatpush1.bf16.msra.mxu0 0
        %1940 = vmatprep.subr.bf16.mxu0 0
        %1941 = vmatpush1.bf16.msra.mxu0 0
        %1942 = vmatprep.subr.bf16.mxu0 0
        %1943 = vmatpush1.bf16.msra.mxu0 0
        %1944 = vmatprep.subr.bf16.mxu0 0
        %1945 = vmatpush1.bf16.msra.mxu0 %v1928
        %1946 = vmatprep.subr.bf16.mxu0 0
        %1947 = vmatpush2.bf16.msra.mxu0 0
        %1948 = vmatprep.subr.bf16.mxu0 0
        %1949 = vmatpush2.bf16.msra.mxu0 0
        %1950 = vmatprep.subr.bf16.mxu0 0
        %1951 = vmatpush2.bf16.msra.mxu0 0
        %1952 = vmatprep.subr.bf16.mxu0 0
        %1953 = vmatpush2.bf16.msra.mxu0 0
        %1954 = vmatprep.subr.bf16.mxu0 0
        %1955 = vmatpush2.bf16.msra.mxu0 0
        %1956 = vmatprep.subr.bf16.mxu0 0
        %1957 = vmatpush2.bf16.msra.mxu0 0
        %1958 = vmatprep.subr.bf16.mxu0 0
        %1959 = vmatpush2.bf16.msra.mxu0 0
        %1960 = vmatprep.subr.bf16.mxu0 0
        %1961 = vmatpush2.bf16.msra.mxu0 0
        %1962 = vmatprep.mubr.bf16.mxu0 0
        %1963 = vmatmul.mubr.bf16.gmra.mxu0 %v1925
        %v1964 = vpop.f32.mrf.mxu0
        %v1965 = vadd.f32 0.0, %v1964
        %v1966 = vpop.f32.mrf.mxu0
        %v1967 = vpop.f32.mrf.mxu0
        %v1968 = vpop.f32.mrf.mxu0
        %1969 = vdwg.mxu0
        %1971 = vrot.lane.b32.xlu0 %v1741, 8
        %v1972 = vpop.permute.xlu0 %1971
        %1975 = vrot.lane.b32.xlu0 %v1853, 16
        %v1976 = vpop.permute.xlu0 %1975
        %1979 = vrot.lane.b32.xlu0 %v1965, 24
        %v1980 = vpop.permute.xlu0 %1979
        %v1982 = vsel %vm826, %v1627, %v1972
        %v1983 = vsel %vm1280, %v1982, %v1976
        %v1984 = vsel %vm1282, %v1983, %v1980
        %v1985 = vpack.c.bf16 %v1984, %v1984
        %v1986 = vld [vmem:[#allocation8] sm:$0xf]
        %v1987 = vld [vmem:[#allocation8 + $0x4] sm:$0xf]
        %v1988 = vld [vmem:[#allocation8 + $0x8] sm:$0xf]
        %v1989 = vld [vmem:[#allocation8 + $0xc] sm:$0xf]
        %v1990 = vlaneseq
        %v1991 = vshrl.u32 %v1990, 7
        %v1992 = vsub.s32 1, %v1991
        %v1993 = vrot.slane %v662, %v1992
        %v1998 = vunpack.c.l.b16 %v1986
        %v1999 = vunpack.c.l.b16 %v1987
        %v2000 = vunpack.c.l.b16 %v1988
        %v2001 = vunpack.c.l.b16 %v1989
        %v2002 = vpack.c.b16 %v1999, %v1998
        %v2003 = vpack.c.b16 %v2001, %v2000
        %v2007 = vsel %vm706, %v1985, 0
        %2009 = vmatprep.subr.bf16.mxu0 0
        %2010 = vmatpush1.bf16.msra.mxu0 0
        %2011 = vmatprep.subr.bf16.mxu0 0
        %2012 = vmatpush1.bf16.msra.mxu0 0
        %2013 = vmatprep.subr.bf16.mxu0 0
        %2014 = vmatpush1.bf16.msra.mxu0 0
        %2015 = vmatprep.subr.bf16.mxu0 0
        %2016 = vmatpush1.bf16.msra.mxu0 0
        %2017 = vmatprep.subr.bf16.mxu0 0
        %2018 = vmatpush1.bf16.msra.mxu0 0
        %2019 = vmatprep.subr.bf16.mxu0 0
        %2020 = vmatpush1.bf16.msra.mxu0 0
        %2021 = vmatprep.subr.bf16.mxu0 0
        %2022 = vmatpush1.bf16.msra.mxu0 %v2003
        %2023 = vmatprep.subr.bf16.mxu0 0
        %2024 = vmatpush1.bf16.msra.mxu0 %v2002
        %2025 = vmatprep.subr.bf16.mxu0 0
        %2026 = vmatpush2.bf16.msra.mxu0 0
        %2027 = vmatprep.subr.bf16.mxu0 0
        %2028 = vmatpush2.bf16.msra.mxu0 0
        %2029 = vmatprep.subr.bf16.mxu0 0
        %2030 = vmatpush2.bf16.msra.mxu0 0
        %2031 = vmatprep.subr.bf16.mxu0 0
        %2032 = vmatpush2.bf16.msra.mxu0 0
        %2033 = vmatprep.subr.bf16.mxu0 0
        %2034 = vmatpush2.bf16.msra.mxu0 0
        %2035 = vmatprep.subr.bf16.mxu0 0
        %2036 = vmatpush2.bf16.msra.mxu0 0
        %2037 = vmatprep.subr.bf16.mxu0 0
        %2038 = vmatpush2.bf16.msra.mxu0 0
        %2039 = vmatprep.subr.bf16.mxu0 0
        %2040 = vmatpush2.bf16.msra.mxu0 0
        %2041 = vmatprep.mubr.bf16.mxu0 0
        %2042 = vmatmul.mubr.bf16.gmra.mxu0 %v2007
        %v2043 = vpop.f32.mrf.mxu0
        %v2044 = vadd.f32 %v1993, %v2043
        %v2045 = vpop.f32.mrf.mxu0
        %v2046 = vpop.f32.mrf.mxu0
        %v2047 = vpop.f32.mrf.mxu0
        %2048 = vdwg.mxu0
        %v2049 = vadd.f32 %v1373, %v2044
        %v2050 = vsel %vm706, %v2049, 0.0
        %2051 = vadd.xlane.f32.xlu0 %v2050
        %v2052 = vpop.xlane.xlu0 %2051
        %v2053 = vmul.f32 %v2052, %v1353
        %v2054 = vsub.f32 %v2049, %v2053
        %v2055 = vmul.f32 %v2054, %v2054
        %v2056 = vsel %vm706, %v2055, 0.0
        %2057 = vadd.xlane.f32.xlu0 %v2056
        %v2058 = vpop.xlane.xlu0 %2057
        %v2059 = vmul.f32 %v2058, %v1353
        %v2060 = vadd.f32 %v2059, 1e-05
        %v2061 = vrsqrt.pop %v2060
        %v2062 = vmul.f32 %v2054, %v2061
        %v2063 = vlaneseq
        %v2064 = vshrl.u32 %v2063, 7
        %v2065 = vsub.s32 2, %v2064
        %v2066 = vrot.slane %v662, %v2065
        %v2067 = vmul.f32 %v2062, %v2066
        %v2068 = vlaneseq
        %v2069 = vshrl.u32 %v2068, 7
        %v2070 = vsub.s32 3, %v2069
        %v2071 = vrot.slane %v662, %v2070
        %v2072 = vadd.f32 %v2067, %v2071
        %v2073 = vpack.c.bf16 %v2072, %v2072
        %v2074 = vld [vmem:[#allocation10] sm:$0xf]
        %v2075 = vld [vmem:[#allocation10 + $0x4] sm:$0xf]
        %v2076 = vld [vmem:[#allocation10 + $0x8] sm:$0xf]
        %v2077 = vld [vmem:[#allocation10 + $0xc] sm:$0xf]
        %v2078 = vld [vmem:[%s13] sm:$0x1]
        %v2080 = vlaneseq
        %v2081 = vshrl.u32 %v2080, 7
        %v2082 = vsub.s32 0, %v2081
        %v2083 = vrot.slane %v2078, %v2082
        %v2089 = vunpack.c.l.b16 %v2074
        %v2090 = vunpack.c.l.b16 %v2075
        %v2091 = vunpack.c.l.b16 %v2076
        %v2092 = vunpack.c.l.b16 %v2077
        %v2093 = vpack.c.b16 %v2090, %v2089
        %v2094 = vpack.c.b16 %v2092, %v2091
        %v2098 = vsel %vm706, %v2073, 0
        %2100 = vmatprep.subr.bf16.mxu0 0
        %2101 = vmatpush1.bf16.msra.mxu0 0
        %2102 = vmatprep.subr.bf16.mxu0 0
        %2103 = vmatpush1.bf16.msra.mxu0 0
        %2104 = vmatprep.subr.bf16.mxu0 0
        %2105 = vmatpush1.bf16.msra.mxu0 0
        %2106 = vmatprep.subr.bf16.mxu0 0
        %2107 = vmatpush1.bf16.msra.mxu0 0
        %2108 = vmatprep.subr.bf16.mxu0 0
        %2109 = vmatpush1.bf16.msra.mxu0 0
        %2110 = vmatprep.subr.bf16.mxu0 0
        %2111 = vmatpush1.bf16.msra.mxu0 0
        %2112 = vmatprep.subr.bf16.mxu0 0
        %2113 = vmatpush1.bf16.msra.mxu0 %v2094
        %2114 = vmatprep.subr.bf16.mxu0 0
        %2115 = vmatpush1.bf16.msra.mxu0 %v2093
        %2116 = vmatprep.subr.bf16.mxu0 0
        %2117 = vmatpush2.bf16.msra.mxu0 0
        %2118 = vmatprep.subr.bf16.mxu0 0
        %2119 = vmatpush2.bf16.msra.mxu0 0
        %2120 = vmatprep.subr.bf16.mxu0 0
        %2121 = vmatpush2.bf16.msra.mxu0 0
        %2122 = vmatprep.subr.bf16.mxu0 0
        %2123 = vmatpush2.bf16.msra.mxu0 0
        %2124 = vmatprep.subr.bf16.mxu0 0
        %2125 = vmatpush2.bf16.msra.mxu0 0
        %2126 = vmatprep.subr.bf16.mxu0 0
        %2127 = vmatpush2.bf16.msra.mxu0 0
        %2128 = vmatprep.subr.bf16.mxu0 0
        %2129 = vmatpush2.bf16.msra.mxu0 0
        %2130 = vmatprep.subr.bf16.mxu0 0
        %2131 = vmatpush2.bf16.msra.mxu0 0
        %2132 = vmatprep.mubr.bf16.mxu0 0
        %2133 = vmatmul.mubr.bf16.gmra.mxu0 %v2098
        %v2134 = vpop.f32.mrf.mxu0
        %v2135 = vadd.f32 %v2083, %v2134
        %v2136 = vpop.f32.mrf.mxu0
        %v2137 = vpop.f32.mrf.mxu0
        %v2138 = vpop.f32.mrf.mxu0
        %2139 = vdwg.mxu0
        %v2140 = vmax.f32 %v2135, 0.0
        %v2141 = vpack.c.bf16 %v2140, %v2140
        %v2142 = vld [vmem:[%s11] sm:$0xf]
        %v2143 = vld [vmem:[%s11 + $0x4] sm:$0xf]
        %v2144 = vld [vmem:[%s11 + $0x8] sm:$0xf]
        %v2145 = vld [vmem:[%s11 + $0xc] sm:$0xf]
        %v2146 = vld [vmem:[%s11 + $0x10] sm:$0xf]
        %v2147 = vld [vmem:[%s11 + $0x14] sm:$0xf]
        %v2148 = vld [vmem:[%s11 + $0x18] sm:$0xf]
        %v2149 = vld [vmem:[%s11 + $0x1c] sm:$0xf]
        %v2150 = vlaneseq
        %v2151 = vshrl.u32 %v2150, 7
        %v2152 = vsub.s32 4, %v2151
        %v2153 = vrot.slane %v662, %v2152
        %v2162 = vunpack.c.l.b16 %v2142
        %v2163 = vunpack.c.l.b16 %v2143
        %v2164 = vunpack.c.l.b16 %v2144
        %v2165 = vunpack.c.l.b16 %v2145
        %v2166 = vunpack.c.l.b16 %v2146
        %v2167 = vunpack.c.l.b16 %v2147
        %v2168 = vunpack.c.l.b16 %v2148
        %v2169 = vunpack.c.l.b16 %v2149
        %v2170 = vpack.c.b16 %v2163, %v2162
        %v2171 = vpack.c.b16 %v2165, %v2164
        %v2172 = vpack.c.b16 %v2167, %v2166
        %v2173 = vpack.c.b16 %v2169, %v2168
        %vm2178 = vcmask 523264
        %v2180 = vsel %vm2178, %v2141, 0
        %2182 = vmatprep.subr.bf16.mxu0 0
        %2183 = vmatpush1.bf16.msra.mxu0 0
        %2184 = vmatprep.subr.bf16.mxu0 0
        %2185 = vmatpush1.bf16.msra.mxu0 0
        %2186 = vmatprep.subr.bf16.mxu0 0
        %2187 = vmatpush1.bf16.msra.mxu0 0
        %2188 = vmatprep.subr.bf16.mxu0 0
        %2189 = vmatpush1.bf16.msra.mxu0 0
        %2190 = vmatprep.subr.bf16.mxu0 0
        %2191 = vmatpush1.bf16.msra.mxu0 %v2173
        %2192 = vmatprep.subr.bf16.mxu0 0
        %2193 = vmatpush1.bf16.msra.mxu0 %v2172
        %2194 = vmatprep.subr.bf16.mxu0 0
        %2195 = vmatpush1.bf16.msra.mxu0 %v2171
        %2196 = vmatprep.subr.bf16.mxu0 0
        %2197 = vmatpush1.bf16.msra.mxu0 %v2170
        %2198 = vmatprep.subr.bf16.mxu0 0
        %2199 = vmatpush2.bf16.msra.mxu0 0
        %2200 = vmatprep.subr.bf16.mxu0 0
        %2201 = vmatpush2.bf16.msra.mxu0 0
        %2202 = vmatprep.subr.bf16.mxu0 0
        %2203 = vmatpush2.bf16.msra.mxu0 0
        %2204 = vmatprep.subr.bf16.mxu0 0
        %2205 = vmatpush2.bf16.msra.mxu0 0
        %2206 = vmatprep.subr.bf16.mxu0 0
        %2207 = vmatpush2.bf16.msra.mxu0 0
        %2208 = vmatprep.subr.bf16.mxu0 0
        %2209 = vmatpush2.bf16.msra.mxu0 0
        %2210 = vmatprep.subr.bf16.mxu0 0
        %2211 = vmatpush2.bf16.msra.mxu0 0
        %2212 = vmatprep.subr.bf16.mxu0 0
        %2213 = vmatpush2.bf16.msra.mxu0 0
        %2214 = vmatprep.mubr.bf16.mxu0 0
        %2215 = vmatmul.mubr.bf16.gmra.mxu0 %v2180
        %v2216 = vpop.f32.mrf.mxu0
        %v2217 = vadd.f32 %v2153, %v2216
        %v2218 = vpop.f32.mrf.mxu0
        %v2219 = vpop.f32.mrf.mxu0
        %v2220 = vpop.f32.mrf.mxu0
        %2221 = vdwg.mxu0
        %v2222 = vadd.f32 %v2072, %v2217
        %v2223 = vsel %vm706, %v2222, 0.0
        %2224 = vadd.xlane.f32.xlu0 %v2223
        %v2225 = vpop.xlane.xlu0 %2224
        %v2226 = vmul.f32 %v2225, %v1353
        %v2227 = vsub.f32 %v2222, %v2226
        %v2228 = vmul.f32 %v2227, %v2227
        %v2229 = vsel %vm706, %v2228, 0.0
        %2230 = vadd.xlane.f32.xlu0 %v2229
        %v2231 = vpop.xlane.xlu0 %2230
        %v2232 = vmul.f32 %v2231, %v1353
        %v2233 = vadd.f32 %v2232, 1e-05
        %v2234 = vrsqrt.pop %v2233
        %v2235 = vmul.f32 %v2227, %v2234
        %v2236 = vlaneseq
        %v2237 = vshrl.u32 %v2236, 7
        %v2238 = vsub.s32 5, %v2237
        %v2239 = vrot.slane %v662, %v2238
        %v2240 = vmul.f32 %v2235, %v2239
        %v2241 = vlaneseq
        %v2242 = vshrl.u32 %v2241, 7
        %v2243 = vsub.s32 6, %v2242
        %v2244 = vrot.slane %v662, %v2243
        %v2245 = vadd.f32 %v2240, %v2244
        %2246 = vst.msk [vmem:[%s638] sm:$0xff] %vm706, %v2245
        %s2247 = sand.u32 %s376, 1
        %s2248 = scalar_lea.sflag [#allocation4], %s2247
        %s2249 = sand.u32 %s376, 1
        %s2250 = smul.addr %s2249, 8
        %s2251 = scalar_lea.vmem [#allocation11], %s2250
        %s2252 = sand.u32 %s404, 1
        %s2253 = scalar_lea.sflag [#allocation13], %s2252
        %s2254 = sand.u32 %s404, 1
        %s2255 = smul.addr %s2254, 32
        %s2256 = scalar_lea.vmem [#allocation12], %s2255
        // Predicated region
        $region97: #{tpu_custom_call.1} parent=75 // pred_check
          %p2257 = pneg %p386
        $region98: #{tpu_custom_call.1} parent=75 // pred_check_branch
          %2259 = sbr.rel (%p2257) target = $region100
        $region99: #{tpu_custom_call.1} parent=75 // pred_region
          %s2261 = ssub.s32 128, 128
          %2262 = vsyncadd %s2248, %s2261
          %s2263 = sadd.s32 %s45, %s44
          %s2264 = smul.addr %s2263, 128
          %s2265 = scalar_lea.hbm %s14, %s2264
          %s2267 = sshll.u32 %s2251, 4
          %s2268 = int_to_ptr.vmem [resolvable:$true] %s2267
          %2270 = dma.vmem_to_hbm [thread:$0]  %s2268, 128, %s2265, %s2248
        $region100: #{tpu_custom_call.1} parent=75 // pred_fallthru
          _
        // Predicated region
        $region101: #{tpu_custom_call.1} parent=75 // pred_check
          %p2271 = pneg %p414
        $region102: #{tpu_custom_call.1} parent=75 // pred_check_branch
          %2273 = sbr.rel (%p2271) target = $region104
        $region103: #{tpu_custom_call.1} parent=75 // pred_region
          %s2275 = ssub.s32 512, 512
          %2276 = vsyncadd %s2253, %s2275
          %s2277 = smul.addr %s44, 4
          %s2278 = sadd.s32 %s45, %s2277
          %s2279 = smul.addr %s2278, 128
          %s2280 = scalar_lea.hbm %s15, %s2279
          %s2281 = sshll.u32 %s2256, 4
          %s2282 = int_to_ptr.vmem [resolvable:$true] %s2281
          %2287 = dma.vmem_to_hbm [thread:$0]  %s2282, 512, %s2280, %s2253, 128, 128, 8
        $region104: #{tpu_custom_call.1} parent=75 // pred_fallthru
          _
      $region76: #{tpu_custom_call.1} parent=5 // pred_fallthru
        _
      %p2288 = scmp.le.s32.totalorder 2, %s35
      // Predicated region
      $region105: #{tpu_custom_call.1} parent=5 // pred_check
        %p2289 = pneg %p2288
      $region106: #{tpu_custom_call.1} parent=5 // pred_check_branch
        %2291 = sbr.rel (%p2289) target = $region108
      $region107: #{tpu_custom_call.1} parent=5 // pred_region
        %s2292 = ssub.s32 %s35, 2
        // Predicated region
        $region109: #{tpu_custom_call.1} parent=107 // pred_check
          %p2293 = pneg %p392
        $region110: #{tpu_custom_call.1} parent=107 // pred_check_branch
          %2295 = sbr.rel (%p2293) target = $region112
        $region111: #{tpu_custom_call.1} parent=107 // pred_region
          %s2296 = sand.u32 %s377, 1
          %s2297 = scalar_lea.sflag [#allocation4], %s2296
          %s2298 = sand.u32 %s377, 1
          %s2299 = smul.addr %s2298, 8
          %s2300 = scalar_lea.vmem [#allocation11], %s2299
          %2301 = dma.done %s2297, 128
        $region112: #{tpu_custom_call.1} parent=107 // pred_fallthru
          _
        // Predicated region
        $region113: #{tpu_custom_call.1} parent=107 // pred_check
          %p2302 = pneg %p420
        $region114: #{tpu_custom_call.1} parent=107 // pred_check_branch
          %2304 = sbr.rel (%p2302) target = $region116
        $region115: #{tpu_custom_call.1} parent=107 // pred_region
          %s2305 = sand.u32 %s405, 1
          %s2306 = scalar_lea.sflag [#allocation13], %s2305
          %s2307 = sand.u32 %s405, 1
          %s2308 = smul.addr %s2307, 32
          %s2309 = scalar_lea.vmem [#allocation12], %s2308
          %2310 = dma.done %s2306, 512
        $region116: #{tpu_custom_call.1} parent=107 // pred_fallthru
          _
      $region108: #{tpu_custom_call.1} parent=5 // pred_fallthru
        _
    $region6: #{tpu_custom_call.1} parent=1 // loop_footer
      %s39 = sadd.s32 1, %s35
    $region7: #{tpu_custom_call.1} parent=1 // loop_footer_branch
      %34 = sbr.rel target = $region3
    $region8: #{tpu_custom_call.1} parent=1 // loop_exit
      _
    %2311 = vsyncpa [#allocation3], 1
    %s2312 = scalar_lea.sflag [#allocation3], 1
    %2313 = vsyncpa %s2312, 1
    %2314 = vsyncpa [#allocation6], 1
    %s2315 = scalar_lea.sflag [#allocation6], 1
    %2316 = vsyncpa %s2315, 1
    %2317 = vsyncpa [#allocation9], 1
    %2318 = vsyncpa [#allocation4], 1
    %s2319 = scalar_lea.sflag [#allocation4], 1
    %2320 = vsyncpa %s2319, 1
    %2321 = vsyncpa [#allocation13], 1
    %s2322 = scalar_lea.sflag [#allocation13], 1
    %2323 = vsyncpa %s2322, 1

// kernel: tpu_custom_call.1
$region0: #{tpu_custom_call.1}
  #allocation0 [shape = 'u32[]', space=smem, size = 0x4, offset = 0x4, fixed_abs, tag = 'smem constant byte address 0x4 - core index']
  #allocation1 [shape = 'u32[144,128]{1,0:T(1,128)}', space=vmem, size = 0x12000, scoped, tag = 'internal scratch']
  %s0 = inlined_call_operand.hbm [shape: bf16[2,8,32], index: 0, kind: input, shape index: {}]
  %s1 = inlined_call_operand.vmem [shape: bf16[2,12,32], index: 1, kind: input, shape index: {}]
  %s2 = inlined_call_operand.hbm [shape: f32[2,1,8], index: 2, kind: input, shape index: {}]
  %s3 = inlined_call_operand.hbm [shape: f32[2,1,12], index: 3, kind: input, shape index: {}]
  %s4 = inlined_call_operand.vmem [shape: bf16[32,32], index: 4, kind: input, shape index: {}]
  %s5 = inlined_call_operand.vmem [shape: bf16[32,64], index: 5, kind: input, shape index: {}]
  %s6 = inlined_call_operand.vmem [shape: bf16[32,32], index: 6, kind: input, shape index: {}]
  %s7 = inlined_call_operand.vmem [shape: bf16[32,32], index: 7, kind: input, shape index: {}]
  %s8 = inlined_call_operand.vmem [shape: bf16[32,64], index: 8, kind: input, shape index: {}]
  %s9 = inlined_call_operand.hbm [shape: bf16[32,32], index: 9, kind: input, shape index: {}]
  %s10 = inlined_call_operand.hbm [shape: bf16[32,64], index: 10, kind: input, shape index: {}]
  %s11 = inlined_call_operand.vmem [shape: bf16[64,32], index: 11, kind: input, shape index: {}]
  %s12 = inlined_call_operand.vmem [shape: f32[16,32], index: 12, kind: input, shape index: {}]
  %s13 = inlined_call_operand.vmem [shape: f32[1,64], index: 13, kind: input, shape index: {}]
  %s14 = inlined_call_operand.hbm [shape: f32[2,8,32], index: 14, kind: output, shape index: {0}]
  %s15 = inlined_call_operand.hbm [shape: f32[2,4,8,12], index: 15, kind: output, shape index: {1}]
  %16 = xla_tuple %s14, %s15
  %s17 = sld [smem:[#allocation0]]
  $region117: #{tpu_custom_call.1} parent=0
    _
  %s19 = ssub.s32 1, %s17
  %s20 = scalar_select 0, %s19, %s17
  $region1: #{tpu_custom_call.1} parent=0
    #allocation2 [shape = 'u8[4096]{0}', space=vmem, size = 0x1000, scoped, tag = 'input window, operand 0']
    #allocation3 [shape = 's32[2]{0}', space=sflag, size = 0x8, scoped, tag = 'scoped memory for tpu_custom_call.1']
    #allocation4 [shape = 's32[2]{0}', space=sflag, size = 0x8, scoped, tag = 'scoped memory for tpu_custom_call.1']
    #allocation5 [shape = 'u8[1024]{0}', space=vmem, size = 0x400, scoped, tag = 'input window, operand 2']
    #allocation6 [shape = 's32[2]{0}', space=sflag, size = 0x8, scoped, tag = 'scoped memory for tpu_custom_call.1']
    #allocation7 [shape = 'u8[1024]{0}', space=vmem, size = 0x400, scoped, tag = 'input window, operand 3']
    #allocation8 [shape = 'u8[8192]{0}', space=vmem, size = 0x2000, scoped, tag = 'input window, operand 9, single buffered']
    #allocation9 [shape = 's32[1]{0}', space=sflag, size = 0x4, scoped, tag = 'scoped memory for tpu_custom_call.1']
    #allocation10 [shape = 'u8[8192]{0}', space=vmem, size = 0x2000, scoped, tag = 'input window, operand 10, single buffered']
    #allocation11 [shape = 'u8[8192]{0}', space=vmem, size = 0x2000, scoped, tag = 'output window, operand 0']
    #allocation12 [shape = 'u8[32768]{0}', space=vmem, size = 0x8000, scoped, tag = 'output window, operand 1']
    #allocation13 [shape = 's32[2]{0}', space=sflag, size = 0x8, scoped, tag = 'scoped memory for tpu_custom_call.1']
    %21 = vsyncpa [#allocation3], 0
    %s22 = scalar_lea.sflag [#allocation3], 1
    %23 = vsyncpa %s22, 0
    %24 = vsyncpa [#allocation6], 0
    %s25 = scalar_lea.sflag [#allocation6], 1
    %26 = vsyncpa %s25, 0
    %27 = vsyncpa [#allocation9], 0
    %28 = vsyncpa [#allocation4], 0
    %s29 = scalar_lea.sflag [#allocation4], 1
    %30 = vsyncpa %s29, 0
    %31 = vsyncpa [#allocation13], 0
    %s32 = scalar_lea.sflag [#allocation13], 1
    %33 = vsyncpa %s32, 0
    loop: start=0, step=1, limit=4
    $region2: #{tpu_custom_call.1} parent=1 // loop_pre_header
      _
    $region3: #{tpu_custom_call.1} parent=1 // loop_header
      %s35 = sphi 0, %s39
      %p36 = scmp.ge.s32.totalorder %s35, 4
      %s42 = sphi 0, %s54
      %s43 = sphi 0, %s50
      %s44 = sphi 0, %s42
      %s45 = sphi 0, %s43
      %s46 = sphi 0, %s44
      %s47 = sphi 0, %s45
      %s57 = sphi 0, %s59
      %s60 = sphi 0, %s57
      %s61 = sphi 0, %s60
      %s77 = sphi 0, %s61
      %s83 = sphi 0, %s85
      %s86 = sphi 0, %s83
      %s87 = sphi 0, %s86
      %s103 = sphi 0, %s87
      %s109 = sphi 0, %s111
      %s112 = sphi 0, %s109
      %s113 = sphi 0, %s112
      %s129 = sphi 0, %s113
      %s135 = sphi 0, %s137
      %s138 = sphi 0, %s135
      %s139 = sphi 0, %s138
      %s155 = sphi 0, %s139
      %s159 = sphi 0, %s159
      %s161 = sphi 0, %s159
      %s162 = sphi 0, %s161
      %s176 = sphi 0, %s162
      %s180 = sphi 0, %s180
      %s182 = sphi 0, %s180
      %s183 = sphi 0, %s182
      %s197 = sphi 0, %s183
      %s201 = sphi 0, %s201
      %s203 = sphi 0, %s201
      %s204 = sphi 0, %s203
      %s218 = sphi 0, %s204
      %s222 = sphi 0, %s222
      %s224 = sphi 0, %s222
      %s225 = sphi 0, %s224
      %s239 = sphi 0, %s225
      %s243 = sphi 0, %s243
      %s245 = sphi 0, %s243
      %s246 = sphi 0, %s245
      %s260 = sphi 0, %s246
      %s264 = sphi 0, %s264
      %s266 = sphi 0, %s264
      %s267 = sphi 0, %s266
      %s281 = sphi 0, %s267
      %s285 = sphi 0, %s285
      %s287 = sphi 0, %s285
      %s288 = sphi 0, %s287
      %s302 = sphi 0, %s288
      %s306 = sphi 0, %s306
      %s308 = sphi 0, %s306
      %s309 = sphi 0, %s308
      %s323 = sphi 0, %s309
      %s327 = sphi 0, %s327
      %s329 = sphi 0, %s327
      %s330 = sphi 0, %s329
      %s344 = sphi 0, %s330
      %s348 = sphi 0, %s348
      %s350 = sphi 0, %s348
      %s351 = sphi 0, %s350
      %s365 = sphi 0, %s351
      %s373 = sphi 0, %s375
      %s376 = sphi 0, %s373
      %s377 = sphi 0, %s376
      %s393 = sphi 0, %s377
      %s401 = sphi 0, %s403
      %s404 = sphi 0, %s401
      %s405 = sphi 0, %s404
      %s421 = sphi 0, %s405
    $region4: #{tpu_custom_call.1} parent=1 // loop_header_branch
      %38 = sbr.rel (%p36) target = $region8
    $region5: #{tpu_custom_call.1} parent=1 // loop_body
      %s40 = ssub.s32 %s35, 1
      %s41 = ssub.s32 %s35, 2
      %s48 = sadd.s32 1, %s43
      %p49 = scmp.ge.s32.totalorder %s48, 1
      %s50 = scalar_select %p49, 0, %s48
      %s51 = sadd.s32 1, %s42
      %s52 = scalar_select %p49, %s51, %s42
      %p53 = scmp.ge.s32.totalorder %s52, 2
      %s54 = scalar_select %p53, 0, %s52
      %s55 = ssub.s32 %s42, %s54
      %p56 = scmp.eq.s32.totalorder %s55, 0
      %s58 = sadd.s32 %s57, 1
      %s59 = scalar_select %p56, %s57, %s58
      %p62 = pneg %p56
      %p63 = scmp.eq.s32.totalorder %s35, 1
      %p64 = por %p62, %p63
      %p65 = scmp.ne.s32.totalorder %s57, %s60
      %p66 = scmp.eq.s32.totalorder %s35, 0
      %p67 = por %p65, %p66
      %p68 = scmp.ne.s32.totalorder %s57, %s60
      %p69 = scmp.eq.s32.totalorder %s40, 1
      %p70 = por %p68, %p69
      %p71 = scmp.ne.s32.totalorder %s60, %s61
      %p72 = scmp.eq.s32.totalorder %s40, 0
      %p73 = por %p71, %p72
      %p74 = scmp.ne.s32.totalorder %s60, %s61
      %p75 = scmp.eq.s32.totalorder %s41, 1
      %p76 = por %p74, %p75
      %p78 = scmp.ne.s32.totalorder %s61, %s77
      %p79 = scmp.eq.s32.totalorder %s41, 0
      %p80 = por %p78, %p79
      %s81 = ssub.s32 %s42, %s54
      %p82 = scmp.eq.s32.totalorder %s81, 0
      %s84 = sadd.s32 %s83, 1
      %s85 = scalar_select %p82, %s83, %s84
      %p88 = pneg %p82
      %p89 = scmp.eq.s32.totalorder %s35, 1
      %p90 = por %p88, %p89
      %p91 = scmp.ne.s32.totalorder %s83, %s86
      %p92 = scmp.eq.s32.totalorder %s35, 0
      %p93 = por %p91, %p92
      %p94 = scmp.ne.s32.totalorder %s83, %s86
      %p95 = scmp.eq.s32.totalorder %s40, 1
      %p96 = por %p94, %p95
      %p97 = scmp.ne.s32.totalorder %s86, %s87
      %p98 = scmp.eq.s32.totalorder %s40, 0
      %p99 = por %p97, %p98
      %p100 = scmp.ne.s32.totalorder %s86, %s87
      %p101 = scmp.eq.s32.totalorder %s41, 1
      %p102 = por %p100, %p101
      %p104 = scmp.ne.s32.totalorder %s87, %s103
      %p105 = scmp.eq.s32.totalorder %s41, 0
      %p106 = por %p104, %p105
      %s107 = ssub.s32 %s42, %s54
      %p108 = scmp.eq.s32.totalorder %s107, 0
      %s110 = sadd.s32 %s109, 1
      %s111 = scalar_select %p108, %s109, %s110
      %p114 = pneg %p108
      %p115 = scmp.eq.s32.totalorder %s35, 1
      %p116 = por %p114, %p115
      %p117 = scmp.ne.s32.totalorder %s109, %s112
      %p118 = scmp.eq.s32.totalorder %s35, 0
      %p119 = por %p117, %p118
      %p120 = scmp.ne.s32.totalorder %s109, %s112
      %p121 = scmp.eq.s32.totalorder %s40, 1
      %p122 = por %p120, %p121
      %p123 = scmp.ne.s32.totalorder %s112, %s113
      %p124 = scmp.eq.s32.totalorder %s40, 0
      %p125 = por %p123, %p124
      %p126 = scmp.ne.s32.totalorder %s112, %s113
      %p127 = scmp.eq.s32.totalorder %s41, 1
      %p128 = por %p126, %p127
      %p130 = scmp.ne.s32.totalorder %s113, %s129
      %p131 = scmp.eq.s32.totalorder %s41, 0
      %p132 = por %p130, %p131
      %s133 = ssub.s32 %s42, %s54
      %p134 = scmp.eq.s32.totalorder %s133, 0
      %s136 = sadd.s32 %s135, 1
      %s137 = scalar_select %p134, %s135, %s136
      %p140 = pneg %p134
      %p141 = scmp.eq.s32.totalorder %s35, 1
      %p142 = por %p140, %p141
      %p143 = scmp.ne.s32.totalorder %s135, %s138
      %p144 = scmp.eq.s32.totalorder %s35, 0
      %p145 = por %p143, %p144
      %p146 = scmp.ne.s32.totalorder %s135, %s138
      %p147 = scmp.eq.s32.totalorder %s40, 1
      %p148 = por %p146, %p147
      %p149 = scmp.ne.s32.totalorder %s138, %s139
      %p150 = scmp.eq.s32.totalorder %s40, 0
      %p151 = por %p149, %p150
      %p152 = scmp.ne.s32.totalorder %s138, %s139
      %p153 = scmp.eq.s32.totalorder %s41, 1
      %p154 = por %p152, %p153
      %p156 = scmp.ne.s32.totalorder %s139, %s155
      %p157 = scmp.eq.s32.totalorder %s41, 0
      %p158 = por %p156, %p157
      %s160 = sadd.s32 %s159, 1
      %p163 = scmp.eq.s32.totalorder %s35, 1
      %p164 = scmp.ne.s32.totalorder %s159, %s161
      %p165 = scmp.eq.s32.totalorder %s35, 0
      %p166 = por %p164, %p165
      %p167 = scmp.ne.s32.totalorder %s159, %s161
      %p168 = scmp.eq.s32.totalorder %s40, 1
      %p169 = por %p167, %p168
      %p170 = scmp.ne.s32.totalorder %s161, %s162
      %p171 = scmp.eq.s32.totalorder %s40, 0
      %p172 = por %p170, %p171
      %p173 = scmp.ne.s32.totalorder %s161, %s162
      %p174 = scmp.eq.s32.totalorder %s41, 1
      %p175 = por %p173, %p174
      %p177 = scmp.ne.s32.totalorder %s162, %s176
      %p178 = scmp.eq.s32.totalorder %s41, 0
      %p179 = por %p177, %p178
      %s181 = sadd.s32 %s180, 1
      %p184 = scmp.eq.s32.totalorder %s35, 1
      %p185 = scmp.ne.s32.totalorder %s180, %s182
      %p186 = scmp.eq.s32.totalorder %s35, 0
      %p187 = por %p185, %p186
      %p188 = scmp.ne.s32.totalorder %s180, %s182
      %p189 = scmp.eq.s32.totalorder %s40, 1
      %p190 = por %p188, %p189
      %p191 = scmp.ne.s32.totalorder %s182, %s183
      %p192 = scmp.eq.s32.totalorder %s40, 0
      %p193 = por %p191, %p192
      %p194 = scmp.ne.s32.totalorder %s182, %s183
      %p195 = scmp.eq.s32.totalorder %s41, 1
      %p196 = por %p194, %p195
      %p198 = scmp.ne.s32.totalorder %s183, %s197
      %p199 = scmp.eq.s32.totalorder %s41, 0
      %p200 = por %p198, %p199
      %s202 = sadd.s32 %s201, 1
      %p205 = scmp.eq.s32.totalorder %s35, 1
      %p206 = scmp.ne.s32.totalorder %s201, %s203
      %p207 = scmp.eq.s32.totalorder %s35, 0
      %p208 = por %p206, %p207
      %p209 = scmp.ne.s32.totalorder %s201, %s203
      %p210 = scmp.eq.s32.totalorder %s40, 1
      %p211 = por %p209, %p210
      %p212 = scmp.ne.s32.totalorder %s203, %s204
      %p213 = scmp.eq.s32.totalorder %s40, 0
      %p214 = por %p212, %p213
      %p215 = scmp.ne.s32.totalorder %s203, %s204
      %p216 = scmp.eq.s32.totalorder %s41, 1
      %p217 = por %p215, %p216
      %p219 = scmp.ne.s32.totalorder %s204, %s218
      %p220 = scmp.eq.s32.totalorder %s41, 0
      %p221 = por %p219, %p220
      %s223 = sadd.s32 %s222, 1
      %p226 = scmp.eq.s32.totalorder %s35, 1
      %p227 = scmp.ne.s32.totalorder %s222, %s224
      %p228 = scmp.eq.s32.totalorder %s35, 0
      %p229 = por %p227, %p228
      %p230 = scmp.ne.s32.totalorder %s222, %s224
      %p231 = scmp.eq.s32.totalorder %s40, 1
      %p232 = por %p230, %p231
      %p233 = scmp.ne.s32.totalorder %s224, %s225
      %p234 = scmp.eq.s32.totalorder %s40, 0
      %p235 = por %p233, %p234
      %p236 = scmp.ne.s32.totalorder %s224, %s225
      %p237 = scmp.eq.s32.totalorder %s41, 1
      %p238 = por %p236, %p237
      %p240 = scmp.ne.s32.totalorder %s225, %s239
      %p241 = scmp.eq.s32.totalorder %s41, 0
      %p242 = por %p240, %p241
      %s244 = sadd.s32 %s243, 1
      %p247 = scmp.eq.s32.totalorder %s35, 1
      %p248 = scmp.ne.s32.totalorder %s243, %s245
      %p249 = scmp.eq.s32.totalorder %s35, 0
      %p250 = por %p248, %p249
      %p251 = scmp.ne.s32.totalorder %s243, %s245
      %p252 = scmp.eq.s32.totalorder %s40, 1
      %p253 = por %p251, %p252
      %p254 = scmp.ne.s32.totalorder %s245, %s246
      %p255 = scmp.eq.s32.totalorder %s40, 0
      %p256 = por %p254, %p255
      %p257 = scmp.ne.s32.totalorder %s245, %s246
      %p258 = scmp.eq.s32.totalorder %s41, 1
      %p259 = por %p257, %p258
      %p261 = scmp.ne.s32.totalorder %s246, %s260
      %p262 = scmp.eq.s32.totalorder %s41, 0
      %p263 = por %p261, %p262
      %s265 = sadd.s32 %s264, 1
      %p268 = scmp.eq.s32.totalorder %s35, 1
      %p269 = scmp.ne.s32.totalorder %s264, %s266
      %p270 = scmp.eq.s32.totalorder %s35, 0
      %p271 = por %p269, %p270
      %p272 = scmp.ne.s32.totalorder %s264, %s266
      %p273 = scmp.eq.s32.totalorder %s40, 1
      %p274 = por %p272, %p273
      %p275 = scmp.ne.s32.totalorder %s266, %s267
      %p276 = scmp.eq.s32.totalorder %s40, 0
      %p277 = por %p275, %p276
      %p278 = scmp.ne.s32.totalorder %s266, %s267
      %p279 = scmp.eq.s32.totalorder %s41, 1
      %p280 = por %p278, %p279
      %p282 = scmp.ne.s32.totalorder %s267, %s281
      %p283 = scmp.eq.s32.totalorder %s41, 0
      %p284 = por %p282, %p283
      %s286 = sadd.s32 %s285, 1
      %p289 = scmp.eq.s32.totalorder %s35, 1
      %p290 = scmp.ne.s32.totalorder %s285, %s287
      %p291 = scmp.eq.s32.totalorder %s35, 0
      %p292 = por %p290, %p291
      %p293 = scmp.ne.s32.totalorder %s285, %s287
      %p294 = scmp.eq.s32.totalorder %s40, 1
      %p295 = por %p293, %p294
      %p296 = scmp.ne.s32.totalorder %s287, %s288
      %p297 = scmp.eq.s32.totalorder %s40, 0
      %p298 = por %p296, %p297
      %p299 = scmp.ne.s32.totalorder %s287, %s288
      %p300 = scmp.eq.s32.totalorder %s41, 1
      %p301 = por %p299, %p300
      %p303 = scmp.ne.s32.totalorder %s288, %s302
      %p304 = scmp.eq.s32.totalorder %s41, 0
      %p305 = por %p303, %p304
      %s307 = sadd.s32 %s306, 1
      %p310 = scmp.eq.s32.totalorder %s35, 1
      %p311 = scmp.ne.s32.totalorder %s306, %s308
      %p312 = scmp.eq.s32.totalorder %s35, 0
      %p313 = por %p311, %p312
      %p314 = scmp.ne.s32.totalorder %s306, %s308
      %p315 = scmp.eq.s32.totalorder %s40, 1
      %p316 = por %p314, %p315
      %p317 = scmp.ne.s32.totalorder %s308, %s309
      %p318 = scmp.eq.s32.totalorder %s40, 0
      %p319 = por %p317, %p318
      %p320 = scmp.ne.s32.totalorder %s308, %s309
      %p321 = scmp.eq.s32.totalorder %s41, 1
      %p322 = por %p320, %p321
      %p324 = scmp.ne.s32.totalorder %s309, %s323
      %p325 = scmp.eq.s32.totalorder %s41, 0
      %p326 = por %p324, %p325
      %s328 = sadd.s32 %s327, 1
      %p331 = scmp.eq.s32.totalorder %s35, 1
      %p332 = scmp.ne.s32.totalorder %s327, %s329
      %p333 = scmp.eq.s32.totalorder %s35, 0
      %p334 = por %p332, %p333
      %p335 = scmp.ne.s32.totalorder %s327, %s329
      %p336 = scmp.eq.s32.totalorder %s40, 1
      %p337 = por %p335, %p336
      %p338 = scmp.ne.s32.totalorder %s329, %s330
      %p339 = scmp.eq.s32.totalorder %s40, 0
      %p340 = por %p338, %p339
      %p341 = scmp.ne.s32.totalorder %s329, %s330
      %p342 = scmp.eq.s32.totalorder %s41, 1
      %p343 = por %p341, %p342
      %p345 = scmp.ne.s32.totalorder %s330, %s344
      %p346 = scmp.eq.s32.totalorder %s41, 0
      %p347 = por %p345, %p346
      %s349 = sadd.s32 %s348, 1
      %p352 = scmp.eq.s32.totalorder %s35, 1
      %p353 = scmp.ne.s32.totalorder %s348, %s350
      %p354 = scmp.eq.s32.totalorder %s35, 0
      %p355 = por %p353, %p354
      %p356 = scmp.ne.s32.totalorder %s348, %s350
      %p357 = scmp.eq.s32.totalorder %s40, 1
      %p358 = por %p356, %p357
      %p359 = scmp.ne.s32.totalorder %s350, %s351
      %p360 = scmp.eq.s32.totalorder %s40, 0
      %p361 = por %p359, %p360
      %p362 = scmp.ne.s32.totalorder %s350, %s351
      %p363 = scmp.eq.s32.totalorder %s41, 1
      %p364 = por %p362, %p363
      %p366 = scmp.ne.s32.totalorder %s351, %s365
      %p367 = scmp.eq.s32.totalorder %s41, 0
      %p368 = por %p366, %p367
      %s369 = ssub.s32 %s42, %s54
      %s370 = ssub.s32 %s43, %s50
      %s371 = sor.u32 %s369, %s370
      %p372 = scmp.eq.s32.totalorder %s371, 0
      %s374 = sadd.s32 %s373, 1
      %s375 = scalar_select %p372, %s373, %s374
      %p378 = pneg %p372
      %p379 = scmp.eq.s32.totalorder %s35, 1
      %p380 = por %p378, %p379
      %p381 = scmp.ne.s32.totalorder %s373, %s376
      %p382 = scmp.eq.s32.totalorder %s35, 0
      %p383 = por %p381, %p382
      %p384 = scmp.ne.s32.totalorder %s373, %s376
      %p385 = scmp.eq.s32.totalorder %s40, 1
      %p386 = por %p384, %p385
      %p387 = scmp.ne.s32.totalorder %s376, %s377
      %p388 = scmp.eq.s32.totalorder %s40, 0
      %p389 = por %p387, %p388
      %p390 = scmp.ne.s32.totalorder %s376, %s377
      %p391 = scmp.eq.s32.totalorder %s41, 1
      %p392 = por %p390, %p391
      %p394 = scmp.ne.s32.totalorder %s377, %s393
      %p395 = scmp.eq.s32.totalorder %s41, 0
      %p396 = por %p394, %p395
      %s397 = ssub.s32 %s42, %s54
      %s398 = ssub.s32 %s43, %s50
      %s399 = sor.u32 %s397, %s398
      %p400 = scmp.eq.s32.totalorder %s399, 0
      %s402 = sadd.s32 %s401, 1
      %s403 = scalar_select %p400, %s401, %s402
      %p406 = pneg %p400
      %p407 = scmp.eq.s32.totalorder %s35, 1
      %p408 = por %p406, %p407
      %p409 = scmp.ne.s32.totalorder %s401, %s404
      %p410 = scmp.eq.s32.totalorder %s35, 0
      %p411 = por %p409, %p410
      %p412 = scmp.ne.s32.totalorder %s401, %s404
      %p413 = scmp.eq.s32.totalorder %s40, 1
      %p414 = por %p412, %p413
      %p415 = scmp.ne.s32.totalorder %s404, %s405
      %p416 = scmp.eq.s32.totalorder %s40, 0
      %p417 = por %p415, %p416
      %p418 = scmp.ne.s32.totalorder %s404, %s405
      %p419 = scmp.eq.s32.totalorder %s41, 1
      %p420 = por %p418, %p419
      %p422 = scmp.ne.s32.totalorder %s405, %s421
      %p423 = scmp.eq.s32.totalorder %s41, 0
      %p424 = por %p422, %p423
      %p425 = scmp.le.s32.totalorder 1, %s35
      %p426 = scmp.lt.s32.totalorder %s35, 3
      %p427 = pnand %p425, %p426
      %p428 = pneg %p427
      // Predicated region
      $region9: #{tpu_custom_call.1} parent=5 // pred_check
        _
      $region10: #{tpu_custom_call.1} parent=5 // pred_check_branch
        %430 = sbr.rel (%p427) target = $region12
      $region11: #{tpu_custom_call.1} parent=5 // pred_region
        %s431 = ssub.s32 %s35, 1
        // Predicated region
        $region13: #{tpu_custom_call.1} parent=11 // pred_check
          %p432 = pneg %p172
        $region14: #{tpu_custom_call.1} parent=11 // pred_check_branch
          %434 = sbr.rel (%p432) target = $region16
        $region15: #{tpu_custom_call.1} parent=11 // pred_region
          _
        $region16: #{tpu_custom_call.1} parent=11 // pred_fallthru
          _
        // Predicated region
        $region17: #{tpu_custom_call.1} parent=11 // pred_check
          %p435 = pneg %p193
        $region18: #{tpu_custom_call.1} parent=11 // pred_check_branch
          %437 = sbr.rel (%p435) target = $region20
        $region19: #{tpu_custom_call.1} parent=11 // pred_region
          _
        $region20: #{tpu_custom_call.1} parent=11 // pred_fallthru
          _
        // Predicated region
        $region21: #{tpu_custom_call.1} parent=11 // pred_check
          %p438 = pneg %p214
        $region22: #{tpu_custom_call.1} parent=11 // pred_check_branch
          %440 = sbr.rel (%p438) target = $region24
        $region23: #{tpu_custom_call.1} parent=11 // pred_region
          _
        $region24: #{tpu_custom_call.1} parent=11 // pred_fallthru
          _
        // Predicated region
        $region25: #{tpu_custom_call.1} parent=11 // pred_check
          %p441 = pneg %p235
        $region26: #{tpu_custom_call.1} parent=11 // pred_check_branch
          %443 = sbr.rel (%p441) target = $region28
        $region27: #{tpu_custom_call.1} parent=11 // pred_region
          _
        $region28: #{tpu_custom_call.1} parent=11 // pred_fallthru
          _
        // Predicated region
        $region29: #{tpu_custom_call.1} parent=11 // pred_check
          %p444 = pneg %p256
        $region30: #{tpu_custom_call.1} parent=11 // pred_check_branch
          %446 = sbr.rel (%p444) target = $region32
        $region31: #{tpu_custom_call.1} parent=11 // pred_region
          _
        $region32: #{tpu_custom_call.1} parent=11 // pred_fallthru
          _
        // Predicated region
        $region33: #{tpu_custom_call.1} parent=11 // pred_check
          %p447 = pneg %p277
        $region34: #{tpu_custom_call.1} parent=11 // pred_check_branch
          %449 = sbr.rel (%p447) target = $region36
        $region35: #{tpu_custom_call.1} parent=11 // pred_region
          %s451 = ssub.s32 256, 256
          %452 = vsyncadd [#allocation9], %s451
          %s453 = sshll.u32 [#allocation8], 4
          %s454 = int_to_ptr.vmem [resolvable:$true] %s453
          %459 = dma.hbm_to_vmem [thread:$0]  %s9, 256, %s454, [#allocation9], 64, 64, 4
        $region36: #{tpu_custom_call.1} parent=11 // pred_fallthru
          _
        // Predicated region
        $region37: #{tpu_custom_call.1} parent=11 // pred_check
          %p460 = pneg %p298
        $region38: #{tpu_custom_call.1} parent=11 // pred_check_branch
          %462 = sbr.rel (%p460) target = $region40
        $region39: #{tpu_custom_call.1} parent=11 // pred_region
          %s464 = ssub.s32 256, 256
          %465 = vsyncadd [#allocation9], %s464
          %s466 = sshll.u32 [#allocation10], 4
          %s467 = int_to_ptr.vmem [resolvable:$true] %s466
          %472 = dma.hbm_to_vmem [thread:$0]  %s10, 256, %s467, [#allocation9], 64, 64, 4
        $region40: #{tpu_custom_call.1} parent=11 // pred_fallthru
          _
        // Predicated region
        $region41: #{tpu_custom_call.1} parent=11 // pred_check
          %p473 = pneg %p319
        $region42: #{tpu_custom_call.1} parent=11 // pred_check_branch
          %475 = sbr.rel (%p473) target = $region44
        $region43: #{tpu_custom_call.1} parent=11 // pred_region
          _
        $region44: #{tpu_custom_call.1} parent=11 // pred_fallthru
          _
        // Predicated region
        $region45: #{tpu_custom_call.1} parent=11 // pred_check
          %p476 = pneg %p340
        $region46: #{tpu_custom_call.1} parent=11 // pred_check_branch
          %478 = sbr.rel (%p476) target = $region48
        $region47: #{tpu_custom_call.1} parent=11 // pred_region
          _
        $region48: #{tpu_custom_call.1} parent=11 // pred_fallthru
          _
        // Predicated region
        $region49: #{tpu_custom_call.1} parent=11 // pred_check
          %p479 = pneg %p361
        $region50: #{tpu_custom_call.1} parent=11 // pred_check_branch
          %481 = sbr.rel (%p479) target = $region52
        $region51: #{tpu_custom_call.1} parent=11 // pred_region
          _
        $region52: #{tpu_custom_call.1} parent=11 // pred_fallthru
          _
      $region12: #{tpu_custom_call.1} parent=5 // pred_fallthru
        _
      %p482 = scmp.lt.s32.totalorder %s35, 2
      // Predicated region
      $region53: #{tpu_custom_call.1} parent=5 // pred_check
        %p483 = pneg %p482
      $region54: #{tpu_custom_call.1} parent=5 // pred_check_branch
        %485 = sbr.rel (%p483) target = $region56
      $region55: #{tpu_custom_call.1} parent=5 // pred_region
        // Predicated region
        $region57: #{tpu_custom_call.1} parent=55 // pred_check
          %p486 = pneg %p67
        $region58: #{tpu_custom_call.1} parent=55 // pred_check_branch
          %488 = sbr.rel (%p486) target = $region60
        $region59: #{tpu_custom_call.1} parent=55 // pred_region
          %s489 = sand.u32 %s57, 1
          %s490 = scalar_lea.sflag [#allocation3], %s489
          %s491 = sand.u32 %s57, 1
          %s492 = smul.addr %s491, 4
          %s493 = scalar_lea.vmem [#allocation2], %s492
          %s495 = ssub.s32 64, 64
          %496 = vsyncadd %s490, %s495
          %s497 = smul.addr %s42, 64
          %s498 = scalar_lea.hbm %s0, %s497
          %s500 = sshll.u32 %s493, 4
          %s501 = int_to_ptr.vmem [resolvable:$true] %s500
          %503 = dma.hbm_to_vmem [thread:$0]  %s498, 64, %s501, %s490
        $region60: #{tpu_custom_call.1} parent=55 // pred_fallthru
          _
        // Predicated region
        $region61: #{tpu_custom_call.1} parent=55 // pred_check
          %p504 = pneg %p93
        $region62: #{tpu_custom_call.1} parent=55 // pred_check_branch
          %506 = sbr.rel (%p504) target = $region64
        $region63: #{tpu_custom_call.1} parent=55 // pred_region
          %p507 = scmp.lt.s32.totalorder %s42, 1
          %s508 = scalar_select %p507, %s42, 1
          %s509 = smul.addr %s508, 2
          %s510 = smul.addr %s509, 4
          %s511 = scalar_lea.vmem %s1, %s510
        $region64: #{tpu_custom_call.1} parent=55 // pred_fallthru
          _
        // Predicated region
        $region65: #{tpu_custom_call.1} parent=55 // pred_check
          %p512 = pneg %p119
        $region66: #{tpu_custom_call.1} parent=55 // pred_check_branch
          %514 = sbr.rel (%p512) target = $region68
        $region67: #{tpu_custom_call.1} parent=55 // pred_region
          %s515 = sand.u32 %s35, 1
          %s516 = scalar_lea.sflag [#allocation6], %s515
          %s517 = sand.u32 %s109, 1
          %s518 = scalar_lea.vmem [#allocation5], %s517
          %s520 = ssub.s32 16, 16
          %521 = vsyncadd %s516, %s520
          %s522 = smul.addr %s42, 16
          %s523 = scalar_lea.hbm %s2, %s522
          %s525 = sshll.u32 %s518, 4
          %s526 = int_to_ptr.vmem [resolvable:$true] %s525
          %528 = dma.hbm_to_vmem [thread:$0]  %s523, 16, %s526, %s516
        $region68: #{tpu_custom_call.1} parent=55 // pred_fallthru
          _
        // Predicated region
        $region69: #{tpu_custom_call.1} parent=55 // pred_check
          %p529 = pneg %p145
        $region70: #{tpu_custom_call.1} parent=55 // pred_check_branch
          %531 = sbr.rel (%p529) target = $region72
        $region71: #{tpu_custom_call.1} parent=55 // pred_region
          %s532 = sand.u32 %s35, 1
          %s533 = scalar_lea.sflag [#allocation6], %s532
          %s534 = sand.u32 %s135, 1
          %s535 = scalar_lea.vmem [#allocation7], %s534
          %s537 = ssub.s32 16, 16
          %538 = vsyncadd %s533, %s537
          %s539 = smul.addr %s42, 16
          %s540 = scalar_lea.hbm %s3, %s539
          %s542 = sshll.u32 %s535, 4
          %s543 = int_to_ptr.vmem [resolvable:$true] %s542
          %545 = dma.hbm_to_vmem [thread:$0]  %s540, 16, %s543, %s533
        $region72: #{tpu_custom_call.1} parent=55 // pred_fallthru
          _
      $region56: #{tpu_custom_call.1} parent=5 // pred_fallthru
        _
      %p546 = scmp.le.s32.totalorder 1, %s35
      %p547 = scmp.lt.s32.totalorder %s35, 3
      %p548 = pnand %p546, %p547
      %p549 = pneg %p548
      // Predicated region
      $region73: #{tpu_custom_call.1} parent=5 // pred_check
        _
      $region74: #{tpu_custom_call.1} parent=5 // pred_check_branch
        %551 = sbr.rel (%p548) target = $region76
      $region75: #{tpu_custom_call.1} parent=5 // pred_region
        %s552 = ssub.s32 %s35, 1
        %s553 = sand.u32 %s60, 1
        %s554 = scalar_lea.sflag [#allocation3], %s553
        %s555 = sand.u32 %s60, 1
        %s556 = smul.addr %s555, 4
        %s557 = scalar_lea.vmem [#allocation2], %s556
        // Predicated region
        $region77: #{tpu_custom_call.1} parent=75 // pred_check
          %p558 = pneg %p73
        $region78: #{tpu_custom_call.1} parent=75 // pred_check_branch
          %560 = sbr.rel (%p558) target = $region80
        $region79: #{tpu_custom_call.1} parent=75 // pred_region
          %561 = dma.done %s554, 64
        $region80: #{tpu_custom_call.1} parent=75 // pred_fallthru
          _
        %s562 = sand.u32 %s40, 1
        %s563 = scalar_lea.sflag [#allocation6], %s562
        %s564 = sand.u32 %s112, 1
        %s565 = scalar_lea.vmem [#allocation5], %s564
        // Predicated region
        $region81: #{tpu_custom_call.1} parent=75 // pred_check
          %p566 = pneg %p125
        $region82: #{tpu_custom_call.1} parent=75 // pred_check_branch
          %568 = sbr.rel (%p566) target = $region84
        $region83: #{tpu_custom_call.1} parent=75 // pred_region
          %569 = dma.done %s563, 16
        $region84: #{tpu_custom_call.1} parent=75 // pred_fallthru
          _
        %s570 = sand.u32 %s40, 1
        %s571 = scalar_lea.sflag [#allocation6], %s570
        %s572 = sand.u32 %s138, 1
        %s573 = scalar_lea.vmem [#allocation7], %s572
        // Predicated region
        $region85: #{tpu_custom_call.1} parent=75 // pred_check
          %p574 = pneg %p151
        $region86: #{tpu_custom_call.1} parent=75 // pred_check_branch
          %576 = sbr.rel (%p574) target = $region88
        $region87: #{tpu_custom_call.1} parent=75 // pred_region
          %577 = dma.done %s571, 16
        $region88: #{tpu_custom_call.1} parent=75 // pred_fallthru
          _
        // Predicated region
        $region89: #{tpu_custom_call.1} parent=75 // pred_check
          %p578 = pneg %p277
        $region90: #{tpu_custom_call.1} parent=75 // pred_check_branch
          %580 = sbr.rel (%p578) target = $region92
        $region91: #{tpu_custom_call.1} parent=75 // pred_region
          %581 = dma.done [#allocation9], 256
        $region92: #{tpu_custom_call.1} parent=75 // pred_fallthru
          _
        // Predicated region
        $region93: #{tpu_custom_call.1} parent=75 // pred_check
          %p582 = pneg %p298
        $region94: #{tpu_custom_call.1} parent=75 // pred_check_branch
          %584 = sbr.rel (%p582) target = $region96
        $region95: #{tpu_custom_call.1} parent=75 // pred_region
          %585 = dma.done [#allocation9], 256
        $region96: #{tpu_custom_call.1} parent=75 // pred_fallthru
          _
        %s586 = sand.u32 %s60, 1
        %s587 = scalar_lea.sflag [#allocation3], %s586
        %s588 = sand.u32 %s60, 1
        %s589 = smul.addr %s588, 4
        %s590 = scalar_lea.vmem [#allocation2], %s589
        %p591 = pneg %p73
        %p592 = pneg %p70
        %p593 = scmp.lt.s32.totalorder %s44, 1
        %s594 = scalar_select %p593, %s44, 1
        %s595 = smul.addr %s594, 2
        %s596 = smul.addr %s595, 4
        %s597 = scalar_lea.vmem %s1, %s596
        %p598 = pneg %p99
        %p599 = pneg %p96
        %s600 = sand.u32 %s40, 1
        %s601 = scalar_lea.sflag [#allocation6], %s600
        %s602 = sand.u32 %s112, 1
        %s603 = scalar_lea.vmem [#allocation5], %s602
        %p604 = pneg %p125
        %p605 = pneg %p122
        %s606 = sand.u32 %s40, 1
        %s607 = scalar_lea.sflag [#allocation6], %s606
        %s608 = sand.u32 %s138, 1
        %s609 = scalar_lea.vmem [#allocation7], %s608
        %p610 = pneg %p151
        %p611 = pneg %p148
        %p612 = pneg %p172
        %p613 = pneg %p169
        %p614 = pneg %p193
        %p615 = pneg %p190
        %p616 = pneg %p214
        %p617 = pneg %p211
        %p618 = pneg %p235
        %p619 = pneg %p232
        %p620 = pneg %p256
        %p621 = pneg %p253
        %p622 = pneg %p277
        %p623 = pneg %p274
        %p624 = pneg %p298
        %p625 = pneg %p295
        %p626 = pneg %p319
        %p627 = pneg %p316
        %p628 = pneg %p340
        %p629 = pneg %p337
        %p630 = pneg %p361
        %p631 = pneg %p358
        %p632 = pneg %p389
        %p633 = pneg %p386
        %s634 = sand.u32 %s376, 1
        %s635 = scalar_lea.sflag [#allocation4], %s634
        %s636 = sand.u32 %s376, 1
        %s637 = smul.addr %s636, 8
        %s638 = scalar_lea.vmem [#allocation11], %s637
        %p639 = pneg %p417
        %p640 = pneg %p414
        %s641 = sand.u32 %s404, 1
        %s642 = scalar_lea.sflag [#allocation13], %s641
        %s643 = sand.u32 %s404, 1
        %s644 = smul.addr %s643, 32
        %s645 = scalar_lea.vmem [#allocation12], %s644
        %p646 = scmp.lt.s32.totalorder %s44, 1
        %s647 = scalar_select %p646, %s44, 1
        %s648 = smul.addr %s647, 2
        %s649 = smul.addr %s648, 4
        %s650 = scalar_lea.vmem %s1, %s649
        %s652 = smul.u32 %s45, 8
        %v653 = vld [vmem:[%s557] sm:$0xf]
        %v654 = vld [vmem:[%s650] sm:$0xf]
        %v655 = vld [vmem:[%s650 + $0x4] sm:$0x3]
        %s656 = sshra.s32 %s652, 3
        %s657 = sand.u32 %s652, 7
        %s658 = smul.addr %s656, 4
        %s659 = scalar_lea.vmem %s557, %s658 [#allocation2]
        %v660 = vld [vmem:[%s659] sm:$0xf]
        %v661 = vld [vmem:[%s12] sm:$0xff]
        %v662 = vld [vmem:[%s12 + $0x8] sm:$0xff]
        %v663 = vlaneseq
        %v664 = vshrl.u32 %v663, 7
        %v665 = vstv %s652
        %v666 = vadd.s32 %v665, %v664
        %v667 = vlaneseq
        %v668 = vand.u32 %v667, 127
        %vm669 = vcmp.le.s32.totalorder %v668, %v666
        %v670 = vsel %vm669, 0.0, -1e+10
        %v671 = vld [vmem:[%s565] sm:$0x1]
        %v673 = vlaneseq
        %v674 = vshrl.u32 %v673, 7
        %v675 = vsub.s32 0, %v674
        %v676 = vrot.slane %v671, %v675
        %v678 = vadd.f32 %v670, %v676
        %v679 = vld [vmem:[%s573] sm:$0x1]
        %v681 = vlaneseq
        %v682 = vshrl.u32 %v681, 7
        %v683 = vsub.s32 0, %v682
        %v684 = vrot.slane %v679, %v683
        %v686 = vld [vmem:[%s4] sm:$0xf]
        %v687 = vld [vmem:[%s4 + $0x4] sm:$0xf]
        %v688 = vld [vmem:[%s4 + $0x8] sm:$0xf]
        %v689 = vld [vmem:[%s4 + $0xc] sm:$0xf]
        %v690 = vlaneseq
        %v691 = vshrl.u32 %v690, 7
        %v692 = vsub.s32 0, %v691
        %v693 = vrot.slane %v661, %v692
        %v698 = vunpack.c.l.b16 %v686
        %v699 = vunpack.c.l.b16 %v687
        %v700 = vunpack.c.l.b16 %v688
        %v701 = vunpack.c.l.b16 %v689
        %v702 = vpack.c.b16 %v699, %v698
        %v703 = vpack.c.b16 %v701, %v700
        %vm706 = vcmask 261120
        %v708 = vsel %vm706, %v660, 0
        %710 = vmatprep.subr.bf16.mxu0 0
        %711 = vmatpush1.bf16.msra.mxu0 0
        %712 = vmatprep.subr.bf16.mxu0 0
        %713 = vmatpush1.bf16.msra.mxu0 0
        %714 = vmatprep.subr.bf16.mxu0 0
        %715 = vmatpush1.bf16.msra.mxu0 0
        %716 = vmatprep.subr.bf16.mxu0 0
        %717 = vmatpush1.bf16.msra.mxu0 0
        %718 = vmatprep.subr.bf16.mxu0 0
        %719 = vmatpush1.bf16.msra.mxu0 0
        %720 = vmatprep.subr.bf16.mxu0 0
        %721 = vmatpush1.bf16.msra.mxu0 0
        %722 = vmatprep.subr.bf16.mxu0 0
        %723 = vmatpush1.bf16.msra.mxu0 %v703
        %724 = vmatprep.subr.bf16.mxu0 0
        %725 = vmatpush1.bf16.msra.mxu0 %v702
        %726 = vmatprep.subr.bf16.mxu0 0
        %727 = vmatpush2.bf16.msra.mxu0 0
        %728 = vmatprep.subr.bf16.mxu0 0
        %729 = vmatpush2.bf16.msra.mxu0 0
        %730 = vmatprep.subr.bf16.mxu0 0
        %731 = vmatpush2.bf16.msra.mxu0 0
        %732 = vmatprep.subr.bf16.mxu0 0
        %733 = vmatpush2.bf16.msra.mxu0 0
        %734 = vmatprep.subr.bf16.mxu0 0
        %735 = vmatpush2.bf16.msra.mxu0 0
        %736 = vmatprep.subr.bf16.mxu0 0
        %737 = vmatpush2.bf16.msra.mxu0 0
        %738 = vmatprep.subr.bf16.mxu0 0
        %739 = vmatpush2.bf16.msra.mxu0 0
        %740 = vmatprep.subr.bf16.mxu0 0
        %741 = vmatpush2.bf16.msra.mxu0 0
        %742 = vmatprep.mubr.bf16.mxu0 0
        %743 = vmatmul.mubr.bf16.gmra.mxu0 %v708
        %v744 = vpop.f32.mrf.mxu0
        %v745 = vadd.f32 %v693, %v744
        %v746 = vpop.f32.mrf.mxu0
        %v747 = vpop.f32.mrf.mxu0
        %v748 = vpop.f32.mrf.mxu0
        %749 = vdwg.mxu0
        %v750 = vld [vmem:[%s5] sm:$0xf]
        %v751 = vld [vmem:[%s5 + $0x4] sm:$0xf]
        %v752 = vld [vmem:[%s5 + $0x8] sm:$0xf]
        %v753 = vld [vmem:[%s5 + $0xc] sm:$0xf]
        %v758 = vunpack.c.l.b16 %v750
        %v759 = vunpack.c.l.b16 %v751
        %v760 = vunpack.c.l.b16 %v752
        %v761 = vunpack.c.l.b16 %v753
        %v762 = vpack.c.b16 %v759, %v758
        %v763 = vpack.c.b16 %v761, %v760
        %v767 = vsel %vm706, %v653, 0
        %769 = vmatprep.subr.bf16.mxu0 0
        %770 = vmatpush1.bf16.msra.mxu0 0
        %771 = vmatprep.subr.bf16.mxu0 0
        %772 = vmatpush1.bf16.msra.mxu0 0
        %773 = vmatprep.subr.bf16.mxu0 0
        %774 = vmatpush1.bf16.msra.mxu0 0
        %775 = vmatprep.subr.bf16.mxu0 0
        %776 = vmatpush1.bf16.msra.mxu0 0
        %777 = vmatprep.subr.bf16.mxu0 0
        %778 = vmatpush1.bf16.msra.mxu0 0
        %779 = vmatprep.subr.bf16.mxu0 0
        %780 = vmatpush1.bf16.msra.mxu0 0
        %781 = vmatprep.subr.bf16.mxu0 0
        %782 = vmatpush1.bf16.msra.mxu0 %v763
        %783 = vmatprep.subr.bf16.mxu0 0
        %784 = vmatpush1.bf16.msra.mxu0 %v762
        %785 = vmatprep.subr.bf16.mxu0 0
        %786 = vmatpush2.bf16.msra.mxu0 0
        %787 = vmatprep.subr.bf16.mxu0 0
        %788 = vmatpush2.bf16.msra.mxu0 0
        %789 = vmatprep.subr.bf16.mxu0 0
        %790 = vmatpush2.bf16.msra.mxu0 0
        %791 = vmatprep.subr.bf16.mxu0 0
        %792 = vmatpush2.bf16.msra.mxu0 0
        %793 = vmatprep.subr.bf16.mxu0 0
        %794 = vmatpush2.bf16.msra.mxu0 0
        %795 = vmatprep.subr.bf16.mxu0 0
        %796 = vmatpush2.bf16.msra.mxu0 0
        %797 = vmatprep.subr.bf16.mxu0 0
        %798 = vmatpush2.bf16.msra.mxu0 0
        %799 = vmatprep.subr.bf16.mxu0 0
        %800 = vmatpush2.bf16.msra.mxu0 0
        %801 = vmatprep.mubr.bf16.mxu0 0
        %802 = vmatmul.mubr.bf16.gmra.mxu0 %v767
        %v803 = vpop.f32.mrf.mxu0
        %v804 = vadd.f32 0.0, %v803
        %v805 = vpop.f32.mrf.mxu0
        %v806 = vpop.f32.mrf.mxu0
        %v807 = vpop.f32.mrf.mxu0
        %808 = vdwg.mxu0
        %v809 = vlaneseq
        %v810 = vshrl.u32 %v809, 7
        %v811 = vsub.s32 1, %v810
        %v812 = vrot.slane %v661, %v811
        %v813 = vadd.f32 %v804, %v812
        %v814 = vlaneseq
        %v815 = vshrl.u32 %v814, 7
        %v816 = vsub.s32 2, %v815
        %v817 = vrot.slane %v661, %v816
        %819 = vrot.lane.b32.xlu0 %v817, 32
        %v820 = vpop.permute.xlu0 %819
        %v822 = vadd.f32 %v804, %v820
        %v823 = vpack.c.bf16 %v745, %v745
        %v824 = vpack.c.bf16 %v813, %v813
        %v825 = vpack.c.bf16 %v822, %v822
        %vm826 = vcmask 64512
        %v828 = vsel %vm826, %v823, 0
        %v831 = vsel %vm826, %v824, 0
        %833 = vmatprep.subr.bf16.mxu0 0
        %834 = vmatpush1.bf16.xpose.msra.mxu0 0
        %835 = vmatprep.subr.bf16.mxu0 0
        %836 = vmatpush1.bf16.xpose.msra.mxu0 0
        %837 = vmatprep.subr.bf16.mxu0 0
        %838 = vmatpush1.bf16.xpose.msra.mxu0 0
        %839 = vmatprep.subr.bf16.mxu0 0
        %840 = vmatpush1.bf16.xpose.msra.mxu0 0
        %841 = vmatprep.subr.bf16.mxu0 0
        %842 = vmatpush1.bf16.xpose.msra.mxu0 0
        %843 = vmatprep.subr.bf16.mxu0 0
        %844 = vmatpush1.bf16.xpose.msra.mxu0 0
        %845 = vmatprep.subr.bf16.mxu0 0
        %846 = vmatpush1.bf16.xpose.msra.mxu0 0
        %847 = vmatprep.subr.bf16.mxu0 0
        %848 = vmatpush1.bf16.xpose.msra.mxu0 %v831
        %849 = vmatprep.subr.bf16.mxu0 0
        %850 = vmatpush2.bf16.xpose.msra.mxu0 0
        %851 = vmatprep.subr.bf16.mxu0 0
        %852 = vmatpush2.bf16.xpose.msra.mxu0 0
        %853 = vmatprep.subr.bf16.mxu0 0
        %854 = vmatpush2.bf16.xpose.msra.mxu0 0
        %855 = vmatprep.subr.bf16.mxu0 0
        %856 = vmatpush2.bf16.xpose.msra.mxu0 0
        %857 = vmatprep.subr.bf16.mxu0 0
        %858 = vmatpush2.bf16.xpose.msra.mxu0 0
        %859 = vmatprep.subr.bf16.mxu0 0
        %860 = vmatpush2.bf16.xpose.msra.mxu0 0
        %861 = vmatprep.subr.bf16.mxu0 0
        %862 = vmatpush2.bf16.xpose.msra.mxu0 0
        %863 = vmatprep.subr.bf16.mxu0 0
        %864 = vmatpush2.bf16.xpose.msra.mxu0 0
        %865 = vmatprep.mubr.bf16.mxu0 0
        %866 = vmatmul.mubr.bf16.gmra.mxu0 %v828
        %v867 = vpop.f32.mrf.mxu0
        %v868 = vadd.f32 %v678, %v867
        %v869 = vpop.f32.mrf.mxu0
        %v870 = vpop.f32.mrf.mxu0
        %v871 = vpop.f32.mrf.mxu0
        %872 = vdwg.mxu0
        %v873 = vsel %vm826, %v868, -inf
        %874 = vmax.xlane.f32.xlu0 %v873
        %v875 = vpop.xlane.xlu0 %874
        %v876 = vsub.f32 %v868, %v875
        %v877 = vmul.f32 %v876, 1.442695
        %v878 = vpow.pop %v877
        %v879 = vsel %vm826, %v878, 0.0
        %880 = vadd.xlane.f32.xlu0 %v879
        %v881 = vpop.xlane.xlu0 %880
        %v882 = vrcp.pop %v881
        %v883 = vmul.f32 %v878, %v882
        %v884 = vpack.c.bf16 %v883, %v883
        %886 = vrot.lane.b32.xlu0 %v825, 96
        %v887 = vpop.permute.xlu0 %886
        %v889 = vsel %vm826, %v884, 0
        %vm891 = vcmask 1043456
        %v893 = vsel %vm891, %v887, 0
        %895 = vmatprep.subr.bf16.mxu0 0
        %896 = vmatpush1.bf16.msra.mxu0 0
        %897 = vmatprep.subr.bf16.mxu0 0
        %898 = vmatpush1.bf16.msra.mxu0 0
        %899 = vmatprep.subr.bf16.mxu0 0
        %900 = vmatpush1.bf16.msra.mxu0 0
        %901 = vmatprep.subr.bf16.mxu0 0
        %902 = vmatpush1.bf16.msra.mxu0 0
        %903 = vmatprep.subr.bf16.mxu0 0
        %904 = vmatpush1.bf16.msra.mxu0 0
        %905 = vmatprep.subr.bf16.mxu0 0
        %906 = vmatpush1.bf16.msra.mxu0 0
        %907 = vmatprep.subr.bf16.mxu0 0
        %908 = vmatpush1.bf16.msra.mxu0 0
        %909 = vmatprep.subr.bf16.mxu0 0
        %910 = vmatpush1.bf16.msra.mxu0 %v893
        %911 = vmatprep.subr.bf16.mxu0 0
        %912 = vmatpush2.bf16.msra.mxu0 0
        %913 = vmatprep.subr.bf16.mxu0 0
        %914 = vmatpush2.bf16.msra.mxu0 0
        %915 = vmatprep.subr.bf16.mxu0 0
        %916 = vmatpush2.bf16.msra.mxu0 0
        %917 = vmatprep.subr.bf16.mxu0 0
        %918 = vmatpush2.bf16.msra.mxu0 0
        %919 = vmatprep.subr.bf16.mxu0 0
        %920 = vmatpush2.bf16.msra.mxu0 0
        %921 = vmatprep.subr.bf16.mxu0 0
        %922 = vmatpush2.bf16.msra.mxu0 0
        %923 = vmatprep.subr.bf16.mxu0 0
        %924 = vmatpush2.bf16.msra.mxu0 0
        %925 = vmatprep.subr.bf16.mxu0 0
        %926 = vmatpush2.bf16.msra.mxu0 0
        %927 = vmatprep.mubr.bf16.mxu0 0
        %928 = vmatmul.mubr.bf16.gmra.mxu0 %v889
        %v929 = vpop.f32.mrf.mxu0
        %v930 = vadd.f32 0.0, %v929
        %v931 = vpop.f32.mrf.mxu0
        %v932 = vpop.f32.mrf.mxu0
        %v933 = vpop.f32.mrf.mxu0
        %934 = vdwg.mxu0
        %936 = vrot.lane.b32.xlu0 %v823, 120
        %v937 = vpop.permute.xlu0 %936
        %939 = vrot.lane.b32.xlu0 %v824, 120
        %v940 = vpop.permute.xlu0 %939
        %v942 = vsel %vm826, %v937, 0
        %v945 = vsel %vm826, %v940, 0
        %947 = vmatprep.subr.bf16.mxu0 0
        %948 = vmatpush1.bf16.xpose.msra.mxu0 0
        %949 = vmatprep.subr.bf16.mxu0 0
        %950 = vmatpush1.bf16.xpose.msra.mxu0 0
        %951 = vmatprep.subr.bf16.mxu0 0
        %952 = vmatpush1.bf16.xpose.msra.mxu0 0
        %953 = vmatprep.subr.bf16.mxu0 0
        %954 = vmatpush1.bf16.xpose.msra.mxu0 0
        %955 = vmatprep.subr.bf16.mxu0 0
        %956 = vmatpush1.bf16.xpose.msra.mxu0 0
        %957 = vmatprep.subr.bf16.mxu0 0
        %958 = vmatpush1.bf16.xpose.msra.mxu0 0
        %959 = vmatprep.subr.bf16.mxu0 0
        %960 = vmatpush1.bf16.xpose.msra.mxu0 0
        %961 = vmatprep.subr.bf16.mxu0 0
        %962 = vmatpush1.bf16.xpose.msra.mxu0 %v945
        %963 = vmatprep.subr.bf16.mxu0 0
        %964 = vmatpush2.bf16.xpose.msra.mxu0 0
        %965 = vmatprep.subr.bf16.mxu0 0
        %966 = vmatpush2.bf16.xpose.msra.mxu0 0
        %967 = vmatprep.subr.bf16.mxu0 0
        %968 = vmatpush2.bf16.xpose.msra.mxu0 0
        %969 = vmatprep.subr.bf16.mxu0 0
        %970 = vmatpush2.bf16.xpose.msra.mxu0 0
        %971 = vmatprep.subr.bf16.mxu0 0
        %972 = vmatpush2.bf16.xpose.msra.mxu0 0
        %973 = vmatprep.subr.bf16.mxu0 0
        %974 = vmatpush2.bf16.xpose.msra.mxu0 0
        %975 = vmatprep.subr.bf16.mxu0 0
        %976 = vmatpush2.bf16.xpose.msra.mxu0 0
        %977 = vmatprep.subr.bf16.mxu0 0
        %978 = vmatpush2.bf16.xpose.msra.mxu0 0
        %979 = vmatprep.mubr.bf16.mxu0 0
        %980 = vmatmul.mubr.bf16.gmra.mxu0 %v942
        %v981 = vpop.f32.mrf.mxu0
        %v982 = vadd.f32 %v678, %v981
        %v983 = vpop.f32.mrf.mxu0
        %v984 = vpop.f32.mrf.mxu0
        %v985 = vpop.f32.mrf.mxu0
        %986 = vdwg.mxu0
        %v987 = vsel %vm826, %v982, -inf
        %988 = vmax.xlane.f32.xlu0 %v987
        %v989 = vpop.xlane.xlu0 %988
        %v990 = vsub.f32 %v982, %v989
        %v991 = vmul.f32 %v990, 1.442695
        %v992 = vpow.pop %v991
        %v993 = vsel %vm826, %v992, 0.0
        %994 = vadd.xlane.f32.xlu0 %v993
        %v995 = vpop.xlane.xlu0 %994
        %v996 = vrcp.pop %v995
        %v997 = vmul.f32 %v992, %v996
        %v998 = vpack.c.bf16 %v997, %v997
        %999 = vrot.lane.b32.xlu0 %v825, 88
        %v1000 = vpop.permute.xlu0 %999
        %v1002 = vsel %vm826, %v998, 0
        %v1005 = vsel %vm891, %v1000, 0
        %1007 = vmatprep.subr.bf16.mxu0 0
        %1008 = vmatpush1.bf16.msra.mxu0 0
        %1009 = vmatprep.subr.bf16.mxu0 0
        %1010 = vmatpush1.bf16.msra.mxu0 0
        %1011 = vmatprep.subr.bf16.mxu0 0
        %1012 = vmatpush1.bf16.msra.mxu0 0
        %1013 = vmatprep.subr.bf16.mxu0 0
        %1014 = vmatpush1.bf16.msra.mxu0 0
        %1015 = vmatprep.subr.bf16.mxu0 0
        %1016 = vmatpush1.bf16.msra.mxu0 0
        %1017 = vmatprep.subr.bf16.mxu0 0
        %1018 = vmatpush1.bf16.msra.mxu0 0
        %1019 = vmatprep.subr.bf16.mxu0 0
        %1020 = vmatpush1.bf16.msra.mxu0 0
        %1021 = vmatprep.subr.bf16.mxu0 0
        %1022 = vmatpush1.bf16.msra.mxu0 %v1005
        %1023 = vmatprep.subr.bf16.mxu0 0
        %1024 = vmatpush2.bf16.msra.mxu0 0
        %1025 = vmatprep.subr.bf16.mxu0 0
        %1026 = vmatpush2.bf16.msra.mxu0 0
        %1027 = vmatprep.subr.bf16.mxu0 0
        %1028 = vmatpush2.bf16.msra.mxu0 0
        %1029 = vmatprep.subr.bf16.mxu0 0
        %1030 = vmatpush2.bf16.msra.mxu0 0
        %1031 = vmatprep.subr.bf16.mxu0 0
        %1032 = vmatpush2.bf16.msra.mxu0 0
        %1033 = vmatprep.subr.bf16.mxu0 0
        %1034 = vmatpush2.bf16.msra.mxu0 0
        %1035 = vmatprep.subr.bf16.mxu0 0
        %1036 = vmatpush2.bf16.msra.mxu0 0
        %1037 = vmatprep.subr.bf16.mxu0 0
        %1038 = vmatpush2.bf16.msra.mxu0 0
        %1039 = vmatprep.mubr.bf16.mxu0 0
        %1040 = vmatmul.mubr.bf16.gmra.mxu0 %v1002
        %v1041 = vpop.f32.mrf.mxu0
        %v1042 = vadd.f32 0.0, %v1041
        %v1043 = vpop.f32.mrf.mxu0
        %v1044 = vpop.f32.mrf.mxu0
        %v1045 = vpop.f32.mrf.mxu0
        %1046 = vdwg.mxu0
        %1047 = vrot.lane.b32.xlu0 %v823, 112
        %v1048 = vpop.permute.xlu0 %1047
        %1049 = vrot.lane.b32.xlu0 %v824, 112
        %v1050 = vpop.permute.xlu0 %1049
        %v1052 = vsel %vm826, %v1048, 0
        %v1055 = vsel %vm826, %v1050, 0
        %1057 = vmatprep.subr.bf16.mxu0 0
        %1058 = vmatpush1.bf16.xpose.msra.mxu0 0
        %1059 = vmatprep.subr.bf16.mxu0 0
        %1060 = vmatpush1.bf16.xpose.msra.mxu0 0
        %1061 = vmatprep.subr.bf16.mxu0 0
        %1062 = vmatpush1.bf16.xpose.msra.mxu0 0
        %1063 = vmatprep.subr.bf16.mxu0 0
        %1064 = vmatpush1.bf16.xpose.msra.mxu0 0
        %1065 = vmatprep.subr.bf16.mxu0 0
        %1066 = vmatpush1.bf16.xpose.msra.mxu0 0
        %1067 = vmatprep.subr.bf16.mxu0 0
        %1068 = vmatpush1.bf16.xpose.msra.mxu0 0
        %1069 = vmatprep.subr.bf16.mxu0 0
        %1070 = vmatpush1.bf16.xpose.msra.mxu0 0
        %1071 = vmatprep.subr.bf16.mxu0 0
        %1072 = vmatpush1.bf16.xpose.msra.mxu0 %v1055
        %1073 = vmatprep.subr.bf16.mxu0 0
        %1074 = vmatpush2.bf16.xpose.msra.mxu0 0
        %1075 = vmatprep.subr.bf16.mxu0 0
        %1076 = vmatpush2.bf16.xpose.msra.mxu0 0
        %1077 = vmatprep.subr.bf16.mxu0 0
        %1078 = vmatpush2.bf16.xpose.msra.mxu0 0
        %1079 = vmatprep.subr.bf16.mxu0 0
        %1080 = vmatpush2.bf16.xpose.msra.mxu0 0
        %1081 = vmatprep.subr.bf16.mxu0 0
        %1082 = vmatpush2.bf16.xpose.msra.mxu0 0
        %1083 = vmatprep.subr.bf16.mxu0 0
        %1084 = vmatpush2.bf16.xpose.msra.mxu0 0
        %1085 = vmatprep.subr.bf16.mxu0 0
        %1086 = vmatpush2.bf16.xpose.msra.mxu0 0
        %1087 = vmatprep.subr.bf16.mxu0 0
        %1088 = vmatpush2.bf16.xpose.msra.mxu0 0
        %1089 = vmatprep.mubr.bf16.mxu0 0
        %1090 = vmatmul.mubr.bf16.gmra.mxu0 %v1052
        %v1091 = vpop.f32.mrf.mxu0
        %v1092 = vadd.f32 %v678, %v1091
        %v1093 = vpop.f32.mrf.mxu0
        %v1094 = vpop.f32.mrf.mxu0
        %v1095 = vpop.f32.mrf.mxu0
        %1096 = vdwg.mxu0
        %v1097 = vsel %vm826, %v1092, -inf
        %1098 = vmax.xlane.f32.xlu0 %v1097
        %v1099 = vpop.xlane.xlu0 %1098
        %v1100 = vsub.f32 %v1092, %v1099
        %v1101 = vmul.f32 %v1100, 1.442695
        %v1102 = vpow.pop %v1101
        %v1103 = vsel %vm826, %v1102, 0.0
        %1104 = vadd.xlane.f32.xlu0 %v1103
        %v1105 = vpop.xlane.xlu0 %1104
        %v1106 = vrcp.pop %v1105
        %v1107 = vmul.f32 %v1102, %v1106
        %v1108 = vpack.c.bf16 %v1107, %v1107
        %1109 = vrot.lane.b32.xlu0 %v825, 80
        %v1110 = vpop.permute.xlu0 %1109
        %v1112 = vsel %vm826, %v1108, 0
        %v1115 = vsel %vm891, %v1110, 0
        %1117 = vmatprep.subr.bf16.mxu0 0
        %1118 = vmatpush1.bf16.msra.mxu0 0
        %1119 = vmatprep.subr.bf16.mxu0 0
        %1120 = vmatpush1.bf16.msra.mxu0 0
        %1121 = vmatprep.subr.bf16.mxu0 0
        %1122 = vmatpush1.bf16.msra.mxu0 0
        %1123 = vmatprep.subr.bf16.mxu0 0
        %1124 = vmatpush1.bf16.msra.mxu0 0
        %1125 = vmatprep.subr.bf16.mxu0 0
        %1126 = vmatpush1.bf16.msra.mxu0 0
        %1127 = vmatprep.subr.bf16.mxu0 0
        %1128 = vmatpush1.bf16.msra.mxu0 0
        %1129 = vmatprep.subr.bf16.mxu0 0
        %1130 = vmatpush1.bf16.msra.mxu0 0
        %1131 = vmatprep.subr.bf16.mxu0 0
        %1132 = vmatpush1.bf16.msra.mxu0 %v1115
        %1133 = vmatprep.subr.bf16.mxu0 0
        %1134 = vmatpush2.bf16.msra.mxu0 0
        %1135 = vmatprep.subr.bf16.mxu0 0
        %1136 = vmatpush2.bf16.msra.mxu0 0
        %1137 = vmatprep.subr.bf16.mxu0 0
        %1138 = vmatpush2.bf16.msra.mxu0 0
        %1139 = vmatprep.subr.bf16.mxu0 0
        %1140 = vmatpush2.bf16.msra.mxu0 0
        %1141 = vmatprep.subr.bf16.mxu0 0
        %1142 = vmatpush2.bf16.msra.mxu0 0
        %1143 = vmatprep.subr.bf16.mxu0 0
        %1144 = vmatpush2.bf16.msra.mxu0 0
        %1145 = vmatprep.subr.bf16.mxu0 0
        %1146 = vmatpush2.bf16.msra.mxu0 0
        %1147 = vmatprep.subr.bf16.mxu0 0
        %1148 = vmatpush2.bf16.msra.mxu0 0
        %1149 = vmatprep.mubr.bf16.mxu0 0
        %1150 = vmatmul.mubr.bf16.gmra.mxu0 %v1112
        %v1151 = vpop.f32.mrf.mxu0
        %v1152 = vadd.f32 0.0, %v1151
        %v1153 = vpop.f32.mrf.mxu0
        %v1154 = vpop.f32.mrf.mxu0
        %v1155 = vpop.f32.mrf.mxu0
        %1156 = vdwg.mxu0
        %1157 = vrot.lane.b32.xlu0 %v823, 104
        %v1158 = vpop.permute.xlu0 %1157
        %1159 = vrot.lane.b32.xlu0 %v824, 104
        %v1160 = vpop.permute.xlu0 %1159
        %v1162 = vsel %vm826, %v1158, 0
        %v1165 = vsel %vm826, %v1160, 0
        %1167 = vmatprep.subr.bf16.mxu0 0
        %1168 = vmatpush1.bf16.xpose.msra.mxu0 0
        %1169 = vmatprep.subr.bf16.mxu0 0
        %1170 = vmatpush1.bf16.xpose.msra.mxu0 0
        %1171 = vmatprep.subr.bf16.mxu0 0
        %1172 = vmatpush1.bf16.xpose.msra.mxu0 0
        %1173 = vmatprep.subr.bf16.mxu0 0
        %1174 = vmatpush1.bf16.xpose.msra.mxu0 0
        %1175 = vmatprep.subr.bf16.mxu0 0
        %1176 = vmatpush1.bf16.xpose.msra.mxu0 0
        %1177 = vmatprep.subr.bf16.mxu0 0
        %1178 = vmatpush1.bf16.xpose.msra.mxu0 0
        %1179 = vmatprep.subr.bf16.mxu0 0
        %1180 = vmatpush1.bf16.xpose.msra.mxu0 0
        %1181 = vmatprep.subr.bf16.mxu0 0
        %1182 = vmatpush1.bf16.xpose.msra.mxu0 %v1165
        %1183 = vmatprep.subr.bf16.mxu0 0
        %1184 = vmatpush2.bf16.xpose.msra.mxu0 0
        %1185 = vmatprep.subr.bf16.mxu0 0
        %1186 = vmatpush2.bf16.xpose.msra.mxu0 0
        %1187 = vmatprep.subr.bf16.mxu0 0
        %1188 = vmatpush2.bf16.xpose.msra.mxu0 0
        %1189 = vmatprep.subr.bf16.mxu0 0
        %1190 = vmatpush2.bf16.xpose.msra.mxu0 0
        %1191 = vmatprep.subr.bf16.mxu0 0
        %1192 = vmatpush2.bf16.xpose.msra.mxu0 0
        %1193 = vmatprep.subr.bf16.mxu0 0
        %1194 = vmatpush2.bf16.xpose.msra.mxu0 0
        %1195 = vmatprep.subr.bf16.mxu0 0
        %1196 = vmatpush2.bf16.xpose.msra.mxu0 0
        %1197 = vmatprep.subr.bf16.mxu0 0
        %1198 = vmatpush2.bf16.xpose.msra.mxu0 0
        %1199 = vmatprep.mubr.bf16.mxu0 0
        %1200 = vmatmul.mubr.bf16.gmra.mxu0 %v1162
        %v1201 = vpop.f32.mrf.mxu0
        %v1202 = vadd.f32 %v678, %v1201
        %v1203 = vpop.f32.mrf.mxu0
        %v1204 = vpop.f32.mrf.mxu0
        %v1205 = vpop.f32.mrf.mxu0
        %1206 = vdwg.mxu0
        %v1207 = vsel %vm826, %v1202, -inf
        %1208 = vmax.xlane.f32.xlu0 %v1207
        %v1209 = vpop.xlane.xlu0 %1208
        %v1210 = vsub.f32 %v1202, %v1209
        %v1211 = vmul.f32 %v1210, 1.442695
        %v1212 = vpow.pop %v1211
        %v1213 = vsel %vm826, %v1212, 0.0
        %1214 = vadd.xlane.f32.xlu0 %v1213
        %v1215 = vpop.xlane.xlu0 %1214
        %v1216 = vrcp.pop %v1215
        %v1217 = vmul.f32 %v1212, %v1216
        %v1218 = vpack.c.bf16 %v1217, %v1217
        %1219 = vrot.lane.b32.xlu0 %v825, 72
        %v1220 = vpop.permute.xlu0 %1219
        %v1222 = vsel %vm826, %v1218, 0
        %v1225 = vsel %vm891, %v1220, 0
        %1227 = vmatprep.subr.bf16.mxu0 0
        %1228 = vmatpush1.bf16.msra.mxu0 0
        %1229 = vmatprep.subr.bf16.mxu0 0
        %1230 = vmatpush1.bf16.msra.mxu0 0
        %1231 = vmatprep.subr.bf16.mxu0 0
        %1232 = vmatpush1.bf16.msra.mxu0 0
        %1233 = vmatprep.subr.bf16.mxu0 0
        %1234 = vmatpush1.bf16.msra.mxu0 0
        %1235 = vmatprep.subr.bf16.mxu0 0
        %1236 = vmatpush1.bf16.msra.mxu0 0
        %1237 = vmatprep.subr.bf16.mxu0 0
        %1238 = vmatpush1.bf16.msra.mxu0 0
        %1239 = vmatprep.subr.bf16.mxu0 0
        %1240 = vmatpush1.bf16.msra.mxu0 0
        %1241 = vmatprep.subr.bf16.mxu0 0
        %1242 = vmatpush1.bf16.msra.mxu0 %v1225
        %1243 = vmatprep.subr.bf16.mxu0 0
        %1244 = vmatpush2.bf16.msra.mxu0 0
        %1245 = vmatprep.subr.bf16.mxu0 0
        %1246 = vmatpush2.bf16.msra.mxu0 0
        %1247 = vmatprep.subr.bf16.mxu0 0
        %1248 = vmatpush2.bf16.msra.mxu0 0
        %1249 = vmatprep.subr.bf16.mxu0 0
        %1250 = vmatpush2.bf16.msra.mxu0 0
        %1251 = vmatprep.subr.bf16.mxu0 0
        %1252 = vmatpush2.bf16.msra.mxu0 0
        %1253 = vmatprep.subr.bf16.mxu0 0
        %1254 = vmatpush2.bf16.msra.mxu0 0
        %1255 = vmatprep.subr.bf16.mxu0 0
        %1256 = vmatpush2.bf16.msra.mxu0 0
        %1257 = vmatprep.subr.bf16.mxu0 0
        %1258 = vmatpush2.bf16.msra.mxu0 0
        %1259 = vmatprep.mubr.bf16.mxu0 0
        %1260 = vmatmul.mubr.bf16.gmra.mxu0 %v1222
        %v1261 = vpop.f32.mrf.mxu0
        %v1262 = vadd.f32 0.0, %v1261
        %v1263 = vpop.f32.mrf.mxu0
        %v1264 = vpop.f32.mrf.mxu0
        %v1265 = vpop.f32.mrf.mxu0
        %1266 = vdwg.mxu0
        %1268 = vrot.lane.b32.xlu0 %v1042, 8
        %v1269 = vpop.permute.xlu0 %1268
        %1272 = vrot.lane.b32.xlu0 %v1152, 16
        %v1273 = vpop.permute.xlu0 %1272
        %1276 = vrot.lane.b32.xlu0 %v1262, 24
        %v1277 = vpop.permute.xlu0 %1276
        %v1279 = vsel %vm826, %v930, %v1269
        %vm1280 = vcmask 130048
        %v1281 = vsel %vm1280, %v1279, %v1273
        %vm1282 = vcmask 195584
        %v1283 = vsel %vm1282, %v1281, %v1277
        %v1284 = vpack.c.bf16 %v1283, %v1283
        %v1285 = vld [vmem:[%s6] sm:$0xf]
        %v1286 = vld [vmem:[%s6 + $0x4] sm:$0xf]
        %v1287 = vld [vmem:[%s6 + $0x8] sm:$0xf]
        %v1288 = vld [vmem:[%s6 + $0xc] sm:$0xf]
        %v1289 = vlaneseq
        %v1290 = vshrl.u32 %v1289, 7
        %v1291 = vsub.s32 3, %v1290
        %v1292 = vrot.slane %v661, %v1291
        %v1297 = vunpack.c.l.b16 %v1285
        %v1298 = vunpack.c.l.b16 %v1286
        %v1299 = vunpack.c.l.b16 %v1287
        %v1300 = vunpack.c.l.b16 %v1288
        %v1301 = vpack.c.b16 %v1298, %v1297
        %v1302 = vpack.c.b16 %v1300, %v1299
        %v1306 = vsel %vm706, %v1284, 0
        %1308 = vmatprep.subr.bf16.mxu0 0
        %1309 = vmatpush1.bf16.msra.mxu0 0
        %1310 = vmatprep.subr.bf16.mxu0 0
        %1311 = vmatpush1.bf16.msra.mxu0 0
        %1312 = vmatprep.subr.bf16.mxu0 0
        %1313 = vmatpush1.bf16.msra.mxu0 0
        %1314 = vmatprep.subr.bf16.mxu0 0
        %1315 = vmatpush1.bf16.msra.mxu0 0
        %1316 = vmatprep.subr.bf16.mxu0 0
        %1317 = vmatpush1.bf16.msra.mxu0 0
        %1318 = vmatprep.subr.bf16.mxu0 0
        %1319 = vmatpush1.bf16.msra.mxu0 0
        %1320 = vmatprep.subr.bf16.mxu0 0
        %1321 = vmatpush1.bf16.msra.mxu0 %v1302
        %1322 = vmatprep.subr.bf16.mxu0 0
        %1323 = vmatpush1.bf16.msra.mxu0 %v1301
        %1324 = vmatprep.subr.bf16.mxu0 0
        %1325 = vmatpush2.bf16.msra.mxu0 0
        %1326 = vmatprep.subr.bf16.mxu0 0
        %1327 = vmatpush2.bf16.msra.mxu0 0
        %1328 = vmatprep.subr.bf16.mxu0 0
        %1329 = vmatpush2.bf16.msra.mxu0 0
        %1330 = vmatprep.subr.bf16.mxu0 0
        %1331 = vmatpush2.bf16.msra.mxu0 0
        %1332 = vmatprep.subr.bf16.mxu0 0
        %1333 = vmatpush2.bf16.msra.mxu0 0
        %1334 = vmatprep.subr.bf16.mxu0 0
        %1335 = vmatpush2.bf16.msra.mxu0 0
        %1336 = vmatprep.subr.bf16.mxu0 0
        %1337 = vmatpush2.bf16.msra.mxu0 0
        %1338 = vmatprep.subr.bf16.mxu0 0
        %1339 = vmatpush2.bf16.msra.mxu0 0
        %1340 = vmatprep.mubr.bf16.mxu0 0
        %1341 = vmatmul.mubr.bf16.gmra.mxu0 %v1306
        %v1342 = vpop.f32.mrf.mxu0
        %v1343 = vadd.f32 %v1292, %v1342
        %v1344 = vpop.f32.mrf.mxu0
        %v1345 = vpop.f32.mrf.mxu0
        %v1346 = vpop.f32.mrf.mxu0
        %1347 = vdwg.mxu0
        %v1348 = vunpack.c.l.bf16 %v660
        %v1349 = vadd.f32 %v1348, %v1343
        %v1350 = vsel %vm706, %v1349, 0.0
        %1351 = vadd.xlane.f32.xlu0 %v1350
        %v1352 = vpop.xlane.xlu0 %1351
        %v1353 = vrcp.pop 32.0
        %v1354 = vmul.f32 %v1352, %v1353
        %v1355 = vsub.f32 %v1349, %v1354
        %v1356 = vmul.f32 %v1355, %v1355
        %v1357 = vsel %vm706, %v1356, 0.0
        %1358 = vadd.xlane.f32.xlu0 %v1357
        %v1359 = vpop.xlane.xlu0 %1358
        %v1360 = vmul.f32 %v1359, %v1353
        %v1361 = vadd.f32 %v1360, 1e-05
        %v1362 = vrsqrt.pop %v1361
        %v1363 = vmul.f32 %v1355, %v1362
        %v1364 = vlaneseq
        %v1365 = vshrl.u32 %v1364, 7
        %v1366 = vsub.s32 4, %v1365
        %v1367 = vrot.slane %v661, %v1366
        %v1368 = vmul.f32 %v1363, %v1367
        %v1369 = vlaneseq
        %v1370 = vshrl.u32 %v1369, 7
        %v1371 = vsub.s32 5, %v1370
        %v1372 = vrot.slane %v661, %v1371
        %v1373 = vadd.f32 %v1368, %v1372
        %v1374 = vpack.c.bf16 %v1373, %v1373
        %v1375 = vld [vmem:[%s7] sm:$0xf]
        %v1376 = vld [vmem:[%s7 + $0x4] sm:$0xf]
        %v1377 = vld [vmem:[%s7 + $0x8] sm:$0xf]
        %v1378 = vld [vmem:[%s7 + $0xc] sm:$0xf]
        %v1379 = vlaneseq
        %v1380 = vshrl.u32 %v1379, 7
        %v1381 = vsub.s32 6, %v1380
        %v1382 = vrot.slane %v661, %v1381
        %v1387 = vunpack.c.l.b16 %v1375
        %v1388 = vunpack.c.l.b16 %v1376
        %v1389 = vunpack.c.l.b16 %v1377
        %v1390 = vunpack.c.l.b16 %v1378
        %v1391 = vpack.c.b16 %v1388, %v1387
        %v1392 = vpack.c.b16 %v1390, %v1389
        %v1396 = vsel %vm706, %v1374, 0
        %1398 = vmatprep.subr.bf16.mxu0 0
        %1399 = vmatpush1.bf16.msra.mxu0 0
        %1400 = vmatprep.subr.bf16.mxu0 0
        %1401 = vmatpush1.bf16.msra.mxu0 0
        %1402 = vmatprep.subr.bf16.mxu0 0
        %1403 = vmatpush1.bf16.msra.mxu0 0
        %1404 = vmatprep.subr.bf16.mxu0 0
        %1405 = vmatpush1.bf16.msra.mxu0 0
        %1406 = vmatprep.subr.bf16.mxu0 0
        %1407 = vmatpush1.bf16.msra.mxu0 0
        %1408 = vmatprep.subr.bf16.mxu0 0
        %1409 = vmatpush1.bf16.msra.mxu0 0
        %1410 = vmatprep.subr.bf16.mxu0 0
        %1411 = vmatpush1.bf16.msra.mxu0 %v1392
        %1412 = vmatprep.subr.bf16.mxu0 0
        %1413 = vmatpush1.bf16.msra.mxu0 %v1391
        %1414 = vmatprep.subr.bf16.mxu0 0
        %1415 = vmatpush2.bf16.msra.mxu0 0
        %1416 = vmatprep.subr.bf16.mxu0 0
        %1417 = vmatpush2.bf16.msra.mxu0 0
        %1418 = vmatprep.subr.bf16.mxu0 0
        %1419 = vmatpush2.bf16.msra.mxu0 0
        %1420 = vmatprep.subr.bf16.mxu0 0
        %1421 = vmatpush2.bf16.msra.mxu0 0
        %1422 = vmatprep.subr.bf16.mxu0 0
        %1423 = vmatpush2.bf16.msra.mxu0 0
        %1424 = vmatprep.subr.bf16.mxu0 0
        %1425 = vmatpush2.bf16.msra.mxu0 0
        %1426 = vmatprep.subr.bf16.mxu0 0
        %1427 = vmatpush2.bf16.msra.mxu0 0
        %1428 = vmatprep.subr.bf16.mxu0 0
        %1429 = vmatpush2.bf16.msra.mxu0 0
        %1430 = vmatprep.mubr.bf16.mxu0 0
        %1431 = vmatmul.mubr.bf16.gmra.mxu0 %v1396
        %v1432 = vpop.f32.mrf.mxu0
        %v1433 = vadd.f32 %v1382, %v1432
        %v1434 = vpop.f32.mrf.mxu0
        %v1435 = vpop.f32.mrf.mxu0
        %v1436 = vpop.f32.mrf.mxu0
        %1437 = vdwg.mxu0
        %v1438 = vld [vmem:[%s8] sm:$0xf]
        %v1439 = vld [vmem:[%s8 + $0x4] sm:$0xf]
        %v1440 = vld [vmem:[%s8 + $0x8] sm:$0xf]
        %v1441 = vld [vmem:[%s8 + $0xc] sm:$0xf]
        %v1444 = vunpack.c.l.b16 %v654
        %v1445 = vunpack.c.l.b16 %v655
        %v1446 = vpack.c.b16 %v1445, %v1444
        %v1451 = vunpack.c.l.b16 %v1438
        %v1452 = vunpack.c.l.b16 %v1439
        %v1453 = vunpack.c.l.b16 %v1440
        %v1454 = vunpack.c.l.b16 %v1441
        %v1455 = vpack.c.b16 %v1452, %v1451
        %v1456 = vpack.c.b16 %v1454, %v1453
        %v1460 = vsel %vm706, %v1446, 0
        %1462 = vmatprep.subr.bf16.mxu0 0
        %1463 = vmatpush1.bf16.msra.mxu0 0
        %1464 = vmatprep.subr.bf16.mxu0 0
        %1465 = vmatpush1.bf16.msra.mxu0 0
        %1466 = vmatprep.subr.bf16.mxu0 0
        %1467 = vmatpush1.bf16.msra.mxu0 0
        %1468 = vmatprep.subr.bf16.mxu0 0
        %1469 = vmatpush1.bf16.msra.mxu0 0
        %1470 = vmatprep.subr.bf16.mxu0 0
        %1471 = vmatpush1.bf16.msra.mxu0 0
        %1472 = vmatprep.subr.bf16.mxu0 0
        %1473 = vmatpush1.bf16.msra.mxu0 0
        %1474 = vmatprep.subr.bf16.mxu0 0
        %1475 = vmatpush1.bf16.msra.mxu0 %v1456
        %1476 = vmatprep.subr.bf16.mxu0 0
        %1477 = vmatpush1.bf16.msra.mxu0 %v1455
        %1478 = vmatprep.subr.bf16.mxu0 0
        %1479 = vmatpush2.bf16.msra.mxu0 0
        %1480 = vmatprep.subr.bf16.mxu0 0
        %1481 = vmatpush2.bf16.msra.mxu0 0
        %1482 = vmatprep.subr.bf16.mxu0 0
        %1483 = vmatpush2.bf16.msra.mxu0 0
        %1484 = vmatprep.subr.bf16.mxu0 0
        %1485 = vmatpush2.bf16.msra.mxu0 0
        %1486 = vmatprep.subr.bf16.mxu0 0
        %1487 = vmatpush2.bf16.msra.mxu0 0
        %1488 = vmatprep.subr.bf16.mxu0 0
        %1489 = vmatpush2.bf16.msra.mxu0 0
        %1490 = vmatprep.subr.bf16.mxu0 0
        %1491 = vmatpush2.bf16.msra.mxu0 0
        %1492 = vmatprep.subr.bf16.mxu0 0
        %1493 = vmatpush2.bf16.msra.mxu0 0
        %1494 = vmatprep.mubr.bf16.mxu0 0
        %1495 = vmatmul.mubr.bf16.gmra.mxu0 %v1460
        %v1496 = vpop.f32.mrf.mxu0
        %v1497 = vadd.f32 0.0, %v1496
        %v1498 = vpop.f32.mrf.mxu0
        %v1499 = vpop.f32.mrf.mxu0
        %v1500 = vadd.f32 0.0, %v1499
        %v1501 = vpop.f32.mrf.mxu0
        %1502 = vdwg.mxu0
        %v1503 = vlaneseq
        %v1504 = vshrl.u32 %v1503, 7
        %v1505 = vsub.s32 7, %v1504
        %v1506 = vrot.slane %v661, %v1505
        %v1507 = vadd.f32 %v1497, %v1506
        %v1508 = vadd.f32 %v1500, %v1506
        %v1509 = vlaneseq
        %v1510 = vshrl.u32 %v1509, 7
        %v1511 = vsub.s32 0, %v1510
        %v1512 = vrot.slane %v662, %v1511
        %1514 = vrot.lane.b32.xlu0 %v1512, 32
        %v1515 = vpop.permute.xlu0 %1514
        %v1517 = vadd.f32 %v1497, %v1515
        %v1518 = vadd.f32 %v1500, %v1515
        %v1519 = vpack.c.bf16 %v1433, %v1433
        %v1520 = vpack.c.bf16 %v1508, %v1507
        %v1521 = vpack.c.bf16 %v1518, %v1517
        %v1523 = vsel %vm826, %v1519, 0
        %v1526 = vsel %vm826, %v1520, 0
        %1528 = vmatprep.subr.bf16.mxu0 0
        %1529 = vmatpush1.bf16.xpose.msra.mxu0 0
        %1530 = vmatprep.subr.bf16.mxu0 0
        %1531 = vmatpush1.bf16.xpose.msra.mxu0 0
        %1532 = vmatprep.subr.bf16.mxu0 0
        %1533 = vmatpush1.bf16.xpose.msra.mxu0 0
        %1534 = vmatprep.subr.bf16.mxu0 0
        %1535 = vmatpush1.bf16.xpose.msra.mxu0 0
        %1536 = vmatprep.subr.bf16.mxu0 0
        %1537 = vmatpush1.bf16.xpose.msra.mxu0 0
        %1538 = vmatprep.subr.bf16.mxu0 0
        %1539 = vmatpush1.bf16.xpose.msra.mxu0 0
        %1540 = vmatprep.subr.bf16.mxu0 0
        %1541 = vmatpush1.bf16.xpose.msra.mxu0 0
        %1542 = vmatprep.subr.bf16.mxu0 0
        %1543 = vmatpush1.bf16.xpose.msra.mxu0 %v1526
        %1544 = vmatprep.subr.bf16.mxu0 0
        %1545 = vmatpush2.bf16.xpose.msra.mxu0 0
        %1546 = vmatprep.subr.bf16.mxu0 0
        %1547 = vmatpush2.bf16.xpose.msra.mxu0 0
        %1548 = vmatprep.subr.bf16.mxu0 0
        %1549 = vmatpush2.bf16.xpose.msra.mxu0 0
        %1550 = vmatprep.subr.bf16.mxu0 0
        %1551 = vmatpush2.bf16.xpose.msra.mxu0 0
        %1552 = vmatprep.subr.bf16.mxu0 0
        %1553 = vmatpush2.bf16.xpose.msra.mxu0 0
        %1554 = vmatprep.subr.bf16.mxu0 0
        %1555 = vmatpush2.bf16.xpose.msra.mxu0 0
        %1556 = vmatprep.subr.bf16.mxu0 0
        %1557 = vmatpush2.bf16.xpose.msra.mxu0 0
        %1558 = vmatprep.subr.bf16.mxu0 0
        %1559 = vmatpush2.bf16.xpose.msra.mxu0 0
        %1560 = vmatprep.mubr.bf16.mxu0 0
        %1561 = vmatmul.mubr.bf16.gmra.mxu0 %v1523
        %v1562 = vpop.f32.mrf.mxu0
        %v1563 = vadd.f32 %v684, %v1562
        %v1564 = vpop.f32.mrf.mxu0
        %v1565 = vpop.f32.mrf.mxu0
        %v1566 = vpop.f32.mrf.mxu0
        %1567 = vdwg.mxu0
        %vm1568 = vcmask 97280
        %v1569 = vsel %vm1568, %v1563, -inf
        %1570 = vmax.xlane.f32.xlu0 %v1569
        %v1571 = vpop.xlane.xlu0 %1570
        %v1572 = vsub.f32 %v1563, %v1571
        %v1573 = vmul.f32 %v1572, 1.442695
        %v1574 = vpow.pop %v1573
        %v1575 = vsel %vm1568, %v1574, 0.0
        %1576 = vadd.xlane.f32.xlu0 %v1575
        %v1577 = vpop.xlane.xlu0 %1576
        %v1578 = vrcp.pop %v1577
        %v1579 = vmul.f32 %v1574, %v1578
        %1580 = vst.msk [vmem:[%s645] sm:$0xff] %vm1568, %v1579
        %v1581 = vpack.c.bf16 %v1579, %v1579
        %1583 = vrot.lane.b32.xlu0 %v1521, 96
        %v1584 = vpop.permute.xlu0 %1583
        %v1586 = vsel %vm1568, %v1581, 0
        %vm1588 = vcmask 1045504
        %v1590 = vsel %vm1588, %v1584, 0
        %1592 = vmatprep.subr.bf16.mxu0 0
        %1593 = vmatpush1.bf16.msra.mxu0 0
        %1594 = vmatprep.subr.bf16.mxu0 0
        %1595 = vmatpush1.bf16.msra.mxu0 0
        %1596 = vmatprep.subr.bf16.mxu0 0
        %1597 = vmatpush1.bf16.msra.mxu0 0
        %1598 = vmatprep.subr.bf16.mxu0 0
        %1599 = vmatpush1.bf16.msra.mxu0 0
        %1600 = vmatprep.subr.bf16.mxu0 0
        %1601 = vmatpush1.bf16.msra.mxu0 0
        %1602 = vmatprep.subr.bf16.mxu0 0
        %1603 = vmatpush1.bf16.msra.mxu0 0
        %1604 = vmatprep.subr.bf16.mxu0 0
        %1605 = vmatpush1.bf16.msra.mxu0 0
        %1606 = vmatprep.subr.bf16.mxu0 0
        %1607 = vmatpush1.bf16.msra.mxu0 %v1590
        %1608 = vmatprep.subr.bf16.mxu0 0
        %1609 = vmatpush2.bf16.msra.mxu0 0
        %1610 = vmatprep.subr.bf16.mxu0 0
        %1611 = vmatpush2.bf16.msra.mxu0 0
        %1612 = vmatprep.subr.bf16.mxu0 0
        %1613 = vmatpush2.bf16.msra.mxu0 0
        %1614 = vmatprep.subr.bf16.mxu0 0
        %1615 = vmatpush2.bf16.msra.mxu0 0
        %1616 = vmatprep.subr.bf16.mxu0 0
        %1617 = vmatpush2.bf16.msra.mxu0 0
        %1618 = vmatprep.subr.bf16.mxu0 0
        %1619 = vmatpush2.bf16.msra.mxu0 0
        %1620 = vmatprep.subr.bf16.mxu0 0
        %1621 = vmatpush2.bf16.msra.mxu0 0
        %1622 = vmatprep.subr.bf16.mxu0 0
        %1623 = vmatpush2.bf16.msra.mxu0 0
        %1624 = vmatprep.mubr.bf16.mxu0 0
        %1625 = vmatmul.mubr.bf16.gmra.mxu0 %v1586
        %v1626 = vpop.f32.mrf.mxu0
        %v1627 = vadd.f32 0.0, %v1626
        %v1628 = vpop.f32.mrf.mxu0
        %v1629 = vpop.f32.mrf.mxu0
        %v1630 = vpop.f32.mrf.mxu0
        %1631 = vdwg.mxu0
        %1633 = vrot.lane.b32.xlu0 %v1519, 120
        %v1634 = vpop.permute.xlu0 %1633
        %1636 = vrot.lane.b32.xlu0 %v1520, 120
        %v1637 = vpop.permute.xlu0 %1636
        %v1639 = vsel %vm826, %v1634, 0
        %v1642 = vsel %vm826, %v1637, 0
        %1644 = vmatprep.subr.bf16.mxu0 0
        %1645 = vmatpush1.bf16.xpose.msra.mxu0 0
        %1646 = vmatprep.subr.bf16.mxu0 0
        %1647 = vmatpush1.bf16.xpose.msra.mxu0 0
        %1648 = vmatprep.subr.bf16.mxu0 0
        %1649 = vmatpush1.bf16.xpose.msra.mxu0 0
        %1650 = vmatprep.subr.bf16.mxu0 0
        %1651 = vmatpush1.bf16.xpose.msra.mxu0 0
        %1652 = vmatprep.subr.bf16.mxu0 0
        %1653 = vmatpush1.bf16.xpose.msra.mxu0 0
        %1654 = vmatprep.subr.bf16.mxu0 0
        %1655 = vmatpush1.bf16.xpose.msra.mxu0 0
        %1656 = vmatprep.subr.bf16.mxu0 0
        %1657 = vmatpush1.bf16.xpose.msra.mxu0 0
        %1658 = vmatprep.subr.bf16.mxu0 0
        %1659 = vmatpush1.bf16.xpose.msra.mxu0 %v1642
        %1660 = vmatprep.subr.bf16.mxu0 0
        %1661 = vmatpush2.bf16.xpose.msra.mxu0 0
        %1662 = vmatprep.subr.bf16.mxu0 0
        %1663 = vmatpush2.bf16.xpose.msra.mxu0 0
        %1664 = vmatprep.subr.bf16.mxu0 0
        %1665 = vmatpush2.bf16.xpose.msra.mxu0 0
        %1666 = vmatprep.subr.bf16.mxu0 0
        %1667 = vmatpush2.bf16.xpose.msra.mxu0 0
        %1668 = vmatprep.subr.bf16.mxu0 0
        %1669 = vmatpush2.bf16.xpose.msra.mxu0 0
        %1670 = vmatprep.subr.bf16.mxu0 0
        %1671 = vmatpush2.bf16.xpose.msra.mxu0 0
        %1672 = vmatprep.subr.bf16.mxu0 0
        %1673 = vmatpush2.bf16.xpose.msra.mxu0 0
        %1674 = vmatprep.subr.bf16.mxu0 0
        %1675 = vmatpush2.bf16.xpose.msra.mxu0 0
        %1676 = vmatprep.mubr.bf16.mxu0 0
        %1677 = vmatmul.mubr.bf16.gmra.mxu0 %v1639
        %v1678 = vpop.f32.mrf.mxu0
        %v1679 = vadd.f32 %v684, %v1678
        %v1680 = vpop.f32.mrf.mxu0
        %v1681 = vpop.f32.mrf.mxu0
        %v1682 = vpop.f32.mrf.mxu0
        %1683 = vdwg.mxu0
        %v1684 = vsel %vm1568, %v1679, -inf
        %1685 = vmax.xlane.f32.xlu0 %v1684
        %v1686 = vpop.xlane.xlu0 %1685
        %v1687 = vsub.f32 %v1679, %v1686
        %v1688 = vmul.f32 %v1687, 1.442695
        %v1689 = vpow.pop %v1688
        %v1690 = vsel %vm1568, %v1689, 0.0
        %1691 = vadd.xlane.f32.xlu0 %v1690
        %v1692 = vpop.xlane.xlu0 %1691
        %v1693 = vrcp.pop %v1692
        %v1694 = vmul.f32 %v1689, %v1693
        %s1695 = scalar_lea.vmem %s645, 8 [#allocation12]
        %1696 = vst.msk [vmem:[%s1695] sm:$0xff] %vm1568, %v1694
        %v1697 = vpack.c.bf16 %v1694, %v1694
        %1698 = vrot.lane.b32.xlu0 %v1521, 88
        %v1699 = vpop.permute.xlu0 %1698
        %v1701 = vsel %vm1568, %v1697, 0
        %v1704 = vsel %vm1588, %v1699, 0
        %1706 = vmatprep.subr.bf16.mxu0 0
        %1707 = vmatpush1.bf16.msra.mxu0 0
        %1708 = vmatprep.subr.bf16.mxu0 0
        %1709 = vmatpush1.bf16.msra.mxu0 0
        %1710 = vmatprep.subr.bf16.mxu0 0
        %1711 = vmatpush1.bf16.msra.mxu0 0
        %1712 = vmatprep.subr.bf16.mxu0 0
        %1713 = vmatpush1.bf16.msra.mxu0 0
        %1714 = vmatprep.subr.bf16.mxu0 0
        %1715 = vmatpush1.bf16.msra.mxu0 0
        %1716 = vmatprep.subr.bf16.mxu0 0
        %1717 = vmatpush1.bf16.msra.mxu0 0
        %1718 = vmatprep.subr.bf16.mxu0 0
        %1719 = vmatpush1.bf16.msra.mxu0 0
        %1720 = vmatprep.subr.bf16.mxu0 0
        %1721 = vmatpush1.bf16.msra.mxu0 %v1704
        %1722 = vmatprep.subr.bf16.mxu0 0
        %1723 = vmatpush2.bf16.msra.mxu0 0
        %1724 = vmatprep.subr.bf16.mxu0 0
        %1725 = vmatpush2.bf16.msra.mxu0 0
        %1726 = vmatprep.subr.bf16.mxu0 0
        %1727 = vmatpush2.bf16.msra.mxu0 0
        %1728 = vmatprep.subr.bf16.mxu0 0
        %1729 = vmatpush2.bf16.msra.mxu0 0
        %1730 = vmatprep.subr.bf16.mxu0 0
        %1731 = vmatpush2.bf16.msra.mxu0 0
        %1732 = vmatprep.subr.bf16.mxu0 0
        %1733 = vmatpush2.bf16.msra.mxu0 0
        %1734 = vmatprep.subr.bf16.mxu0 0
        %1735 = vmatpush2.bf16.msra.mxu0 0
        %1736 = vmatprep.subr.bf16.mxu0 0
        %1737 = vmatpush2.bf16.msra.mxu0 0
        %1738 = vmatprep.mubr.bf16.mxu0 0
        %1739 = vmatmul.mubr.bf16.gmra.mxu0 %v1701
        %v1740 = vpop.f32.mrf.mxu0
        %v1741 = vadd.f32 0.0, %v1740
        %v1742 = vpop.f32.mrf.mxu0
        %v1743 = vpop.f32.mrf.mxu0
        %v1744 = vpop.f32.mrf.mxu0
        %1745 = vdwg.mxu0
        %1746 = vrot.lane.b32.xlu0 %v1519, 112
        %v1747 = vpop.permute.xlu0 %1746
        %1748 = vrot.lane.b32.xlu0 %v1520, 112
        %v1749 = vpop.permute.xlu0 %1748
        %v1751 = vsel %vm826, %v1747, 0
        %v1754 = vsel %vm826, %v1749, 0
        %1756 = vmatprep.subr.bf16.mxu0 0
        %1757 = vmatpush1.bf16.xpose.msra.mxu0 0
        %1758 = vmatprep.subr.bf16.mxu0 0
        %1759 = vmatpush1.bf16.xpose.msra.mxu0 0
        %1760 = vmatprep.subr.bf16.mxu0 0
        %1761 = vmatpush1.bf16.xpose.msra.mxu0 0
        %1762 = vmatprep.subr.bf16.mxu0 0
        %1763 = vmatpush1.bf16.xpose.msra.mxu0 0
        %1764 = vmatprep.subr.bf16.mxu0 0
        %1765 = vmatpush1.bf16.xpose.msra.mxu0 0
        %1766 = vmatprep.subr.bf16.mxu0 0
        %1767 = vmatpush1.bf16.xpose.msra.mxu0 0
        %1768 = vmatprep.subr.bf16.mxu0 0
        %1769 = vmatpush1.bf16.xpose.msra.mxu0 0
        %1770 = vmatprep.subr.bf16.mxu0 0
        %1771 = vmatpush1.bf16.xpose.msra.mxu0 %v1754
        %1772 = vmatprep.subr.bf16.mxu0 0
        %1773 = vmatpush2.bf16.xpose.msra.mxu0 0
        %1774 = vmatprep.subr.bf16.mxu0 0
        %1775 = vmatpush2.bf16.xpose.msra.mxu0 0
        %1776 = vmatprep.subr.bf16.mxu0 0
        %1777 = vmatpush2.bf16.xpose.msra.mxu0 0
        %1778 = vmatprep.subr.bf16.mxu0 0
        %1779 = vmatpush2.bf16.xpose.msra.mxu0 0
        %1780 = vmatprep.subr.bf16.mxu0 0
        %1781 = vmatpush2.bf16.xpose.msra.mxu0 0
        %1782 = vmatprep.subr.bf16.mxu0 0
        %1783 = vmatpush2.bf16.xpose.msra.mxu0 0
        %1784 = vmatprep.subr.bf16.mxu0 0
        %1785 = vmatpush2.bf16.xpose.msra.mxu0 0
        %1786 = vmatprep.subr.bf16.mxu0 0
        %1787 = vmatpush2.bf16.xpose.msra.mxu0 0
        %1788 = vmatprep.mubr.bf16.mxu0 0
        %1789 = vmatmul.mubr.bf16.gmra.mxu0 %v1751
        %v1790 = vpop.f32.mrf.mxu0
        %v1791 = vadd.f32 %v684, %v1790
        %v1792 = vpop.f32.mrf.mxu0
        %v1793 = vpop.f32.mrf.mxu0
        %v1794 = vpop.f32.mrf.mxu0
        %1795 = vdwg.mxu0
        %v1796 = vsel %vm1568, %v1791, -inf
        %1797 = vmax.xlane.f32.xlu0 %v1796
        %v1798 = vpop.xlane.xlu0 %1797
        %v1799 = vsub.f32 %v1791, %v1798
        %v1800 = vmul.f32 %v1799, 1.442695
        %v1801 = vpow.pop %v1800
        %v1802 = vsel %vm1568, %v1801, 0.0
        %1803 = vadd.xlane.f32.xlu0 %v1802
        %v1804 = vpop.xlane.xlu0 %1803
        %v1805 = vrcp.pop %v1804
        %v1806 = vmul.f32 %v1801, %v1805
        %s1807 = scalar_lea.vmem %s645, 16 [#allocation12]
        %1808 = vst.msk [vmem:[%s1807] sm:$0xff] %vm1568, %v1806
        %v1809 = vpack.c.bf16 %v1806, %v1806
        %1810 = vrot.lane.b32.xlu0 %v1521, 80
        %v1811 = vpop.permute.xlu0 %1810
        %v1813 = vsel %vm1568, %v1809, 0
        %v1816 = vsel %vm1588, %v1811, 0
        %1818 = vmatprep.subr.bf16.mxu0 0
        %1819 = vmatpush1.bf16.msra.mxu0 0
        %1820 = vmatprep.subr.bf16.mxu0 0
        %1821 = vmatpush1.bf16.msra.mxu0 0
        %1822 = vmatprep.subr.bf16.mxu0 0
        %1823 = vmatpush1.bf16.msra.mxu0 0
        %1824 = vmatprep.subr.bf16.mxu0 0
        %1825 = vmatpush1.bf16.msra.mxu0 0
        %1826 = vmatprep.subr.bf16.mxu0 0
        %1827 = vmatpush1.bf16.msra.mxu0 0
        %1828 = vmatprep.subr.bf16.mxu0 0
        %1829 = vmatpush1.bf16.msra.mxu0 0
        %1830 = vmatprep.subr.bf16.mxu0 0
        %1831 = vmatpush1.bf16.msra.mxu0 0
        %1832 = vmatprep.subr.bf16.mxu0 0
        %1833 = vmatpush1.bf16.msra.mxu0 %v1816
        %1834 = vmatprep.subr.bf16.mxu0 0
        %1835 = vmatpush2.bf16.msra.mxu0 0
        %1836 = vmatprep.subr.bf16.mxu0 0
        %1837 = vmatpush2.bf16.msra.mxu0 0
        %1838 = vmatprep.subr.bf16.mxu0 0
        %1839 = vmatpush2.bf16.msra.mxu0 0
        %1840 = vmatprep.subr.bf16.mxu0 0
        %1841 = vmatpush2.bf16.msra.mxu0 0
        %1842 = vmatprep.subr.bf16.mxu0 0
        %1843 = vmatpush2.bf16.msra.mxu0 0
        %1844 = vmatprep.subr.bf16.mxu0 0
        %1845 = vmatpush2.bf16.msra.mxu0 0
        %1846 = vmatprep.subr.bf16.mxu0 0
        %1847 = vmatpush2.bf16.msra.mxu0 0
        %1848 = vmatprep.subr.bf16.mxu0 0
        %1849 = vmatpush2.bf16.msra.mxu0 0
        %1850 = vmatprep.mubr.bf16.mxu0 0
        %1851 = vmatmul.mubr.bf16.gmra.mxu0 %v1813
        %v1852 = vpop.f32.mrf.mxu0
        %v1853 = vadd.f32 0.0, %v1852
        %v1854 = vpop.f32.mrf.mxu0
        %v1855 = vpop.f32.mrf.mxu0
        %v1856 = vpop.f32.mrf.mxu0
        %1857 = vdwg.mxu0
        %1858 = vrot.lane.b32.xlu0 %v1519, 104
        %v1859 = vpop.permute.xlu0 %1858
        %1860 = vrot.lane.b32.xlu0 %v1520, 104
        %v1861 = vpop.permute.xlu0 %1860
        %v1863 = vsel %vm826, %v1859, 0
        %v1866 = vsel %vm826, %v1861, 0
        %1868 = vmatprep.subr.bf16.mxu0 0
        %1869 = vmatpush1.bf16.xpose.msra.mxu0 0
        %1870 = vmatprep.subr.bf16.mxu0 0
        %1871 = vmatpush1.bf16.xpose.msra.mxu0 0
        %1872 = vmatprep.subr.bf16.mxu0 0
        %1873 = vmatpush1.bf16.xpose.msra.mxu0 0
        %1874 = vmatprep.subr.bf16.mxu0 0
        %1875 = vmatpush1.bf16.xpose.msra.mxu0 0
        %1876 = vmatprep.subr.bf16.mxu0 0
        %1877 = vmatpush1.bf16.xpose.msra.mxu0 0
        %1878 = vmatprep.subr.bf16.mxu0 0
        %1879 = vmatpush1.bf16.xpose.msra.mxu0 0
        %1880 = vmatprep.subr.bf16.mxu0 0
        %1881 = vmatpush1.bf16.xpose.msra.mxu0 0
        %1882 = vmatprep.subr.bf16.mxu0 0
        %1883 = vmatpush1.bf16.xpose.msra.mxu0 %v1866
        %1884 = vmatprep.subr.bf16.mxu0 0
        %1885 = vmatpush2.bf16.xpose.msra.mxu0 0
        %1886 = vmatprep.subr.bf16.mxu0 0
        %1887 = vmatpush2.bf16.xpose.msra.mxu0 0
        %1888 = vmatprep.subr.bf16.mxu0 0
        %1889 = vmatpush2.bf16.xpose.msra.mxu0 0
        %1890 = vmatprep.subr.bf16.mxu0 0
        %1891 = vmatpush2.bf16.xpose.msra.mxu0 0
        %1892 = vmatprep.subr.bf16.mxu0 0
        %1893 = vmatpush2.bf16.xpose.msra.mxu0 0
        %1894 = vmatprep.subr.bf16.mxu0 0
        %1895 = vmatpush2.bf16.xpose.msra.mxu0 0
        %1896 = vmatprep.subr.bf16.mxu0 0
        %1897 = vmatpush2.bf16.xpose.msra.mxu0 0
        %1898 = vmatprep.subr.bf16.mxu0 0
        %1899 = vmatpush2.bf16.xpose.msra.mxu0 0
        %1900 = vmatprep.mubr.bf16.mxu0 0
        %1901 = vmatmul.mubr.bf16.gmra.mxu0 %v1863
        %v1902 = vpop.f32.mrf.mxu0
        %v1903 = vadd.f32 %v684, %v1902
        %v1904 = vpop.f32.mrf.mxu0
        %v1905 = vpop.f32.mrf.mxu0
        %v1906 = vpop.f32.mrf.mxu0
        %1907 = vdwg.mxu0
        %v1908 = vsel %vm1568, %v1903, -inf
        %1909 = vmax.xlane.f32.xlu0 %v1908
        %v1910 = vpop.xlane.xlu0 %1909
        %v1911 = vsub.f32 %v1903, %v1910
        %v1912 = vmul.f32 %v1911, 1.442695
        %v1913 = vpow.pop %v1912
        %v1914 = vsel %vm1568, %v1913, 0.0
        %1915 = vadd.xlane.f32.xlu0 %v1914
        %v1916 = vpop.xlane.xlu0 %1915
        %v1917 = vrcp.pop %v1916
        %v1918 = vmul.f32 %v1913, %v1917
        %s1919 = scalar_lea.vmem %s645, 24 [#allocation12]
        %1920 = vst.msk [vmem:[%s1919] sm:$0xff] %vm1568, %v1918
        %v1921 = vpack.c.bf16 %v1918, %v1918
        %1922 = vrot.lane.b32.xlu0 %v1521, 72
        %v1923 = vpop.permute.xlu0 %1922
        %v1925 = vsel %vm1568, %v1921, 0
        %v1928 = vsel %vm1588, %v1923, 0
        %1930 = vmatprep.subr.bf16.mxu0 0
        %1931 = vmatpush1.bf16.msra.mxu0 0
        %1932 = vmatprep.subr.bf16.mxu0 0
        %1933 = vmatpush1.bf16.msra.mxu0 0
        %1934 = vmatprep.subr.bf16.mxu0 0
        %1935 = vmatpush1.bf16.msra.mxu0 0
        %1936 = vmatprep.subr.bf16.mxu0 0
        %1937 = vmatpush1.bf16.msra.mxu0 0
        %1938 = vmatprep.subr.bf16.mxu0 0
        %1939 = vmatpush1.bf16.msra.mxu0 0
        %1940 = vmatprep.subr.bf16.mxu0 0
        %1941 = vmatpush1.bf16.msra.mxu0 0
        %1942 = vmatprep.subr.bf16.mxu0 0
        %1943 = vmatpush1.bf16.msra.mxu0 0
        %1944 = vmatprep.subr.bf16.mxu0 0
        %1945 = vmatpush1.bf16.msra.mxu0 %v1928
        %1946 = vmatprep.subr.bf16.mxu0 0
        %1947 = vmatpush2.bf16.msra.mxu0 0
        %1948 = vmatprep.subr.bf16.mxu0 0
        %1949 = vmatpush2.bf16.msra.mxu0 0
        %1950 = vmatprep.subr.bf16.mxu0 0
        %1951 = vmatpush2.bf16.msra.mxu0 0
        %1952 = vmatprep.subr.bf16.mxu0 0
        %1953 = vmatpush2.bf16.msra.mxu0 0
        %1954 = vmatprep.subr.bf16.mxu0 0
        %1955 = vmatpush2.bf16.msra.mxu0 0
        %1956 = vmatprep.subr.bf16.mxu0 0
        %1957 = vmatpush2.bf16.msra.mxu0 0
        %1958 = vmatprep.subr.bf16.mxu0 0
        %1959 = vmatpush2.bf16.msra.mxu0 0
        %1960 = vmatprep.subr.bf16.mxu0 0
        %1961 = vmatpush2.bf16.msra.mxu0 0
        %1962 = vmatprep.mubr.bf16.mxu0 0
        %1963 = vmatmul.mubr.bf16.gmra.mxu0 %v1925
        %v1964 = vpop.f32.mrf.mxu0
        %v1965 = vadd.f32 0.0, %v1964
        %v1966 = vpop.f32.mrf.mxu0
        %v1967 = vpop.f32.mrf.mxu0
        %v1968 = vpop.f32.mrf.mxu0
        %1969 = vdwg.mxu0
        %1971 = vrot.lane.b32.xlu0 %v1741, 8
        %v1972 = vpop.permute.xlu0 %1971
        %1975 = vrot.lane.b32.xlu0 %v1853, 16
        %v1976 = vpop.permute.xlu0 %1975
        %1979 = vrot.lane.b32.xlu0 %v1965, 24
        %v1980 = vpop.permute.xlu0 %1979
        %v1982 = vsel %vm826, %v1627, %v1972
        %v1983 = vsel %vm1280, %v1982, %v1976
        %v1984 = vsel %vm1282, %v1983, %v1980
        %v1985 = vpack.c.bf16 %v1984, %v1984
        %v1986 = vld [vmem:[#allocation8] sm:$0xf]
        %v1987 = vld [vmem:[#allocation8 + $0x4] sm:$0xf]
        %v1988 = vld [vmem:[#allocation8 + $0x8] sm:$0xf]
        %v1989 = vld [vmem:[#allocation8 + $0xc] sm:$0xf]
        %v1990 = vlaneseq
        %v1991 = vshrl.u32 %v1990, 7
        %v1992 = vsub.s32 1, %v1991
        %v1993 = vrot.slane %v662, %v1992
        %v1998 = vunpack.c.l.b16 %v1986
        %v1999 = vunpack.c.l.b16 %v1987
        %v2000 = vunpack.c.l.b16 %v1988
        %v2001 = vunpack.c.l.b16 %v1989
        %v2002 = vpack.c.b16 %v1999, %v1998
        %v2003 = vpack.c.b16 %v2001, %v2000
        %v2007 = vsel %vm706, %v1985, 0
        %2009 = vmatprep.subr.bf16.mxu0 0
        %2010 = vmatpush1.bf16.msra.mxu0 0
        %2011 = vmatprep.subr.bf16.mxu0 0
        %2012 = vmatpush1.bf16.msra.mxu0 0
        %2013 = vmatprep.subr.bf16.mxu0 0
        %2014 = vmatpush1.bf16.msra.mxu0 0
        %2015 = vmatprep.subr.bf16.mxu0 0
        %2016 = vmatpush1.bf16.msra.mxu0 0
        %2017 = vmatprep.subr.bf16.mxu0 0
        %2018 = vmatpush1.bf16.msra.mxu0 0
        %2019 = vmatprep.subr.bf16.mxu0 0
        %2020 = vmatpush1.bf16.msra.mxu0 0
        %2021 = vmatprep.subr.bf16.mxu0 0
        %2022 = vmatpush1.bf16.msra.mxu0 %v2003
        %2023 = vmatprep.subr.bf16.mxu0 0
        %2024 = vmatpush1.bf16.msra.mxu0 %v2002
        %2025 = vmatprep.subr.bf16.mxu0 0
        %2026 = vmatpush2.bf16.msra.mxu0 0
        %2027 = vmatprep.subr.bf16.mxu0 0
        %2028 = vmatpush2.bf16.msra.mxu0 0
        %2029 = vmatprep.subr.bf16.mxu0 0
        %2030 = vmatpush2.bf16.msra.mxu0 0
        %2031 = vmatprep.subr.bf16.mxu0 0
        %2032 = vmatpush2.bf16.msra.mxu0 0
        %2033 = vmatprep.subr.bf16.mxu0 0
        %2034 = vmatpush2.bf16.msra.mxu0 0
        %2035 = vmatprep.subr.bf16.mxu0 0
        %2036 = vmatpush2.bf16.msra.mxu0 0
        %2037 = vmatprep.subr.bf16.mxu0 0
        %2038 = vmatpush2.bf16.msra.mxu0 0
        %2039 = vmatprep.subr.bf16.mxu0 0
        %2040 = vmatpush2.bf16.msra.mxu0 0
        %2041 = vmatprep.mubr.bf16.mxu0 0
        %2042 = vmatmul.mubr.bf16.gmra.mxu0 %v2007
        %v2043 = vpop.f32.mrf.mxu0
        %v2044 = vadd.f32 %v1993, %v2043
        %v2045 = vpop.f32.mrf.mxu0
        %v2046 = vpop.f32.mrf.mxu0
        %v2047 = vpop.f32.mrf.mxu0
        %2048 = vdwg.mxu0
        %v2049 = vadd.f32 %v1373, %v2044
        %v2050 = vsel %vm706, %v2049, 0.0
        %2051 = vadd.xlane.f32.xlu0 %v2050
        %v2052 = vpop.xlane.xlu0 %2051
        %v2053 = vmul.f32 %v2052, %v1353
        %v2054 = vsub.f32 %v2049, %v2053
        %v2055 = vmul.f32 %v2054, %v2054
        %v2056 = vsel %vm706, %v2055, 0.0
        %2057 = vadd.xlane.f32.xlu0 %v2056
        %v2058 = vpop.xlane.xlu0 %2057
        %v2059 = vmul.f32 %v2058, %v1353
        %v2060 = vadd.f32 %v2059, 1e-05
        %v2061 = vrsqrt.pop %v2060
        %v2062 = vmul.f32 %v2054, %v2061
        %v2063 = vlaneseq
        %v2064 = vshrl.u32 %v2063, 7
        %v2065 = vsub.s32 2, %v2064
        %v2066 = vrot.slane %v662, %v2065
        %v2067 = vmul.f32 %v2062, %v2066
        %v2068 = vlaneseq
        %v2069 = vshrl.u32 %v2068, 7
        %v2070 = vsub.s32 3, %v2069
        %v2071 = vrot.slane %v662, %v2070
        %v2072 = vadd.f32 %v2067, %v2071
        %v2073 = vpack.c.bf16 %v2072, %v2072
        %v2074 = vld [vmem:[#allocation10] sm:$0xf]
        %v2075 = vld [vmem:[#allocation10 + $0x4] sm:$0xf]
        %v2076 = vld [vmem:[#allocation10 + $0x8] sm:$0xf]
        %v2077 = vld [vmem:[#allocation10 + $0xc] sm:$0xf]
        %v2078 = vld [vmem:[%s13] sm:$0x1]
        %v2080 = vlaneseq
        %v2081 = vshrl.u32 %v2080, 7
        %v2082 = vsub.s32 0, %v2081
        %v2083 = vrot.slane %v2078, %v2082
        %v2089 = vunpack.c.l.b16 %v2074
        %v2090 = vunpack.c.l.b16 %v2075
        %v2091 = vunpack.c.l.b16 %v2076
        %v2092 = vunpack.c.l.b16 %v2077
        %v2093 = vpack.c.b16 %v2090, %v2089
        %v2094 = vpack.c.b16 %v2092, %v2091
        %v2098 = vsel %vm706, %v2073, 0
        %2100 = vmatprep.subr.bf16.mxu0 0
        %2101 = vmatpush1.bf16.msra.mxu0 0
        %2102 = vmatprep.subr.bf16.mxu0 0
        %2103 = vmatpush1.bf16.msra.mxu0 0
        %2104 = vmatprep.subr.bf16.mxu0 0
        %2105 = vmatpush1.bf16.msra.mxu0 0
        %2106 = vmatprep.subr.bf16.mxu0 0
        %2107 = vmatpush1.bf16.msra.mxu0 0
        %2108 = vmatprep.subr.bf16.mxu0 0
        %2109 = vmatpush1.bf16.msra.mxu0 0
        %2110 = vmatprep.subr.bf16.mxu0 0
        %2111 = vmatpush1.bf16.msra.mxu0 0
        %2112 = vmatprep.subr.bf16.mxu0 0
        %2113 = vmatpush1.bf16.msra.mxu0 %v2094
        %2114 = vmatprep.subr.bf16.mxu0 0
        %2115 = vmatpush1.bf16.msra.mxu0 %v2093
        %2116 = vmatprep.subr.bf16.mxu0 0
        %2117 = vmatpush2.bf16.msra.mxu0 0
        %2118 = vmatprep.subr.bf16.mxu0 0
        %2119 = vmatpush2.bf16.msra.mxu0 0
        %2120 = vmatprep.subr.bf16.mxu0 0
        %2121 = vmatpush2.bf16.msra.mxu0 0
        %2122 = vmatprep.subr.bf16.mxu0 0
        %2123 = vmatpush2.bf16.msra.mxu0 0
        %2124 = vmatprep.subr.bf16.mxu0 0
        %2125 = vmatpush2.bf16.msra.mxu0 0
        %2126 = vmatprep.subr.bf16.mxu0 0
        %2127 = vmatpush2.bf16.msra.mxu0 0
        %2128 = vmatprep.subr.bf16.mxu0 0
        %2129 = vmatpush2.bf16.msra.mxu0 0
        %2130 = vmatprep.subr.bf16.mxu0 0
        %2131 = vmatpush2.bf16.msra.mxu0 0
        %2132 = vmatprep.mubr.bf16.mxu0 0
        %2133 = vmatmul.mubr.bf16.gmra.mxu0 %v2098
        %v2134 = vpop.f32.mrf.mxu0
        %v2135 = vadd.f32 %v2083, %v2134
        %v2136 = vpop.f32.mrf.mxu0
        %v2137 = vpop.f32.mrf.mxu0
        %v2138 = vpop.f32.mrf.mxu0
        %2139 = vdwg.mxu0
        %v2140 = vmax.f32 %v2135, 0.0
        %v2141 = vpack.c.bf16 %v2140, %v2140
        %v2142 = vld [vmem:[%s11] sm:$0xf]
        %v2143 = vld [vmem:[%s11 + $0x4] sm:$0xf]
        %v2144 = vld [vmem:[%s11 + $0x8] sm:$0xf]
        %v2145 = vld [vmem:[%s11 + $0xc] sm:$0xf]
        %v2146 = vld [vmem:[%s11 + $0x10] sm:$0xf]
        %v2147 = vld [vmem:[%s11 + $0x14] sm:$0xf]
        %v2148 = vld [vmem:[%s11 + $0x18] sm:$0xf]
        %v2149 = vld [vmem:[%s11 + $0x1c] sm:$0xf]
        %v2150 = vlaneseq
        %v2151 = vshrl.u32 %v2150, 7
        %v2152 = vsub.s32 4, %v2151
        %v2153 = vrot.slane %v662, %v2152
        %v2162 = vunpack.c.l.b16 %v2142
        %v2163 = vunpack.c.l.b16 %v2143
        %v2164 = vunpack.c.l.b16 %v2144
        %v2165 = vunpack.c.l.b16 %v2145
        %v2166 = vunpack.c.l.b16 %v2146
        %v2167 = vunpack.c.l.b16 %v2147
        %v2168 = vunpack.c.l.b16 %v2148
        %v2169 = vunpack.c.l.b16 %v2149
        %v2170 = vpack.c.b16 %v2163, %v2162
        %v2171 = vpack.c.b16 %v2165, %v2164
        %v2172 = vpack.c.b16 %v2167, %v2166
        %v2173 = vpack.c.b16 %v2169, %v2168
        %vm2178 = vcmask 523264
        %v2180 = vsel %vm2178, %v2141, 0
        %2182 = vmatprep.subr.bf16.mxu0 0
        %2183 = vmatpush1.bf16.msra.mxu0 0
        %2184 = vmatprep.subr.bf16.mxu0 0
        %2185 = vmatpush1.bf16.msra.mxu0 0
        %2186 = vmatprep.subr.bf16.mxu0 0
        %2187 = vmatpush1.bf16.msra.mxu0 0
        %2188 = vmatprep.subr.bf16.mxu0 0
        %2189 = vmatpush1.bf16.msra.mxu0 0
        %2190 = vmatprep.subr.bf16.mxu0 0
        %2191 = vmatpush1.bf16.msra.mxu0 %v2173
        %2192 = vmatprep.subr.bf16.mxu0 0
        %2193 = vmatpush1.bf16.msra.mxu0 %v2172
        %2194 = vmatprep.subr.bf16.mxu0 0
        %2195 = vmatpush1.bf16.msra.mxu0 %v2171
        %2196 = vmatprep.subr.bf16.mxu0 0
        %2197 = vmatpush1.bf16.msra.mxu0 %v2170
        %2198 = vmatprep.subr.bf16.mxu0 0
        %2199 = vmatpush2.bf16.msra.mxu0 0
        %2200 = vmatprep.subr.bf16.mxu0 0
        %2201 = vmatpush2.bf16.msra.mxu0 0
        %2202 = vmatprep.subr.bf16.mxu0 0
        %2203 = vmatpush2.bf16.msra.mxu0 0
        %2204 = vmatprep.subr.bf16.mxu0 0
        %2205 = vmatpush2.bf16.msra.mxu0 0
        %2206 = vmatprep.subr.bf16.mxu0 0
        %2207 = vmatpush2.bf16.msra.mxu0 0
        %2208 = vmatprep.subr.bf16.mxu0 0
        %2209 = vmatpush2.bf16.msra.mxu0 0
        %2210 = vmatprep.subr.bf16.mxu0 0
        %2211 = vmatpush2.bf16.msra.mxu0 0
        %2212 = vmatprep.subr.bf16.mxu0 0
        %2213 = vmatpush2.bf16.msra.mxu0 0
        %2214 = vmatprep.mubr.bf16.mxu0 0
        %2215 = vmatmul.mubr.bf16.gmra.mxu0 %v2180
        %v2216 = vpop.f32.mrf.mxu0
        %v2217 = vadd.f32 %v2153, %v2216
        %v2218 = vpop.f32.mrf.mxu0
        %v2219 = vpop.f32.mrf.mxu0
        %v2220 = vpop.f32.mrf.mxu0
        %2221 = vdwg.mxu0
        %v2222 = vadd.f32 %v2072, %v2217
        %v2223 = vsel %vm706, %v2222, 0.0
        %2224 = vadd.xlane.f32.xlu0 %v2223
        %v2225 = vpop.xlane.xlu0 %2224
        %v2226 = vmul.f32 %v2225, %v1353
        %v2227 = vsub.f32 %v2222, %v2226
        %v2228 = vmul.f32 %v2227, %v2227
        %v2229 = vsel %vm706, %v2228, 0.0
        %2230 = vadd.xlane.f32.xlu0 %v2229
        %v2231 = vpop.xlane.xlu0 %2230
        %v2232 = vmul.f32 %v2231, %v1353
        %v2233 = vadd.f32 %v2232, 1e-05
        %v2234 = vrsqrt.pop %v2233
        %v2235 = vmul.f32 %v2227, %v2234
        %v2236 = vlaneseq
        %v2237 = vshrl.u32 %v2236, 7
        %v2238 = vsub.s32 5, %v2237
        %v2239 = vrot.slane %v662, %v2238
        %v2240 = vmul.f32 %v2235, %v2239
        %v2241 = vlaneseq
        %v2242 = vshrl.u32 %v2241, 7
        %v2243 = vsub.s32 6, %v2242
        %v2244 = vrot.slane %v662, %v2243
        %v2245 = vadd.f32 %v2240, %v2244
        %2246 = vst.msk [vmem:[%s638] sm:$0xff] %vm706, %v2245
        %s2247 = sand.u32 %s376, 1
        %s2248 = scalar_lea.sflag [#allocation4], %s2247
        %s2249 = sand.u32 %s376, 1
        %s2250 = smul.addr %s2249, 8
        %s2251 = scalar_lea.vmem [#allocation11], %s2250
        %s2252 = sand.u32 %s404, 1
        %s2253 = scalar_lea.sflag [#allocation13], %s2252
        %s2254 = sand.u32 %s404, 1
        %s2255 = smul.addr %s2254, 32
        %s2256 = scalar_lea.vmem [#allocation12], %s2255
        // Predicated region
        $region97: #{tpu_custom_call.1} parent=75 // pred_check
          %p2257 = pneg %p386
        $region98: #{tpu_custom_call.1} parent=75 // pred_check_branch
          %2259 = sbr.rel (%p2257) target = $region100
        $region99: #{tpu_custom_call.1} parent=75 // pred_region
          %s2261 = ssub.s32 128, 128
          %2262 = vsyncadd %s2248, %s2261
          %s2263 = sadd.s32 %s45, %s44
          %s2264 = smul.addr %s2263, 128
          %s2265 = scalar_lea.hbm %s14, %s2264
          %s2267 = sshll.u32 %s2251, 4
          %s2268 = int_to_ptr.vmem [resolvable:$true] %s2267
          %2270 = dma.vmem_to_hbm [thread:$0]  %s2268, 128, %s2265, %s2248
        $region100: #{tpu_custom_call.1} parent=75 // pred_fallthru
          _
        // Predicated region
        $region101: #{tpu_custom_call.1} parent=75 // pred_check
          %p2271 = pneg %p414
        $region102: #{tpu_custom_call.1} parent=75 // pred_check_branch
          %2273 = sbr.rel (%p2271) target = $region104
        $region103: #{tpu_custom_call.1} parent=75 // pred_region
          %s2275 = ssub.s32 512, 512
          %2276 = vsyncadd %s2253, %s2275
          %s2277 = smul.addr %s44, 4
          %s2278 = sadd.s32 %s45, %s2277
          %s2279 = smul.addr %s2278, 128
          %s2280 = scalar_lea.hbm %s15, %s2279
          %s2281 = sshll.u32 %s2256, 4
          %s2282 = int_to_ptr.vmem [resolvable:$true] %s2281
          %2287 = dma.vmem_to_hbm [thread:$0]  %s2282, 512, %s2280, %s2253, 128, 128, 8
        $region104: #{tpu_custom_call.1} parent=75 // pred_fallthru
          _
      $region76: #{tpu_custom_call.1} parent=5 // pred_fallthru
        _
      %p2288 = scmp.le.s32.totalorder 2, %s35
      // Predicated region
      $region105: #{tpu_custom_call.1} parent=5 // pred_check
        %p2289 = pneg %p2288
      $region106: #{tpu_custom_call.1} parent=5 // pred_check_branch
        %2291 = sbr.rel (%p2289) target = $region108
      $region107: #{tpu_custom_call.1} parent=5 // pred_region
        %s2292 = ssub.s32 %s35, 2
        // Predicated region
        $region109: #{tpu_custom_call.1} parent=107 // pred_check
          %p2293 = pneg %p392
        $region110: #{tpu_custom_call.1} parent=107 // pred_check_branch
          %2295 = sbr.rel (%p2293) target = $region112
        $region111: #{tpu_custom_call.1} parent=107 // pred_region
          %s2296 = sand.u32 %s377, 1
          %s2297 = scalar_lea.sflag [#allocation4], %s2296
          %s2298 = sand.u32 %s377, 1
          %s2299 = smul.addr %s2298, 8
          %s2300 = scalar_lea.vmem [#allocation11], %s2299
          %2301 = dma.done %s2297, 128
        $region112: #{tpu_custom_call.1} parent=107 // pred_fallthru
          _
        // Predicated region
        $region113: #{tpu_custom_call.1} parent=107 // pred_check
          %p2302 = pneg %p420
        $region114: #{tpu_custom_call.1} parent=107 // pred_check_branch
          %2304 = sbr.rel (%p2302) target = $region116
        $region115: #{tpu_custom_call.1} parent=107 // pred_region
          %s2305 = sand.u32 %s405, 1
          %s2306 = scalar_lea.sflag [#allocation13], %s2305
          %s2307 = sand.u32 %s405, 1
          %s2308 = smul.addr %s2307, 32
          %s2309 = scalar_lea.vmem [#allocation12], %s2308
          %2310 = dma.done %s2306, 512
        $region116: #{tpu_custom_call.1} parent=107 // pred_fallthru
          _
      $region108: #{tpu_custom_call.1} parent=5 // pred_fallthru
        _
    $region6: #{tpu_custom_call.1} parent=1 // loop_footer
      %s39 = sadd.s32 1, %s35
    $region7: #{tpu_custom_call.1} parent=1 // loop_footer_branch
      %34 = sbr.rel target = $region3
    $region8: #{tpu_custom_call.1} parent=1 // loop_exit
      _
    %2311 = vsyncpa [#allocation3], 1
    %s2312 = scalar_lea.sflag [#allocation3], 1
    %2313 = vsyncpa %s2312, 1
    %2314 = vsyncpa [#allocation6], 1
    %s2315 = scalar_lea.sflag [#allocation6], 1
    %2316 = vsyncpa %s2315, 1
    %2317 = vsyncpa [#allocation9], 1
    %2318 = vsyncpa [#allocation4], 1
    %s2319 = scalar_lea.sflag [#allocation4], 1
    %2320 = vsyncpa %s2319, 1
    %2321 = vsyncpa [#allocation13], 1
    %s2322 = scalar_lea.sflag [#allocation13], 1
    %2323 = vsyncpa %s2322, 1

</llo_original>
